<compile_context>
chip_gen: v6e
topology: v6e:2x2x1
jax: 0.10.0
libtpu: 0.0.40
codegen_flags: <defaults>
</compile_context>

<pallas_src>
import functools

import jax
import jax.numpy as jnp
from jax.experimental import pallas as pl
from jax.experimental.pallas import tpu as pltpu


def _round_up(x, m):
    return ((x + m - 1) // m) * m


# -----------------------------------------------------------------------------
# Fused Head kernel: one grid step = one lane-packed batch chunk, all layers.
# -----------------------------------------------------------------------------
def _head_kernel(x_ref, mf_ref, wb_ref, bb_ref, wl_ref, bl_ref, o_ref,
                 taps_ref, *, W, n_blocks, f_pad):
    # x_ref   : (1, F_pad, L)       lane-packed activations, L = Nc * P_pad
    # mf_ref  : (9*F_pad, L)        per-tap validity mask, pre-broadcast over
    #                               the channel rows (1.0 valid, 0.0 pad)
    # wb_ref  : (max(nb,1), F_pad, 9*F_pad)   conv_block weights (tap-major K)
    # bb_ref  : (max(nb,1), F_pad, 1)         conv_block biases
    # wl_ref  : (OC_pad, 9*F_pad)             last_conv weights
    # bl_ref  : (OC_pad, 1)                   last_conv bias
    # o_ref   : (1, OC_pad, L)
    # taps_ref: (9*F_pad, L) f32 VMEM scratch (im2col slab)
    L = x_ref.shape[-1]

    def conv3x3(act, w, b, relu):
        # act: (F_pad, L) f32, w: (Cout_pad, 9*F_pad), b: (Cout_pad, 1).
        # Build the im2col slab: tap t occupies rows [t*F_pad, (t+1)*F_pad).
        for t in range(9):
            dy, dx = t // 3 - 1, t % 3 - 1
            off = dy * W + dx
            # shifted[c, p] == act[c, (p + off) mod L]; wrap-around and
            # out-of-image positions are zeroed by the mask -> SAME padding.
            shifted = act if off == 0 else pltpu.roll(
                act, shift=(-off) % L, axis=1)
            rows = pl.ds(t * f_pad, f_pad)
            if t == 4:                       # center tap: mask is all-ones
                taps_ref[rows, :] = shifted
            else:
                taps_ref[rows, :] = shifted * mf_ref[rows, :]
        # One MXU matmul does the whole 9-tap x Cin contraction per layer.
        acc = jnp.dot(w, taps_ref[...],
                      preferred_element_type=jnp.float32,
                      precision=jax.lax.Precision.HIGHEST) + b
        if relu:
            acc = jnp.maximum(acc, 0.0)
        return acc

    act = x_ref[0].astype(jnp.float32)                         # (F_pad, L)
    for l in range(n_blocks):                                  # conv tower
        act = conv3x3(act, wb_ref[l], bb_ref[l], relu=True)
    out = conv3x3(act, wl_ref[...], bl_ref[...], relu=False)   # last_conv
    o_ref[0] = out.astype(o_ref.dtype)


# -----------------------------------------------------------------------------
# Wrapper-side layout helpers (pure plumbing, done once / outside the kernel).
# -----------------------------------------------------------------------------
def _pack_conv_weights(w_hwio, b, cout_pad, cin_pad):
    """(3,3,Cin,Cout) HWIO + (Cout,) -> ((Cout_pad, 9*Cin_pad), (Cout_pad, 1)).

    Column layout matches the kernel's im2col slab: col = tap*Cin_pad + cin
    with tap = ky*3 + kx.  Padded rows/cols are zero.
    """
    kh, kw, cin, cout = w_hwio.shape
    w = jnp.transpose(w_hwio, (3, 0, 1, 2))                    # (Cout,3,3,Cin)
    w = jnp.pad(w, ((0, cout_pad - cout), (0, 0), (0, 0), (0, cin_pad - cin)))
    w = w.reshape(cout_pad, kh * kw * cin_pad)
    b = jnp.pad(b, (0, cout_pad - cout)).reshape(cout_pad, 1)
    return w, b


def _make_tap_masks(H, W, p_pad):
    """(9, P_pad) mask: 1.0 where the tap's source pixel is inside the image."""
    ys, xs = jnp.arange(H), jnp.arange(W)
    rows = []
    for dy in (-1, 0, 1):
        for dx in (-1, 0, 1):
            vh = (ys + dy >= 0) & (ys + dy < H)
            vw = (xs + dx >= 0) & (xs + dx < W)
            m = (vh[:, None] & vw[None, :]).reshape(H * W)
            rows.append(jnp.pad(m, (0, p_pad - H * W)))        # pad lanes = 0
    return jnp.stack(rows).astype(jnp.float32)


# -----------------------------------------------------------------------------
# Head module (parameters created deterministically in-script).
# -----------------------------------------------------------------------------
class HeadPallas:
    def __init__(self, n_layers, filters, out_channels, n_anchor_sizes, key):
        assert out_channels % n_anchor_sizes == 0
        self.n_layers = n_layers
        self.filters = filters
        self.out_channels = out_channels
        self.n_anchor_sizes = n_anchor_sizes
        self.last_size_last_layer = out_channels // n_anchor_sizes

        self.f_pad = _round_up(filters, 8)
        self.oc_pad = _round_up(out_channels, 8)
        k_dim = 9 * self.f_pad

        fan_in = filters * 9
        bound = 1.0 / (fan_in ** 0.5)

        # Raw HWIO weights (for the reference) + packed MXU slabs (for the
        # kernel), built ONCE here per the review.
        self.block_params = []
        wb_list, bb_list = [], []
        if n_layers >= 2:
            for _ in range(n_layers - 1):
                key, kw, kb = jax.random.split(key, 3)
                w = jax.random.uniform(kw, (3, 3, filters, filters),
                                       jnp.float32, -bound, bound)
                b = jax.random.uniform(kb, (filters,), jnp.float32,
                                       -bound, bound)
                self.block_params.append((w, b))
                wp, bp = _pack_conv_weights(w, b, self.f_pad, self.f_pad)
                wb_list.append(wp)
                bb_list.append(bp)

        key, kw, kb = jax.random.split(key, 3)
        self.last_w = jax.random.uniform(kw, (3, 3, filters, out_channels),
                                         jnp.float32, -bound, bound)
        self.last_b = jax.random.uniform(kb, (out_channels,), jnp.float32,
                                         -bound, bound)
        self.wl_packed, self.bl_packed = _pack_conv_weights(
            self.last_w, self.last_b, self.oc_pad, self.f_pad)

        self.n_blocks = len(self.block_params)
        if self.n_blocks:
            self.wb_packed = jnp.stack(wb_list)        # (nb, F_pad, 9*F_pad)
            self.bb_packed = jnp.stack(bb_list)        # (nb, F_pad, 1)
        else:  # dummy (unused) so the kernel signature stays fixed
            self.wb_packed = jnp.zeros((1, self.f_pad, k_dim), jnp.float32)
            self.bb_packed = jnp.zeros((1, self.f_pad, 1), jnp.float32)

    def __call__(self, x_nchw):
        N, C, H, W = x_nchw.shape
        F, F_pad, OC_pad = self.filters, self.f_pad, self.oc_pad
        assert C == F
        P = H * W
        P_pad = _round_up(P, 128)

        # Batch-in-lanes chunking: one fat grid step, unless the batch splits
        # into two still-fat halves (>= 1024 lanes each) to feed both v7x TCs.
        G = 2 if (N % 2 == 0 and (N // 2) * P_pad >= 1024) else 1
        Nc = N // G
        L = Nc * P_pad

        # Lane-dense packing (layout plumbing handled by XLA outside the
        # kernel): (N,C,H,W) -> (G, F_pad, Nc*P_pad), zero-padded chans/lanes.
        x = x_nchw.reshape(N, C, P)
        x = jnp.pad(x, ((0, 0), (0, F_pad - C), (0, P_pad - P)))
        x = x.reshape(G, Nc, F_pad, P_pad).transpose(0, 2, 1, 3)
        x = x.reshape(G, F_pad, L)

        # Per-tap validity masks, tiled over the chunk's images (so roll
        # wrap-around across image boundaries is zeroed) and pre-broadcast
        # over channel rows to match the im2col slab layout.
        m = jnp.tile(_make_tap_masks(H, W, P_pad), (1, Nc))            # (9, L)
        mf = jnp.broadcast_to(m[:, None, :], (9, F_pad, L))
        mf = mf.reshape(9 * F_pad, L)

        kernel = functools.partial(_head_kernel, W=W, n_blocks=self.n_blocks,
                                   f_pad=F_pad)

        out = pl.pallas_call(
            kernel,
            out_shape=jax.ShapeDtypeStruct((G, OC_pad, L), x_nchw.dtype),
            grid_spec=pltpu.PrefetchScalarGridSpec(
                num_scalar_prefetch=0,
                grid=(G,),
                in_specs=[
                    pl.BlockSpec((1, F_pad, L), lambda g: (g, 0, 0)),
                    pl.BlockSpec((9 * F_pad, L), lambda g: (0, 0)),
                    pl.BlockSpec(self.wb_packed.shape, lambda g: (0, 0, 0)),
                    pl.BlockSpec(self.bb_packed.shape, lambda g: (0, 0, 0)),
                    pl.BlockSpec(self.wl_packed.shape, lambda g: (0, 0)),
                    pl.BlockSpec(self.bl_packed.shape, lambda g: (0, 0)),
                ],
                out_specs=pl.BlockSpec((1, OC_pad, L), lambda g: (g, 0, 0)),
                scratch_shapes=[pltpu.VMEM((9 * F_pad, L), jnp.float32)],
            ),
            compiler_params=pltpu.CompilerParams(
                dimension_semantics=("parallel",)),
        )(x, mf, self.wb_packed, self.bb_packed, self.wl_packed,
          self.bl_packed)
        # TODO(synk): at production sizes (F >= 128, large H*W) re-tile the
        # lane axis per grid step and budget vmem_limit_bytes for v7x's 64 MiB.

        # Un-pack + the module's permute/unflatten/flatten tail (pure layout):
        #   out_module[n, p*A + a, l] = conv_out[n, a*S + l, p]
        A, S = self.n_anchor_sizes, self.last_size_last_layer
        out = out.reshape(G, OC_pad, Nc, P_pad)[:, :self.out_channels, :, :P]
        out = jnp.transpose(out, (0, 2, 3, 1))                # (G, Nc, P, OC)
        return out.reshape(N, P * A, S)


# -----------------------------------------------------------------------------
# Pure-JAX reference (lax conv) for a correctness cross-check.
# -----------------------------------------------------------------------------
def _ref_forward(head, x_nchw):
    def conv(x, w, b):
        y = jax.lax.conv_general_dilated(
            x, w, window_strides=(1, 1), padding="SAME",
            dimension_numbers=("NCHW", "HWIO", "NCHW"),
            precision=jax.lax.Precision.HIGHEST)
        return y + b[None, :, None, None]

    x = x_nchw
    if head.n_layers >= 2:
        for w, b in head.block_params:
            x = jax.nn.relu(conv(x, w, b))
    x = conv(x, head.last_w, head.last_b)
    x = jnp.transpose(x, (0, 2, 3, 1))
    N, H, W, C = x.shape
    return x.reshape(N, H * W * head.n_anchor_sizes, head.last_size_last_layer)


if __name__ == "__main__":
    key = jax.random.PRNGKey(0)
    k_param, k_x = jax.random.split(key)

    # Small config consistent with the module: filters=4 channels, 16x16 maps,
    # out_channels=8 split into n_anchor_sizes=2 anchors of size 4, 3 layers.
    N, FILTERS, H, W = 2, 4, 16, 16
    N_LAYERS, OUT_CHANNELS, N_ANCHOR_SIZES = 3, 8, 2

    head = HeadPallas(N_LAYERS, FILTERS, OUT_CHANNELS, N_ANCHOR_SIZES, k_param)

    x = jax.random.normal(k_x, (N, FILTERS, H, W), jnp.float32)  # NCHW input

    out = jax.block_until_ready(head(x))

    expected_shape = (N, H * W * N_ANCHOR_SIZES, OUT_CHANNELS // N_ANCHOR_SIZES)
    assert out.shape == expected_shape, (out.shape, expected_shape)

    ref = jax.block_until_ready(_ref_forward(head, x))
    # Both sides request HIGHEST matmul/conv precision (typical error ~1e-6);
    # the slack only covers MXU pass-count differences across TPU generations.
    err = float(jnp.max(jnp.abs(out - ref)))
    assert jnp.allclose(out, ref, atol=2e-2, rtol=2e-2), err

    print("KERNEL_OK")
</pallas_src>

<mosaic_0001>
module attributes {stable_mosaic.version = 11 : i64} {
  func.func @_head_kernel(%arg0: i32, %arg1: memref<1x8x512xf32, #tpu.memory_space<vmem>>, %arg2: memref<72x512xf32, #tpu.memory_space<vmem>>, %arg3: memref<2x8x72xf32, #tpu.memory_space<vmem>>, %arg4: memref<2x8x1xf32, #tpu.memory_space<vmem>>, %arg5: memref<8x72xf32, #tpu.memory_space<vmem>>, %arg6: memref<8x1xf32, #tpu.memory_space<vmem>>, %arg7: memref<1x8x512xf32, #tpu.memory_space<vmem>>, %arg8: memref<72x512xf32, #tpu.memory_space<vmem>>) attributes {dimension_semantics = [#tpu.dimension_semantics<parallel>], iteration_bounds = array<i64: 1>, scalar_prefetch = 0 : i64, scratch_operands = 1 : i64, tpu.core_type = #tpu.core_type<tc>, window_params = [{transform_indices = @transform_0, window_bounds = array<i64: 1, 8, 512>}, {pipeline_mode = #tpu.pipeline_mode<synchronous>, transform_indices = @transform_1, window_bounds = array<i64: 72, 512>}, {pipeline_mode = #tpu.pipeline_mode<synchronous>, transform_indices = @transform_2, window_bounds = array<i64: 2, 8, 72>}, {pipeline_mode = #tpu.pipeline_mode<synchronous>, transform_indices = @transform_3, window_bounds = array<i64: 2, 8, 1>}, {pipeline_mode = #tpu.pipeline_mode<synchronous>, transform_indices = @transform_4, window_bounds = array<i64: 8, 72>}, {pipeline_mode = #tpu.pipeline_mode<synchronous>, transform_indices = @transform_5, window_bounds = array<i64: 8, 1>}, {transform_indices = @transform_6, window_bounds = array<i64: 1, 8, 512>}]} {
    %c0 = arith.constant 0 : index
    %c0_0 = arith.constant 0 : index
    %c0_1 = arith.constant 0 : index
    %0 = vector.load %arg1[%c0, %c0_0, %c0_1] : memref<1x8x512xf32, #tpu.memory_space<vmem>>, vector<1x8x512xf32>
    %1 = vector.shape_cast %0 : vector<1x8x512xf32> to vector<8x512xf32>
    %c0_2 = arith.constant 0 : index
    %c0_3 = arith.constant 0 : index
    %c0_4 = arith.constant 0 : index
    %2 = vector.load %arg3[%c0_2, %c0_3, %c0_4] : memref<2x8x72xf32, #tpu.memory_space<vmem>>, vector<1x8x72xf32>
    %3 = vector.shape_cast %2 : vector<1x8x72xf32> to vector<8x72xf32>
    %c0_5 = arith.constant 0 : index
    %c0_6 = arith.constant 0 : index
    %c0_7 = arith.constant 0 : index
    %4 = vector.load %arg4[%c0_5, %c0_6, %c0_7] : memref<2x8x1xf32, #tpu.memory_space<vmem>>, vector<1x8x1xf32>
    %5 = vector.shape_cast %4 : vector<1x8x1xf32> to vector<8x1xf32>
    %c17_i32 = arith.constant 17 : i32
    %6 = tpu.dynamic_rotate %1 by %c17_i32 dim 1 : vector<8x512xf32>, i32 -> vector<8x512xf32>
    %c0_8 = arith.constant 0 : index
    %c0_9 = arith.constant 0 : index
    %7 = vector.load %arg2[%c0_8, %c0_9] : memref<72x512xf32, #tpu.memory_space<vmem>>, vector<8x512xf32>
    %8 = arith.mulf %6, %7 : vector<8x512xf32>
    %c0_10 = arith.constant 0 : index
    %c0_11 = arith.constant 0 : index
    %9 = vector.load %arg8[%c0_10, %c0_11] : memref<72x512xf32, #tpu.memory_space<vmem>>, vector<8x512xf32>
    tpu.vector_store %arg8[%c0_10, %c0_11], %8 {strides = array<i32>} : memref<72x512xf32, #tpu.memory_space<vmem>>, vector<8x512xf32>,
    %c16_i32 = arith.constant 16 : i32
    %10 = tpu.dynamic_rotate %1 by %c16_i32 dim 1 : vector<8x512xf32>, i32 -> vector<8x512xf32>
    %c8 = arith.constant 8 : index
    %c0_12 = arith.constant 0 : index
    %11 = vector.load %arg2[%c8, %c0_12] : memref<72x512xf32, #tpu.memory_space<vmem>>, vector<8x512xf32>
    %12 = arith.mulf %10, %11 : vector<8x512xf32>
    %c8_13 = arith.constant 8 : index
    %c0_14 = arith.constant 0 : index
    %13 = vector.load %arg8[%c8_13, %c0_14] : memref<72x512xf32, #tpu.memory_space<vmem>>, vector<8x512xf32>
    tpu.vector_store %arg8[%c8_13, %c0_14], %12 {strides = array<i32>} : memref<72x512xf32, #tpu.memory_space<vmem>>, vector<8x512xf32>,
    %c15_i32 = arith.constant 15 : i32
    %14 = tpu.dynamic_rotate %1 by %c15_i32 dim 1 : vector<8x512xf32>, i32 -> vector<8x512xf32>
    %c16 = arith.constant 16 : index
    %c0_15 = arith.constant 0 : index
    %15 = vector.load %arg2[%c16, %c0_15] : memref<72x512xf32, #tpu.memory_space<vmem>>, vector<8x512xf32>
    %16 = arith.mulf %14, %15 : vector<8x512xf32>
    %c16_16 = arith.constant 16 : index
    %c0_17 = arith.constant 0 : index
    %17 = vector.load %arg8[%c16_16, %c0_17] : memref<72x512xf32, #tpu.memory_space<vmem>>, vector<8x512xf32>
    tpu.vector_store %arg8[%c16_16, %c0_17], %16 {strides = array<i32>} : memref<72x512xf32, #tpu.memory_space<vmem>>, vector<8x512xf32>,
    %c1_i32 = arith.constant 1 : i32
    %18 = tpu.dynamic_rotate %1 by %c1_i32 dim 1 : vector<8x512xf32>, i32 -> vector<8x512xf32>
    %c24 = arith.constant 24 : index
    %c0_18 = arith.constant 0 : index
    %19 = vector.load %arg2[%c24, %c0_18] : memref<72x512xf32, #tpu.memory_space<vmem>>, vector<8x512xf32>
    %20 = arith.mulf %18, %19 : vector<8x512xf32>
    %c24_19 = arith.constant 24 : index
    %c0_20 = arith.constant 0 : index
    %21 = vector.load %arg8[%c24_19, %c0_20] : memref<72x512xf32, #tpu.memory_space<vmem>>, vector<8x512xf32>
    tpu.vector_store %arg8[%c24_19, %c0_20], %20 {strides = array<i32>} : memref<72x512xf32, #tpu.memory_space<vmem>>, vector<8x512xf32>,
    %c32 = arith.constant 32 : index
    %c0_21 = arith.constant 0 : index
    %22 = vector.load %arg8[%c32, %c0_21] : memref<72x512xf32, #tpu.memory_space<vmem>>, vector<8x512xf32>
    tpu.vector_store %arg8[%c32, %c0_21], %1 {strides = array<i32>} : memref<72x512xf32, #tpu.memory_space<vmem>>, vector<8x512xf32>,
    %c511_i32 = arith.constant 511 : i32
    %23 = tpu.dynamic_rotate %1 by %c511_i32 dim 1 : vector<8x512xf32>, i32 -> vector<8x512xf32>
    %c40 = arith.constant 40 : index
    %c0_22 = arith.constant 0 : index
    %24 = vector.load %arg2[%c40, %c0_22] : memref<72x512xf32, #tpu.memory_space<vmem>>, vector<8x512xf32>
    %25 = arith.mulf %23, %24 : vector<8x512xf32>
    %c40_23 = arith.constant 40 : index
    %c0_24 = arith.constant 0 : index
    %26 = vector.load %arg8[%c40_23, %c0_24] : memref<72x512xf32, #tpu.memory_space<vmem>>, vector<8x512xf32>
    tpu.vector_store %arg8[%c40_23, %c0_24], %25 {strides = array<i32>} : memref<72x512xf32, #tpu.memory_space<vmem>>, vector<8x512xf32>,
    %c497_i32 = arith.constant 497 : i32
    %27 = tpu.dynamic_rotate %1 by %c497_i32 dim 1 : vector<8x512xf32>, i32 -> vector<8x512xf32>
    %c48 = arith.constant 48 : index
    %c0_25 = arith.constant 0 : index
    %28 = vector.load %arg2[%c48, %c0_25] : memref<72x512xf32, #tpu.memory_space<vmem>>, vector<8x512xf32>
    %29 = arith.mulf %27, %28 : vector<8x512xf32>
    %c48_26 = arith.constant 48 : index
    %c0_27 = arith.constant 0 : index
    %30 = vector.load %arg8[%c48_26, %c0_27] : memref<72x512xf32, #tpu.memory_space<vmem>>, vector<8x512xf32>
    tpu.vector_store %arg8[%c48_26, %c0_27], %29 {strides = array<i32>} : memref<72x512xf32, #tpu.memory_space<vmem>>, vector<8x512xf32>,
    %c496_i32 = arith.constant 496 : i32
    %31 = tpu.dynamic_rotate %1 by %c496_i32 dim 1 : vector<8x512xf32>, i32 -> vector<8x512xf32>
    %c56 = arith.constant 56 : index
    %c0_28 = arith.constant 0 : index
    %32 = vector.load %arg2[%c56, %c0_28] : memref<72x512xf32, #tpu.memory_space<vmem>>, vector<8x512xf32>
    %33 = arith.mulf %31, %32 : vector<8x512xf32>
    %c56_29 = arith.constant 56 : index
    %c0_30 = arith.constant 0 : index
    %34 = vector.load %arg8[%c56_29, %c0_30] : memref<72x512xf32, #tpu.memory_space<vmem>>, vector<8x512xf32>
    tpu.vector_store %arg8[%c56_29, %c0_30], %33 {strides = array<i32>} : memref<72x512xf32, #tpu.memory_space<vmem>>, vector<8x512xf32>,
    %c495_i32 = arith.constant 495 : i32
    %35 = tpu.dynamic_rotate %1 by %c495_i32 dim 1 : vector<8x512xf32>, i32 -> vector<8x512xf32>
    %c64 = arith.constant 64 : index
    %c0_31 = arith.constant 0 : index
    %36 = vector.load %arg2[%c64, %c0_31] : memref<72x512xf32, #tpu.memory_space<vmem>>, vector<8x512xf32>
    %37 = arith.mulf %35, %36 : vector<8x512xf32>
    %c64_32 = arith.constant 64 : index
    %c0_33 = arith.constant 0 : index
    %38 = vector.load %arg8[%c64_32, %c0_33] : memref<72x512xf32, #tpu.memory_space<vmem>>, vector<8x512xf32>
    tpu.vector_store %arg8[%c64_32, %c0_33], %37 {strides = array<i32>} : memref<72x512xf32, #tpu.memory_space<vmem>>, vector<8x512xf32>,
    %c0_34 = arith.constant 0 : index
    %c0_35 = arith.constant 0 : index
    %39 = vector.load %arg8[%c0_34, %c0_35] : memref<72x512xf32, #tpu.memory_space<vmem>>, vector<72x512xf32>
    %cst = arith.constant dense<0.000000e+00> : vector<8x512xf32>
    %40 = tpu.matmul %3, %39, %cst {dimension_numbers = #tpu.dot_dimension_numbers<[1], [0], [0], [1], [0, 0, 1, 1], [], []>, precision = #tpu.contract_precision<fp32>} : vector<8x72xf32>, vector<72x512xf32>, vector<8x512xf32> -> vector<8x512xf32>
    %41 = vector.broadcast %5 : vector<8x1xf32> to vector<8x512xf32>
    %42 = arith.addf %40, %41 : vector<8x512xf32>
    %cst_36 = arith.constant 0.000000e+00 : f32
    %43 = vector.broadcast %cst_36 : f32 to vector<8x512xf32>
    %44 = arith.maximumf %42, %43 : vector<8x512xf32>
    %c1 = arith.constant 1 : index
    %c0_37 = arith.constant 0 : index
    %c0_38 = arith.constant 0 : index
    %45 = vector.load %arg3[%c1, %c0_37, %c0_38] : memref<2x8x72xf32, #tpu.memory_space<vmem>>, vector<1x8x72xf32>
    %46 = vector.shape_cast %45 : vector<1x8x72xf32> to vector<8x72xf32>
    %c1_39 = arith.constant 1 : index
    %c0_40 = arith.constant 0 : index
    %c0_41 = arith.constant 0 : index
    %47 = vector.load %arg4[%c1_39, %c0_40, %c0_41] : memref<2x8x1xf32, #tpu.memory_space<vmem>>, vector<1x8x1xf32>
    %48 = vector.shape_cast %47 : vector<1x8x1xf32> to vector<8x1xf32>
    %c17_i32_42 = arith.constant 17 : i32
    %49 = tpu.dynamic_rotate %44 by %c17_i32_42 dim 1 : vector<8x512xf32>, i32 -> vector<8x512xf32>
    %c0_43 = arith.constant 0 : index
    %c0_44 = arith.constant 0 : index
    %50 = vector.load %arg2[%c0_43, %c0_44] : memref<72x512xf32, #tpu.memory_space<vmem>>, vector<8x512xf32>
    %51 = arith.mulf %49, %50 : vector<8x512xf32>
    %c0_45 = arith.constant 0 : index
    %c0_46 = arith.constant 0 : index
    %52 = vector.load %arg8[%c0_45, %c0_46] : memref<72x512xf32, #tpu.memory_space<vmem>>, vector<8x512xf32>
    tpu.vector_store %arg8[%c0_45, %c0_46], %51 {strides = array<i32>} : memref<72x512xf32, #tpu.memory_space<vmem>>, vector<8x512xf32>,
    %c16_i32_47 = arith.constant 16 : i32
    %53 = tpu.dynamic_rotate %44 by %c16_i32_47 dim 1 : vector<8x512xf32>, i32 -> vector<8x512xf32>
    %c8_48 = arith.constant 8 : index
    %c0_49 = arith.constant 0 : index
    %54 = vector.load %arg2[%c8_48, %c0_49] : memref<72x512xf32, #tpu.memory_space<vmem>>, vector<8x512xf32>
    %55 = arith.mulf %53, %54 : vector<8x512xf32>
    %c8_50 = arith.constant 8 : index
    %c0_51 = arith.constant 0 : index
    %56 = vector.load %arg8[%c8_50, %c0_51] : memref<72x512xf32, #tpu.memory_space<vmem>>, vector<8x512xf32>
    tpu.vector_store %arg8[%c8_50, %c0_51], %55 {strides = array<i32>} : memref<72x512xf32, #tpu.memory_space<vmem>>, vector<8x512xf32>,
    %c15_i32_52 = arith.constant 15 : i32
    %57 = tpu.dynamic_rotate %44 by %c15_i32_52 dim 1 : vector<8x512xf32>, i32 -> vector<8x512xf32>
    %c16_53 = arith.constant 16 : index
    %c0_54 = arith.constant 0 : index
    %58 = vector.load %arg2[%c16_53, %c0_54] : memref<72x512xf32, #tpu.memory_space<vmem>>, vector<8x512xf32>
    %59 = arith.mulf %57, %58 : vector<8x512xf32>
    %c16_55 = arith.constant 16 : index
    %c0_56 = arith.constant 0 : index
    %60 = vector.load %arg8[%c16_55, %c0_56] : memref<72x512xf32, #tpu.memory_space<vmem>>, vector<8x512xf32>
    tpu.vector_store %arg8[%c16_55, %c0_56], %59 {strides = array<i32>} : memref<72x512xf32, #tpu.memory_space<vmem>>, vector<8x512xf32>,
    %c1_i32_57 = arith.constant 1 : i32
    %61 = tpu.dynamic_rotate %44 by %c1_i32_57 dim 1 : vector<8x512xf32>, i32 -> vector<8x512xf32>
    %c24_58 = arith.constant 24 : index
    %c0_59 = arith.constant 0 : index
    %62 = vector.load %arg2[%c24_58, %c0_59] : memref<72x512xf32, #tpu.memory_space<vmem>>, vector<8x512xf32>
    %63 = arith.mulf %61, %62 : vector<8x512xf32>
    %c24_60 = arith.constant 24 : index
    %c0_61 = arith.constant 0 : index
    %64 = vector.load %arg8[%c24_60, %c0_61] : memref<72x512xf32, #tpu.memory_space<vmem>>, vector<8x512xf32>
    tpu.vector_store %arg8[%c24_60, %c0_61], %63 {strides = array<i32>} : memref<72x512xf32, #tpu.memory_space<vmem>>, vector<8x512xf32>,
    %c32_62 = arith.constant 32 : index
    %c0_63 = arith.constant 0 : index
    %65 = vector.load %arg8[%c32_62, %c0_63] : memref<72x512xf32, #tpu.memory_space<vmem>>, vector<8x512xf32>
    tpu.vector_store %arg8[%c32_62, %c0_63], %44 {strides = array<i32>} : memref<72x512xf32, #tpu.memory_space<vmem>>, vector<8x512xf32>,
    %c511_i32_64 = arith.constant 511 : i32
    %66 = tpu.dynamic_rotate %44 by %c511_i32_64 dim 1 : vector<8x512xf32>, i32 -> vector<8x512xf32>
    %c40_65 = arith.constant 40 : index
    %c0_66 = arith.constant 0 : index
    %67 = vector.load %arg2[%c40_65, %c0_66] : memref<72x512xf32, #tpu.memory_space<vmem>>, vector<8x512xf32>
    %68 = arith.mulf %66, %67 : vector<8x512xf32>
    %c40_67 = arith.constant 40 : index
    %c0_68 = arith.constant 0 : index
    %69 = vector.load %arg8[%c40_67, %c0_68] : memref<72x512xf32, #tpu.memory_space<vmem>>, vector<8x512xf32>
    tpu.vector_store %arg8[%c40_67, %c0_68], %68 {strides = array<i32>} : memref<72x512xf32, #tpu.memory_space<vmem>>, vector<8x512xf32>,
    %c497_i32_69 = arith.constant 497 : i32
    %70 = tpu.dynamic_rotate %44 by %c497_i32_69 dim 1 : vector<8x512xf32>, i32 -> vector<8x512xf32>
    %c48_70 = arith.constant 48 : index
    %c0_71 = arith.constant 0 : index
    %71 = vector.load %arg2[%c48_70, %c0_71] : memref<72x512xf32, #tpu.memory_space<vmem>>, vector<8x512xf32>
    %72 = arith.mulf %70, %71 : vector<8x512xf32>
    %c48_72 = arith.constant 48 : index
    %c0_73 = arith.constant 0 : index
    %73 = vector.load %arg8[%c48_72, %c0_73] : memref<72x512xf32, #tpu.memory_space<vmem>>, vector<8x512xf32>
    tpu.vector_store %arg8[%c48_72, %c0_73], %72 {strides = array<i32>} : memref<72x512xf32, #tpu.memory_space<vmem>>, vector<8x512xf32>,
    %c496_i32_74 = arith.constant 496 : i32
    %74 = tpu.dynamic_rotate %44 by %c496_i32_74 dim 1 : vector<8x512xf32>, i32 -> vector<8x512xf32>
    %c56_75 = arith.constant 56 : index
    %c0_76 = arith.constant 0 : index
    %75 = vector.load %arg2[%c56_75, %c0_76] : memref<72x512xf32, #tpu.memory_space<vmem>>, vector<8x512xf32>
    %76 = arith.mulf %74, %75 : vector<8x512xf32>
    %c56_77 = arith.constant 56 : index
    %c0_78 = arith.constant 0 : index
    %77 = vector.load %arg8[%c56_77, %c0_78] : memref<72x512xf32, #tpu.memory_space<vmem>>, vector<8x512xf32>
    tpu.vector_store %arg8[%c56_77, %c0_78], %76 {strides = array<i32>} : memref<72x512xf32, #tpu.memory_space<vmem>>, vector<8x512xf32>,
    %c495_i32_79 = arith.constant 495 : i32
    %78 = tpu.dynamic_rotate %44 by %c495_i32_79 dim 1 : vector<8x512xf32>, i32 -> vector<8x512xf32>
    %c64_80 = arith.constant 64 : index
    %c0_81 = arith.constant 0 : index
    %79 = vector.load %arg2[%c64_80, %c0_81] : memref<72x512xf32, #tpu.memory_space<vmem>>, vector<8x512xf32>
    %80 = arith.mulf %78, %79 : vector<8x512xf32>
    %c64_82 = arith.constant 64 : index
    %c0_83 = arith.constant 0 : index
    %81 = vector.load %arg8[%c64_82, %c0_83] : memref<72x512xf32, #tpu.memory_space<vmem>>, vector<8x512xf32>
    tpu.vector_store %arg8[%c64_82, %c0_83], %80 {strides = array<i32>} : memref<72x512xf32, #tpu.memory_space<vmem>>, vector<8x512xf32>,
    %c0_84 = arith.constant 0 : index
    %c0_85 = arith.constant 0 : index
    %82 = vector.load %arg8[%c0_84, %c0_85] : memref<72x512xf32, #tpu.memory_space<vmem>>, vector<72x512xf32>
    %cst_86 = arith.constant dense<0.000000e+00> : vector<8x512xf32>
    %83 = tpu.matmul %46, %82, %cst_86 {dimension_numbers = #tpu.dot_dimension_numbers<[1], [0], [0], [1], [0, 0, 1, 1], [], []>, precision = #tpu.contract_precision<fp32>} : vector<8x72xf32>, vector<72x512xf32>, vector<8x512xf32> -> vector<8x512xf32>
    %84 = vector.broadcast %48 : vector<8x1xf32> to vector<8x512xf32>
    %85 = arith.addf %83, %84 : vector<8x512xf32>
    %cst_87 = arith.constant 0.000000e+00 : f32
    %86 = vector.broadcast %cst_87 : f32 to vector<8x512xf32>
    %87 = arith.maximumf %85, %86 : vector<8x512xf32>
    %c0_88 = arith.constant 0 : index
    %c0_89 = arith.constant 0 : index
    %88 = vector.load %arg5[%c0_88, %c0_89] : memref<8x72xf32, #tpu.memory_space<vmem>>, vector<8x72xf32>
    %c0_90 = arith.constant 0 : index
    %c0_91 = arith.constant 0 : index
    %89 = vector.load %arg6[%c0_90, %c0_91] : memref<8x1xf32, #tpu.memory_space<vmem>>, vector<8x1xf32>
    %c17_i32_92 = arith.constant 17 : i32
    %90 = tpu.dynamic_rotate %87 by %c17_i32_92 dim 1 : vector<8x512xf32>, i32 -> vector<8x512xf32>
    %c0_93 = arith.constant 0 : index
    %c0_94 = arith.constant 0 : index
    %91 = vector.load %arg2[%c0_93, %c0_94] : memref<72x512xf32, #tpu.memory_space<vmem>>, vector<8x512xf32>
    %92 = arith.mulf %90, %91 : vector<8x512xf32>
    %c0_95 = arith.constant 0 : index
    %c0_96 = arith.constant 0 : index
    %93 = vector.load %arg8[%c0_95, %c0_96] : memref<72x512xf32, #tpu.memory_space<vmem>>, vector<8x512xf32>
    tpu.vector_store %arg8[%c0_95, %c0_96], %92 {strides = array<i32>} : memref<72x512xf32, #tpu.memory_space<vmem>>, vector<8x512xf32>,
    %c16_i32_97 = arith.constant 16 : i32
    %94 = tpu.dynamic_rotate %87 by %c16_i32_97 dim 1 : vector<8x512xf32>, i32 -> vector<8x512xf32>
    %c8_98 = arith.constant 8 : index
    %c0_99 = arith.constant 0 : index
    %95 = vector.load %arg2[%c8_98, %c0_99] : memref<72x512xf32, #tpu.memory_space<vmem>>, vector<8x512xf32>
    %96 = arith.mulf %94, %95 : vector<8x512xf32>
    %c8_100 = arith.constant 8 : index
    %c0_101 = arith.constant 0 : index
    %97 = vector.load %arg8[%c8_100, %c0_101] : memref<72x512xf32, #tpu.memory_space<vmem>>, vector<8x512xf32>
    tpu.vector_store %arg8[%c8_100, %c0_101], %96 {strides = array<i32>} : memref<72x512xf32, #tpu.memory_space<vmem>>, vector<8x512xf32>,
    %c15_i32_102 = arith.constant 15 : i32
    %98 = tpu.dynamic_rotate %87 by %c15_i32_102 dim 1 : vector<8x512xf32>, i32 -> vector<8x512xf32>
    %c16_103 = arith.constant 16 : index
    %c0_104 = arith.constant 0 : index
    %99 = vector.load %arg2[%c16_103, %c0_104] : memref<72x512xf32, #tpu.memory_space<vmem>>, vector<8x512xf32>
    %100 = arith.mulf %98, %99 : vector<8x512xf32>
    %c16_105 = arith.constant 16 : index
    %c0_106 = arith.constant 0 : index
    %101 = vector.load %arg8[%c16_105, %c0_106] : memref<72x512xf32, #tpu.memory_space<vmem>>, vector<8x512xf32>
    tpu.vector_store %arg8[%c16_105, %c0_106], %100 {strides = array<i32>} : memref<72x512xf32, #tpu.memory_space<vmem>>, vector<8x512xf32>,
    %c1_i32_107 = arith.constant 1 : i32
    %102 = tpu.dynamic_rotate %87 by %c1_i32_107 dim 1 : vector<8x512xf32>, i32 -> vector<8x512xf32>
    %c24_108 = arith.constant 24 : index
    %c0_109 = arith.constant 0 : index
    %103 = vector.load %arg2[%c24_108, %c0_109] : memref<72x512xf32, #tpu.memory_space<vmem>>, vector<8x512xf32>
    %104 = arith.mulf %102, %103 : vector<8x512xf32>
    %c24_110 = arith.constant 24 : index
    %c0_111 = arith.constant 0 : index
    %105 = vector.load %arg8[%c24_110, %c0_111] : memref<72x512xf32, #tpu.memory_space<vmem>>, vector<8x512xf32>
    tpu.vector_store %arg8[%c24_110, %c0_111], %104 {strides = array<i32>} : memref<72x512xf32, #tpu.memory_space<vmem>>, vector<8x512xf32>,
    %c32_112 = arith.constant 32 : index
    %c0_113 = arith.constant 0 : index
    %106 = vector.load %arg8[%c32_112, %c0_113] : memref<72x512xf32, #tpu.memory_space<vmem>>, vector<8x512xf32>
    tpu.vector_store %arg8[%c32_112, %c0_113], %87 {strides = array<i32>} : memref<72x512xf32, #tpu.memory_space<vmem>>, vector<8x512xf32>,
    %c511_i32_114 = arith.constant 511 : i32
    %107 = tpu.dynamic_rotate %87 by %c511_i32_114 dim 1 : vector<8x512xf32>, i32 -> vector<8x512xf32>
    %c40_115 = arith.constant 40 : index
    %c0_116 = arith.constant 0 : index
    %108 = vector.load %arg2[%c40_115, %c0_116] : memref<72x512xf32, #tpu.memory_space<vmem>>, vector<8x512xf32>
    %109 = arith.mulf %107, %108 : vector<8x512xf32>
    %c40_117 = arith.constant 40 : index
    %c0_118 = arith.constant 0 : index
    %110 = vector.load %arg8[%c40_117, %c0_118] : memref<72x512xf32, #tpu.memory_space<vmem>>, vector<8x512xf32>
    tpu.vector_store %arg8[%c40_117, %c0_118], %109 {strides = array<i32>} : memref<72x512xf32, #tpu.memory_space<vmem>>, vector<8x512xf32>,
    %c497_i32_119 = arith.constant 497 : i32
    %111 = tpu.dynamic_rotate %87 by %c497_i32_119 dim 1 : vector<8x512xf32>, i32 -> vector<8x512xf32>
    %c48_120 = arith.constant 48 : index
    %c0_121 = arith.constant 0 : index
    %112 = vector.load %arg2[%c48_120, %c0_121] : memref<72x512xf32, #tpu.memory_space<vmem>>, vector<8x512xf32>
    %113 = arith.mulf %111, %112 : vector<8x512xf32>
    %c48_122 = arith.constant 48 : index
    %c0_123 = arith.constant 0 : index
    %114 = vector.load %arg8[%c48_122, %c0_123] : memref<72x512xf32, #tpu.memory_space<vmem>>, vector<8x512xf32>
    tpu.vector_store %arg8[%c48_122, %c0_123], %113 {strides = array<i32>} : memref<72x512xf32, #tpu.memory_space<vmem>>, vector<8x512xf32>,
    %c496_i32_124 = arith.constant 496 : i32
    %115 = tpu.dynamic_rotate %87 by %c496_i32_124 dim 1 : vector<8x512xf32>, i32 -> vector<8x512xf32>
    %c56_125 = arith.constant 56 : index
    %c0_126 = arith.constant 0 : index
    %116 = vector.load %arg2[%c56_125, %c0_126] : memref<72x512xf32, #tpu.memory_space<vmem>>, vector<8x512xf32>
    %117 = arith.mulf %115, %116 : vector<8x512xf32>
    %c56_127 = arith.constant 56 : index
    %c0_128 = arith.constant 0 : index
    %118 = vector.load %arg8[%c56_127, %c0_128] : memref<72x512xf32, #tpu.memory_space<vmem>>, vector<8x512xf32>
    tpu.vector_store %arg8[%c56_127, %c0_128], %117 {strides = array<i32>} : memref<72x512xf32, #tpu.memory_space<vmem>>, vector<8x512xf32>,
    %c495_i32_129 = arith.constant 495 : i32
    %119 = tpu.dynamic_rotate %87 by %c495_i32_129 dim 1 : vector<8x512xf32>, i32 -> vector<8x512xf32>
    %c64_130 = arith.constant 64 : index
    %c0_131 = arith.constant 0 : index
    %120 = vector.load %arg2[%c64_130, %c0_131] : memref<72x512xf32, #tpu.memory_space<vmem>>, vector<8x512xf32>
    %121 = arith.mulf %119, %120 : vector<8x512xf32>
    %c64_132 = arith.constant 64 : index
    %c0_133 = arith.constant 0 : index
    %122 = vector.load %arg8[%c64_132, %c0_133] : memref<72x512xf32, #tpu.memory_space<vmem>>, vector<8x512xf32>
    tpu.vector_store %arg8[%c64_132, %c0_133], %121 {strides = array<i32>} : memref<72x512xf32, #tpu.memory_space<vmem>>, vector<8x512xf32>,
    %c0_134 = arith.constant 0 : index
    %c0_135 = arith.constant 0 : index
    %123 = vector.load %arg8[%c0_134, %c0_135] : memref<72x512xf32, #tpu.memory_space<vmem>>, vector<72x512xf32>
    %cst_136 = arith.constant dense<0.000000e+00> : vector<8x512xf32>
    %124 = tpu.matmul %88, %123, %cst_136 {dimension_numbers = #tpu.dot_dimension_numbers<[1], [0], [0], [1], [0, 0, 1, 1], [], []>, precision = #tpu.contract_precision<fp32>} : vector<8x72xf32>, vector<72x512xf32>, vector<8x512xf32> -> vector<8x512xf32>
    %125 = vector.broadcast %89 : vector<8x1xf32> to vector<8x512xf32>
    %126 = arith.addf %124, %125 : vector<8x512xf32>
    %c0_137 = arith.constant 0 : index
    %c0_138 = arith.constant 0 : index
    %c0_139 = arith.constant 0 : index
    %127 = vector.load %arg7[%c0_137, %c0_138, %c0_139] : memref<1x8x512xf32, #tpu.memory_space<vmem>>, vector<1x8x512xf32>
    %128 = vector.shape_cast %127 : vector<1x8x512xf32> to vector<8x512xf32>
    %129 = vector.shape_cast %126 : vector<8x512xf32> to vector<1x8x512xf32>
    tpu.vector_store %arg7[%c0_137, %c0_138, %c0_139], %129 {strides = array<i32>} : memref<1x8x512xf32, #tpu.memory_space<vmem>>, vector<1x8x512xf32>,
    return
  }
  func.func @transform_0(%arg0: i32) -> (i32, i32, i32) {
    %c0_i32 = arith.constant 0 : i32
    %c0_i32_0 = arith.constant 0 : i32
    %c0_i32_1 = arith.constant 0 : i32
    return %arg0, %c0_i32, %c0_i32_0 : i32, i32, i32
  }
  func.func @transform_1(%arg0: i32) -> (i32, i32) {
    %c0_i32 = arith.constant 0 : i32
    %c0_i32_0 = arith.constant 0 : i32
    %c0_i32_1 = arith.constant 0 : i32
    return %c0_i32, %c0_i32_0 : i32, i32
  }
  func.func @transform_2(%arg0: i32) -> (i32, i32, i32) {
    %c0_i32 = arith.constant 0 : i32
    %c0_i32_0 = arith.constant 0 : i32
    %c0_i32_1 = arith.constant 0 : i32
    %c0_i32_2 = arith.constant 0 : i32
    return %c0_i32, %c0_i32_0, %c0_i32_1 : i32, i32, i32
  }
  func.func @transform_3(%arg0: i32) -> (i32, i32, i32) {
    %c0_i32 = arith.constant 0 : i32
    %c0_i32_0 = arith.constant 0 : i32
    %c0_i32_1 = arith.constant 0 : i32
    %c0_i32_2 = arith.constant 0 : i32
    return %c0_i32, %c0_i32_0, %c0_i32_1 : i32, i32, i32
  }
  func.func @transform_4(%arg0: i32) -> (i32, i32) {
    %c0_i32 = arith.constant 0 : i32
    %c0_i32_0 = arith.constant 0 : i32
    %c0_i32_1 = arith.constant 0 : i32
    return %c0_i32, %c0_i32_0 : i32, i32
  }
  func.func @transform_5(%arg0: i32) -> (i32, i32) {
    %c0_i32 = arith.constant 0 : i32
    %c0_i32_0 = arith.constant 0 : i32
    %c0_i32_1 = arith.constant 0 : i32
    return %c0_i32, %c0_i32_0 : i32, i32
  }
  func.func @transform_6(%arg0: i32) -> (i32, i32, i32) {
    %c0_i32 = arith.constant 0 : i32
    %c0_i32_0 = arith.constant 0 : i32
    %c0_i32_1 = arith.constant 0 : i32
    return %arg0, %c0_i32, %c0_i32_0 : i32, i32, i32
  }
}

</mosaic_0001>

<llo_original>
// kernel: tpu_custom_call.1
$region0: #{tpu_custom_call.1}
  #allocation0 [shape = 'u32[]', space=smem, size = 0x4, offset = 0x4, fixed_abs, tag = 'smem constant byte address 0x4 - core index']
  #allocation1 [shape = 'u32[144,128]{1,0:T(1,128)}', space=vmem, size = 0x12000, scoped, tag = 'internal scratch']
  #allocation2 [shape = 'f32[72,512]{1,0:T(8,128)}', space=vmem, size = 0x24000, scoped, tag = 'scratch operand']
  %s0 = inlined_call_operand.hbm [shape: f32[1,8,512], index: 0, kind: input, shape index: {}]
  %s1 = inlined_call_operand.hbm [shape: f32[72,512], index: 1, kind: input, shape index: {}]
  %s2 = inlined_call_operand.vmem [shape: f32[2,8,72], index: 2, kind: input, shape index: {}]
  %s3 = inlined_call_operand.vmem [shape: f32[2,8,1], index: 3, kind: input, shape index: {}]
  %s4 = inlined_call_operand.vmem [shape: f32[8,72], index: 4, kind: input, shape index: {}]
  %s5 = inlined_call_operand.vmem [shape: f32[8,1], index: 5, kind: input, shape index: {}]
  %s6 = inlined_call_operand.hbm [shape: f32[1,8,512], index: 6, kind: output, shape index: {}]
  %s7 = sld [smem:[#allocation0]]
  $region42: #{tpu_custom_call.1} parent=0
    _
  %s9 = ssub.s32 1, %s7
  %s10 = scalar_select 0, %s9, %s7
  $region1: #{tpu_custom_call.1} parent=0
    #allocation3 [shape = 'u8[16384]{0}', space=vmem, size = 0x4000, scoped, tag = 'input window, operand 0, single buffered']
    #allocation4 [shape = 's32[1]{0}', space=sflag, size = 0x4, scoped, tag = 'scoped memory for tpu_custom_call.1']
    #allocation5 [shape = 's32[1]{0}', space=sflag, size = 0x4, scoped, tag = 'scoped memory for tpu_custom_call.1']
    #allocation6 [shape = 'u8[147456]{0}', space=vmem, size = 0x24000, scoped, tag = 'input window, operand 1, single buffered']
    #allocation7 [shape = 's32[1]{0}', space=sflag, size = 0x4, scoped, tag = 'scoped memory for tpu_custom_call.1']
    #allocation8 [shape = 'u8[16384]{0}', space=vmem, size = 0x4000, scoped, tag = 'output window, operand 0, single buffered']
    %11 = vsyncpa [#allocation4], 0
    %12 = vsyncpa [#allocation7], 0
    %13 = vsyncpa [#allocation5], 0
    // Predicated region
    $region2: #{tpu_custom_call.1} parent=1 // pred_check
      _
    $region3: #{tpu_custom_call.1} parent=1 // pred_check_branch
      %15 = sbr.rel (0) target = $region5
    $region4: #{tpu_custom_call.1} parent=1 // pred_region
      %s17 = ssub.s32 512, 512
      %18 = vsyncadd [#allocation4], %s17
      %s20 = sshll.u32 [#allocation3], 4
      %s21 = int_to_ptr.vmem [resolvable:$true] %s20
      %23 = dma.hbm_to_vmem [thread:$0]  %s0, 512, %s21, [#allocation4]
    $region5: #{tpu_custom_call.1} parent=1 // pred_fallthru
      _
    // Predicated region
    $region6: #{tpu_custom_call.1} parent=1 // pred_check
      _
    $region7: #{tpu_custom_call.1} parent=1 // pred_check_branch
      %25 = sbr.rel (0) target = $region9
    $region8: #{tpu_custom_call.1} parent=1 // pred_region
      %s27 = ssub.s32 4608, 4608
      %28 = vsyncadd [#allocation7], %s27
      %s29 = sshll.u32 [#allocation6], 4
      %s30 = int_to_ptr.vmem [resolvable:$true] %s29
      %35 = dma.hbm_to_vmem [thread:$0]  %s1, 4608, %s30, [#allocation7], 512, 512, 32
    $region9: #{tpu_custom_call.1} parent=1 // pred_fallthru
      _
    // Predicated region
    $region10: #{tpu_custom_call.1} parent=1 // pred_check
      _
    $region11: #{tpu_custom_call.1} parent=1 // pred_check_branch
      %37 = sbr.rel (0) target = $region13
    $region12: #{tpu_custom_call.1} parent=1 // pred_region
      _
    $region13: #{tpu_custom_call.1} parent=1 // pred_fallthru
      _
    // Predicated region
    $region14: #{tpu_custom_call.1} parent=1 // pred_check
      _
    $region15: #{tpu_custom_call.1} parent=1 // pred_check_branch
      %39 = sbr.rel (0) target = $region17
    $region16: #{tpu_custom_call.1} parent=1 // pred_region
      _
    $region17: #{tpu_custom_call.1} parent=1 // pred_fallthru
      _
    // Predicated region
    $region18: #{tpu_custom_call.1} parent=1 // pred_check
      _
    $region19: #{tpu_custom_call.1} parent=1 // pred_check_branch
      %41 = sbr.rel (0) target = $region21
    $region20: #{tpu_custom_call.1} parent=1 // pred_region
      _
    $region21: #{tpu_custom_call.1} parent=1 // pred_fallthru
      _
    // Predicated region
    $region22: #{tpu_custom_call.1} parent=1 // pred_check
      _
    $region23: #{tpu_custom_call.1} parent=1 // pred_check_branch
      %43 = sbr.rel (0) target = $region25
    $region24: #{tpu_custom_call.1} parent=1 // pred_region
      _
    $region25: #{tpu_custom_call.1} parent=1 // pred_fallthru
      _
    // Predicated region
    $region26: #{tpu_custom_call.1} parent=1 // pred_check
      _
    $region27: #{tpu_custom_call.1} parent=1 // pred_check_branch
      %45 = sbr.rel (0) target = $region29
    $region28: #{tpu_custom_call.1} parent=1 // pred_region
      %46 = dma.done [#allocation4], 512
    $region29: #{tpu_custom_call.1} parent=1 // pred_fallthru
      _
    // Predicated region
    $region30: #{tpu_custom_call.1} parent=1 // pred_check
      _
    $region31: #{tpu_custom_call.1} parent=1 // pred_check_branch
      %48 = sbr.rel (0) target = $region33
    $region32: #{tpu_custom_call.1} parent=1 // pred_region
      %49 = dma.done [#allocation7], 4608
    $region33: #{tpu_custom_call.1} parent=1 // pred_fallthru
      _
    %v50 = vld [vmem:[#allocation3] sm:$0xff]
    %v51 = vld [vmem:[#allocation3 + $0x8] sm:$0xff]
    %v52 = vld [vmem:[#allocation3 + $0x10] sm:$0xff]
    %v53 = vld [vmem:[#allocation3 + $0x18] sm:$0xff]
    %v54 = vld [vmem:[%s2] sm:$0xff]
    %v55 = vld [vmem:[%s3] sm:$0xff]
    %56 = vrot.lane.b32.xlu0 %v50, 17
    %v57 = vpop.permute.xlu0 %56
    %58 = vrot.lane.b32.xlu0 %v51, 17
    %v59 = vpop.permute.xlu0 %58
    %60 = vrot.lane.b32.xlu0 %v52, 17
    %v61 = vpop.permute.xlu0 %60
    %62 = vrot.lane.b32.xlu0 %v53, 17
    %v63 = vpop.permute.xlu0 %62
    %v64 = vlaneseq
    %v65 = vand.u32 %v64, 127
    %vm66 = vcmp.lt.s32.totalorder %v65, 17
    %v67 = vsel %vm66, %v61, %v63
    %v68 = vsel %vm66, %v59, %v61
    %v69 = vsel %vm66, %v57, %v59
    %v70 = vsel %vm66, %v63, %v57
    %v71 = vld [vmem:[#allocation6] sm:$0xff]
    %v72 = vld [vmem:[#allocation6 + $0x8] sm:$0xff]
    %v73 = vld [vmem:[#allocation6 + $0x10] sm:$0xff]
    %v74 = vld [vmem:[#allocation6 + $0x18] sm:$0xff]
    %v75 = vmul.f32 %v70, %v71
    %v76 = vmul.f32 %v69, %v72
    %v77 = vmul.f32 %v68, %v73
    %v78 = vmul.f32 %v67, %v74
    %79 = vst [vmem:[#allocation2] sm:$0xff] %v75
    %80 = vst [vmem:[#allocation2 + $0x8] sm:$0xff] %v76
    %81 = vst [vmem:[#allocation2 + $0x10] sm:$0xff] %v77
    %82 = vst [vmem:[#allocation2 + $0x18] sm:$0xff] %v78
    %83 = vrot.lane.b32.xlu0 %v50, 16
    %v84 = vpop.permute.xlu0 %83
    %85 = vrot.lane.b32.xlu0 %v51, 16
    %v86 = vpop.permute.xlu0 %85
    %87 = vrot.lane.b32.xlu0 %v52, 16
    %v88 = vpop.permute.xlu0 %87
    %89 = vrot.lane.b32.xlu0 %v53, 16
    %v90 = vpop.permute.xlu0 %89
    %vm91 = vcmp.lt.s32.totalorder %v65, 16
    %v92 = vsel %vm91, %v88, %v90
    %v93 = vsel %vm91, %v86, %v88
    %v94 = vsel %vm91, %v84, %v86
    %v95 = vsel %vm91, %v90, %v84
    %v96 = vld [vmem:[#allocation6 + $0x20] sm:$0xff]
    %v97 = vld [vmem:[#allocation6 + $0x28] sm:$0xff]
    %v98 = vld [vmem:[#allocation6 + $0x30] sm:$0xff]
    %v99 = vld [vmem:[#allocation6 + $0x38] sm:$0xff]
    %v100 = vmul.f32 %v95, %v96
    %v101 = vmul.f32 %v94, %v97
    %v102 = vmul.f32 %v93, %v98
    %v103 = vmul.f32 %v92, %v99
    %104 = vst [vmem:[#allocation2 + $0x20] sm:$0xff] %v100
    %105 = vst [vmem:[#allocation2 + $0x28] sm:$0xff] %v101
    %106 = vst [vmem:[#allocation2 + $0x30] sm:$0xff] %v102
    %107 = vst [vmem:[#allocation2 + $0x38] sm:$0xff] %v103
    %108 = vrot.lane.b32.xlu0 %v50, 15
    %v109 = vpop.permute.xlu0 %108
    %110 = vrot.lane.b32.xlu0 %v51, 15
    %v111 = vpop.permute.xlu0 %110
    %112 = vrot.lane.b32.xlu0 %v52, 15
    %v113 = vpop.permute.xlu0 %112
    %114 = vrot.lane.b32.xlu0 %v53, 15
    %v115 = vpop.permute.xlu0 %114
    %vm116 = vcmp.lt.s32.totalorder %v65, 15
    %v117 = vsel %vm116, %v113, %v115
    %v118 = vsel %vm116, %v111, %v113
    %v119 = vsel %vm116, %v109, %v111
    %v120 = vsel %vm116, %v115, %v109
    %v121 = vld [vmem:[#allocation6 + $0x40] sm:$0xff]
    %v122 = vld [vmem:[#allocation6 + $0x48] sm:$0xff]
    %v123 = vld [vmem:[#allocation6 + $0x50] sm:$0xff]
    %v124 = vld [vmem:[#allocation6 + $0x58] sm:$0xff]
    %v125 = vmul.f32 %v120, %v121
    %v126 = vmul.f32 %v119, %v122
    %v127 = vmul.f32 %v118, %v123
    %v128 = vmul.f32 %v117, %v124
    %129 = vst [vmem:[#allocation2 + $0x40] sm:$0xff] %v125
    %130 = vst [vmem:[#allocation2 + $0x48] sm:$0xff] %v126
    %131 = vst [vmem:[#allocation2 + $0x50] sm:$0xff] %v127
    %132 = vst [vmem:[#allocation2 + $0x58] sm:$0xff] %v128
    %133 = vrot.lane.b32.xlu0 %v50, 1
    %v134 = vpop.permute.xlu0 %133
    %135 = vrot.lane.b32.xlu0 %v51, 1
    %v136 = vpop.permute.xlu0 %135
    %137 = vrot.lane.b32.xlu0 %v52, 1
    %v138 = vpop.permute.xlu0 %137
    %139 = vrot.lane.b32.xlu0 %v53, 1
    %v140 = vpop.permute.xlu0 %139
    %vm141 = vcmp.lt.s32.totalorder %v65, 1
    %v142 = vsel %vm141, %v138, %v140
    %v143 = vsel %vm141, %v136, %v138
    %v144 = vsel %vm141, %v134, %v136
    %v145 = vsel %vm141, %v140, %v134
    %v146 = vld [vmem:[#allocation6 + $0x60] sm:$0xff]
    %v147 = vld [vmem:[#allocation6 + $0x68] sm:$0xff]
    %v148 = vld [vmem:[#allocation6 + $0x70] sm:$0xff]
    %v149 = vld [vmem:[#allocation6 + $0x78] sm:$0xff]
    %v150 = vmul.f32 %v145, %v146
    %v151 = vmul.f32 %v144, %v147
    %v152 = vmul.f32 %v143, %v148
    %v153 = vmul.f32 %v142, %v149
    %154 = vst [vmem:[#allocation2 + $0x60] sm:$0xff] %v150
    %155 = vst [vmem:[#allocation2 + $0x68] sm:$0xff] %v151
    %156 = vst [vmem:[#allocation2 + $0x70] sm:$0xff] %v152
    %157 = vst [vmem:[#allocation2 + $0x78] sm:$0xff] %v153
    %158 = vst [vmem:[#allocation2 + $0x80] sm:$0xff] %v50
    %159 = vst [vmem:[#allocation2 + $0x88] sm:$0xff] %v51
    %160 = vst [vmem:[#allocation2 + $0x90] sm:$0xff] %v52
    %161 = vst [vmem:[#allocation2 + $0x98] sm:$0xff] %v53
    %162 = vrot.lane.b32.xlu0 %v50, 127
    %v163 = vpop.permute.xlu0 %162
    %164 = vrot.lane.b32.xlu0 %v51, 127
    %v165 = vpop.permute.xlu0 %164
    %166 = vrot.lane.b32.xlu0 %v52, 127
    %v167 = vpop.permute.xlu0 %166
    %168 = vrot.lane.b32.xlu0 %v53, 127
    %v169 = vpop.permute.xlu0 %168
    %vm170 = vcmp.lt.s32.totalorder %v65, 127
    %v171 = vsel %vm170, %v167, %v169
    %v172 = vsel %vm170, %v165, %v167
    %v173 = vsel %vm170, %v163, %v165
    %v174 = vsel %vm170, %v169, %v163
    %v175 = vld [vmem:[#allocation6 + $0xa0] sm:$0xff]
    %v176 = vld [vmem:[#allocation6 + $0xa8] sm:$0xff]
    %v177 = vld [vmem:[#allocation6 + $0xb0] sm:$0xff]
    %v178 = vld [vmem:[#allocation6 + $0xb8] sm:$0xff]
    %v179 = vmul.f32 %v173, %v175
    %v180 = vmul.f32 %v172, %v176
    %v181 = vmul.f32 %v171, %v177
    %v182 = vmul.f32 %v174, %v178
    %183 = vst [vmem:[#allocation2 + $0xa0] sm:$0xff] %v179
    %184 = vst [vmem:[#allocation2 + $0xa8] sm:$0xff] %v180
    %185 = vst [vmem:[#allocation2 + $0xb0] sm:$0xff] %v181
    %186 = vst [vmem:[#allocation2 + $0xb8] sm:$0xff] %v182
    %187 = vrot.lane.b32.xlu0 %v50, 113
    %v188 = vpop.permute.xlu0 %187
    %189 = vrot.lane.b32.xlu0 %v51, 113
    %v190 = vpop.permute.xlu0 %189
    %191 = vrot.lane.b32.xlu0 %v52, 113
    %v192 = vpop.permute.xlu0 %191
    %193 = vrot.lane.b32.xlu0 %v53, 113
    %v194 = vpop.permute.xlu0 %193
    %vm195 = vcmp.lt.s32.totalorder %v65, 113
    %v196 = vsel %vm195, %v192, %v194
    %v197 = vsel %vm195, %v190, %v192
    %v198 = vsel %vm195, %v188, %v190
    %v199 = vsel %vm195, %v194, %v188
    %v200 = vld [vmem:[#allocation6 + $0xc0] sm:$0xff]
    %v201 = vld [vmem:[#allocation6 + $0xc8] sm:$0xff]
    %v202 = vld [vmem:[#allocation6 + $0xd0] sm:$0xff]
    %v203 = vld [vmem:[#allocation6 + $0xd8] sm:$0xff]
    %v204 = vmul.f32 %v198, %v200
    %v205 = vmul.f32 %v197, %v201
    %v206 = vmul.f32 %v196, %v202
    %v207 = vmul.f32 %v199, %v203
    %208 = vst [vmem:[#allocation2 + $0xc0] sm:$0xff] %v204
    %209 = vst [vmem:[#allocation2 + $0xc8] sm:$0xff] %v205
    %210 = vst [vmem:[#allocation2 + $0xd0] sm:$0xff] %v206
    %211 = vst [vmem:[#allocation2 + $0xd8] sm:$0xff] %v207
    %212 = vrot.lane.b32.xlu0 %v50, 112
    %v213 = vpop.permute.xlu0 %212
    %214 = vrot.lane.b32.xlu0 %v51, 112
    %v215 = vpop.permute.xlu0 %214
    %216 = vrot.lane.b32.xlu0 %v52, 112
    %v217 = vpop.permute.xlu0 %216
    %218 = vrot.lane.b32.xlu0 %v53, 112
    %v219 = vpop.permute.xlu0 %218
    %vm220 = vcmp.lt.s32.totalorder %v65, 112
    %v221 = vsel %vm220, %v217, %v219
    %v222 = vsel %vm220, %v215, %v217
    %v223 = vsel %vm220, %v213, %v215
    %v224 = vsel %vm220, %v219, %v213
    %v225 = vld [vmem:[#allocation6 + $0xe0] sm:$0xff]
    %v226 = vld [vmem:[#allocation6 + $0xe8] sm:$0xff]
    %v227 = vld [vmem:[#allocation6 + $0xf0] sm:$0xff]
    %v228 = vld [vmem:[#allocation6 + $0xf8] sm:$0xff]
    %v229 = vmul.f32 %v223, %v225
    %v230 = vmul.f32 %v222, %v226
    %v231 = vmul.f32 %v221, %v227
    %v232 = vmul.f32 %v224, %v228
    %233 = vst [vmem:[#allocation2 + $0xe0] sm:$0xff] %v229
    %234 = vst [vmem:[#allocation2 + $0xe8] sm:$0xff] %v230
    %235 = vst [vmem:[#allocation2 + $0xf0] sm:$0xff] %v231
    %236 = vst [vmem:[#allocation2 + $0xf8] sm:$0xff] %v232
    %237 = vrot.lane.b32.xlu0 %v50, 111
    %v238 = vpop.permute.xlu0 %237
    %239 = vrot.lane.b32.xlu0 %v51, 111
    %v240 = vpop.permute.xlu0 %239
    %241 = vrot.lane.b32.xlu0 %v52, 111
    %v242 = vpop.permute.xlu0 %241
    %243 = vrot.lane.b32.xlu0 %v53, 111
    %v244 = vpop.permute.xlu0 %243
    %vm245 = vcmp.lt.s32.totalorder %v65, 111
    %v246 = vsel %vm245, %v242, %v244
    %v247 = vsel %vm245, %v240, %v242
    %v248 = vsel %vm245, %v238, %v240
    %v249 = vsel %vm245, %v244, %v238
    %v250 = vld [vmem:[#allocation6 + $0x100] sm:$0xff]
    %v251 = vld [vmem:[#allocation6 + $0x108] sm:$0xff]
    %v252 = vld [vmem:[#allocation6 + $0x110] sm:$0xff]
    %v253 = vld [vmem:[#allocation6 + $0x118] sm:$0xff]
    %v254 = vmul.f32 %v248, %v250
    %v255 = vmul.f32 %v247, %v251
    %v256 = vmul.f32 %v246, %v252
    %v257 = vmul.f32 %v249, %v253
    %258 = vst [vmem:[#allocation2 + $0x100] sm:$0xff] %v254
    %259 = vst [vmem:[#allocation2 + $0x108] sm:$0xff] %v255
    %260 = vst [vmem:[#allocation2 + $0x110] sm:$0xff] %v256
    %261 = vst [vmem:[#allocation2 + $0x118] sm:$0xff] %v257
    %v262 = vld [vmem:[#allocation2] sm:$0xff]
    %v263 = vld [vmem:[#allocation2 + $0x8] sm:$0xff]
    %v264 = vld [vmem:[#allocation2 + $0x10] sm:$0xff]
    %v265 = vld [vmem:[#allocation2 + $0x18] sm:$0xff]
    %v266 = vld [vmem:[#allocation2 + $0x20] sm:$0xff]
    %v267 = vld [vmem:[#allocation2 + $0x28] sm:$0xff]
    %v268 = vld [vmem:[#allocation2 + $0x30] sm:$0xff]
    %v269 = vld [vmem:[#allocation2 + $0x38] sm:$0xff]
    %v270 = vld [vmem:[#allocation2 + $0x40] sm:$0xff]
    %v271 = vld [vmem:[#allocation2 + $0x48] sm:$0xff]
    %v272 = vld [vmem:[#allocation2 + $0x50] sm:$0xff]
    %v273 = vld [vmem:[#allocation2 + $0x58] sm:$0xff]
    %v274 = vld [vmem:[#allocation2 + $0x60] sm:$0xff]
    %v275 = vld [vmem:[#allocation2 + $0x68] sm:$0xff]
    %v276 = vld [vmem:[#allocation2 + $0x70] sm:$0xff]
    %v277 = vld [vmem:[#allocation2 + $0x78] sm:$0xff]
    %v278 = vld [vmem:[#allocation2 + $0x80] sm:$0xff]
    %v279 = vld [vmem:[#allocation2 + $0x88] sm:$0xff]
    %v280 = vld [vmem:[#allocation2 + $0x90] sm:$0xff]
    %v281 = vld [vmem:[#allocation2 + $0x98] sm:$0xff]
    %v282 = vld [vmem:[#allocation2 + $0xa0] sm:$0xff]
    %v283 = vld [vmem:[#allocation2 + $0xa8] sm:$0xff]
    %v284 = vld [vmem:[#allocation2 + $0xb0] sm:$0xff]
    %v285 = vld [vmem:[#allocation2 + $0xb8] sm:$0xff]
    %v286 = vld [vmem:[#allocation2 + $0xc0] sm:$0xff]
    %v287 = vld [vmem:[#allocation2 + $0xc8] sm:$0xff]
    %v288 = vld [vmem:[#allocation2 + $0xd0] sm:$0xff]
    %v289 = vld [vmem:[#allocation2 + $0xd8] sm:$0xff]
    %v290 = vld [vmem:[#allocation2 + $0xe0] sm:$0xff]
    %v291 = vld [vmem:[#allocation2 + $0xe8] sm:$0xff]
    %v292 = vld [vmem:[#allocation2 + $0xf0] sm:$0xff]
    %v293 = vld [vmem:[#allocation2 + $0xf8] sm:$0xff]
    %v294 = vld [vmem:[#allocation2 + $0x100] sm:$0xff]
    %v295 = vld [vmem:[#allocation2 + $0x108] sm:$0xff]
    %v296 = vld [vmem:[#allocation2 + $0x110] sm:$0xff]
    %v297 = vld [vmem:[#allocation2 + $0x118] sm:$0xff]
    %299 = vset.pattern.permute.xlu0 0
    %300 = vperm.xlu0 %299, %v55
    %v301 = vpop.permute.xlu0 %300
    %vm303 = vcmask 588800
    %v305 = vsel %vm303, %v54, 0
    %307 = vmatprep.subr.mxu0 0.0
    %308 = vmatpush1.msra.mxu0 0.0
    %309 = vmatprep.subr.mxu0 0.0
    %310 = vmatpush1.msra.mxu0 0.0
    %311 = vmatprep.subr.mxu0 0.0
    %312 = vmatpush1.msra.mxu0 0.0
    %313 = vmatprep.subr.mxu0 0.0
    %314 = vmatpush1.msra.mxu0 0.0
    %315 = vmatprep.subr.mxu0 0.0
    %316 = vmatpush1.msra.mxu0 0.0
    %317 = vmatprep.subr.mxu0 0.0
    %318 = vmatpush1.msra.mxu0 0.0
    %319 = vmatprep.subr.mxu0 0.0
    %320 = vmatpush1.msra.mxu0 0.0
    %v321 = vand.u32 %v295, 4294901760
    %322 = vmatprep.subr.mxu0 %v321
    %v323 = vand.u32 %v294, 4294901760
    %324 = vmatpush1.msra.mxu0 %v323
    %v325 = vand.u32 %v291, 4294901760
    %326 = vmatprep.subr.mxu0 %v325
    %v327 = vand.u32 %v290, 4294901760
    %328 = vmatpush1.msra.mxu0 %v327
    %v329 = vand.u32 %v287, 4294901760
    %330 = vmatprep.subr.mxu0 %v329
    %v331 = vand.u32 %v286, 4294901760
    %332 = vmatpush1.msra.mxu0 %v331
    %v333 = vand.u32 %v283, 4294901760
    %334 = vmatprep.subr.mxu0 %v333
    %v335 = vand.u32 %v282, 4294901760
    %336 = vmatpush1.msra.mxu0 %v335
    %v337 = vand.u32 %v279, 4294901760
    %338 = vmatprep.subr.mxu0 %v337
    %v339 = vand.u32 %v278, 4294901760
    %340 = vmatpush1.msra.mxu0 %v339
    %v341 = vand.u32 %v275, 4294901760
    %342 = vmatprep.subr.mxu0 %v341
    %v343 = vand.u32 %v274, 4294901760
    %344 = vmatpush1.msra.mxu0 %v343
    %v345 = vand.u32 %v271, 4294901760
    %346 = vmatprep.subr.mxu0 %v345
    %v347 = vand.u32 %v270, 4294901760
    %348 = vmatpush1.msra.mxu0 %v347
    %v349 = vand.u32 %v267, 4294901760
    %350 = vmatprep.subr.mxu0 %v349
    %v351 = vand.u32 %v266, 4294901760
    %352 = vmatpush1.msra.mxu0 %v351
    %v353 = vand.u32 %v263, 4294901760
    %354 = vmatprep.subr.mxu0 %v353
    %v355 = vand.u32 %v262, 4294901760
    %356 = vmatpush1.msra.mxu0 %v355
    %357 = vmatprep.subr.mxu0 0.0
    %358 = vmatpush2.msra.mxu0 0.0
    %359 = vmatprep.subr.mxu0 0.0
    %360 = vmatpush2.msra.mxu0 0.0
    %361 = vmatprep.subr.mxu0 0.0
    %362 = vmatpush2.msra.mxu0 0.0
    %363 = vmatprep.subr.mxu0 0.0
    %364 = vmatpush2.msra.mxu0 0.0
    %365 = vmatprep.subr.mxu0 0.0
    %366 = vmatpush2.msra.mxu0 0.0
    %367 = vmatprep.subr.mxu0 0.0
    %368 = vmatpush2.msra.mxu0 0.0
    %369 = vmatprep.subr.mxu0 0.0
    %370 = vmatpush2.msra.mxu0 0.0
    %371 = vmatprep.subr.mxu0 0.0
    %372 = vmatpush2.msra.mxu0 0.0
    %373 = vmatprep.subr.mxu0 0.0
    %374 = vmatpush2.msra.mxu0 0.0
    %375 = vmatprep.subr.mxu0 0.0
    %376 = vmatpush2.msra.mxu0 0.0
    %377 = vmatprep.subr.mxu0 0.0
    %378 = vmatpush2.msra.mxu0 0.0
    %379 = vmatprep.subr.mxu0 0.0
    %380 = vmatpush2.msra.mxu0 0.0
    %381 = vmatprep.subr.mxu0 0.0
    %382 = vmatpush2.msra.mxu0 0.0
    %383 = vmatprep.subr.mxu0 0.0
    %384 = vmatpush2.msra.mxu0 0.0
    %385 = vmatprep.subr.mxu0 0.0
    %386 = vmatpush2.msra.mxu0 0.0
    %387 = vmatprep.subr.mxu0 0.0
    %388 = vmatpush2.msra.mxu0 0.0
    %389 = vmatprep.mubr.f32.mxu0 0.0
    %v390 = vand.u32 %v305, 4294901760
    %v391 = vsub.f32 %v305, %v390
    %v392 = vand.u32 %v391, 4294901760
    %v393 = vsub.f32 %v391, %v392
    %v394 = vand.u32 %v393, 4294901760
    %395 = vmatmul.mubr.f32.gmra.mxu0 %v394
    %v396 = vpop.f32.mrf.mxu0
    %v397 = vadd.f32 %v301, %v396
    %v398 = vpop.f32.mrf.mxu0
    %v399 = vadd.f32 %v301, %v398
    %400 = vdwg.mxu0
    %401 = vmatprep.subr.mxu0 0.0
    %402 = vmatpush1.msra.mxu0 0.0
    %403 = vmatprep.subr.mxu0 0.0
    %404 = vmatpush1.msra.mxu0 0.0
    %405 = vmatprep.subr.mxu0 0.0
    %406 = vmatpush1.msra.mxu0 0.0
    %407 = vmatprep.subr.mxu0 0.0
    %408 = vmatpush1.msra.mxu0 0.0
    %409 = vmatprep.subr.mxu0 0.0
    %410 = vmatpush1.msra.mxu0 0.0
    %411 = vmatprep.subr.mxu0 0.0
    %412 = vmatpush1.msra.mxu0 0.0
    %413 = vmatprep.subr.mxu0 0.0
    %414 = vmatpush1.msra.mxu0 0.0
    %v415 = vand.u32 %v295, 4294901760
    %v416 = vsub.f32 %v295, %v415
    %v417 = vand.u32 %v416, 4294901760
    %v418 = vsub.f32 %v416, %v417
    %v419 = vand.u32 %v418, 4294901760
    %420 = vmatprep.subr.mxu0 %v419
    %v421 = vand.u32 %v294, 4294901760
    %v422 = vsub.f32 %v294, %v421
    %v423 = vand.u32 %v422, 4294901760
    %v424 = vsub.f32 %v422, %v423
    %v425 = vand.u32 %v424, 4294901760
    %426 = vmatpush1.msra.mxu0 %v425
    %v427 = vand.u32 %v291, 4294901760
    %v428 = vsub.f32 %v291, %v427
    %v429 = vand.u32 %v428, 4294901760
    %v430 = vsub.f32 %v428, %v429
    %v431 = vand.u32 %v430, 4294901760
    %432 = vmatprep.subr.mxu0 %v431
    %v433 = vand.u32 %v290, 4294901760
    %v434 = vsub.f32 %v290, %v433
    %v435 = vand.u32 %v434, 4294901760
    %v436 = vsub.f32 %v434, %v435
    %v437 = vand.u32 %v436, 4294901760
    %438 = vmatpush1.msra.mxu0 %v437
    %v439 = vand.u32 %v287, 4294901760
    %v440 = vsub.f32 %v287, %v439
    %v441 = vand.u32 %v440, 4294901760
    %v442 = vsub.f32 %v440, %v441
    %v443 = vand.u32 %v442, 4294901760
    %444 = vmatprep.subr.mxu0 %v443
    %v445 = vand.u32 %v286, 4294901760
    %v446 = vsub.f32 %v286, %v445
    %v447 = vand.u32 %v446, 4294901760
    %v448 = vsub.f32 %v446, %v447
    %v449 = vand.u32 %v448, 4294901760
    %450 = vmatpush1.msra.mxu0 %v449
    %v451 = vand.u32 %v283, 4294901760
    %v452 = vsub.f32 %v283, %v451
    %v453 = vand.u32 %v452, 4294901760
    %v454 = vsub.f32 %v452, %v453
    %v455 = vand.u32 %v454, 4294901760
    %456 = vmatprep.subr.mxu0 %v455
    %v457 = vand.u32 %v282, 4294901760
    %v458 = vsub.f32 %v282, %v457
    %v459 = vand.u32 %v458, 4294901760
    %v460 = vsub.f32 %v458, %v459
    %v461 = vand.u32 %v460, 4294901760
    %462 = vmatpush1.msra.mxu0 %v461
    %v463 = vand.u32 %v279, 4294901760
    %v464 = vsub.f32 %v279, %v463
    %v465 = vand.u32 %v464, 4294901760
    %v466 = vsub.f32 %v464, %v465
    %v467 = vand.u32 %v466, 4294901760
    %468 = vmatprep.subr.mxu0 %v467
    %v469 = vand.u32 %v278, 4294901760
    %v470 = vsub.f32 %v278, %v469
    %v471 = vand.u32 %v470, 4294901760
    %v472 = vsub.f32 %v470, %v471
    %v473 = vand.u32 %v472, 4294901760
    %474 = vmatpush1.msra.mxu0 %v473
    %v475 = vand.u32 %v275, 4294901760
    %v476 = vsub.f32 %v275, %v475
    %v477 = vand.u32 %v476, 4294901760
    %v478 = vsub.f32 %v476, %v477
    %v479 = vand.u32 %v478, 4294901760
    %480 = vmatprep.subr.mxu0 %v479
    %v481 = vand.u32 %v274, 4294901760
    %v482 = vsub.f32 %v274, %v481
    %v483 = vand.u32 %v482, 4294901760
    %v484 = vsub.f32 %v482, %v483
    %v485 = vand.u32 %v484, 4294901760
    %486 = vmatpush1.msra.mxu0 %v485
    %v487 = vand.u32 %v271, 4294901760
    %v488 = vsub.f32 %v271, %v487
    %v489 = vand.u32 %v488, 4294901760
    %v490 = vsub.f32 %v488, %v489
    %v491 = vand.u32 %v490, 4294901760
    %492 = vmatprep.subr.mxu0 %v491
    %v493 = vand.u32 %v270, 4294901760
    %v494 = vsub.f32 %v270, %v493
    %v495 = vand.u32 %v494, 4294901760
    %v496 = vsub.f32 %v494, %v495
    %v497 = vand.u32 %v496, 4294901760
    %498 = vmatpush1.msra.mxu0 %v497
    %v499 = vand.u32 %v267, 4294901760
    %v500 = vsub.f32 %v267, %v499
    %v501 = vand.u32 %v500, 4294901760
    %v502 = vsub.f32 %v500, %v501
    %v503 = vand.u32 %v502, 4294901760
    %504 = vmatprep.subr.mxu0 %v503
    %v505 = vand.u32 %v266, 4294901760
    %v506 = vsub.f32 %v266, %v505
    %v507 = vand.u32 %v506, 4294901760
    %v508 = vsub.f32 %v506, %v507
    %v509 = vand.u32 %v508, 4294901760
    %510 = vmatpush1.msra.mxu0 %v509
    %v511 = vand.u32 %v263, 4294901760
    %v512 = vsub.f32 %v263, %v511
    %v513 = vand.u32 %v512, 4294901760
    %v514 = vsub.f32 %v512, %v513
    %v515 = vand.u32 %v514, 4294901760
    %516 = vmatprep.subr.mxu0 %v515
    %v517 = vand.u32 %v262, 4294901760
    %v518 = vsub.f32 %v262, %v517
    %v519 = vand.u32 %v518, 4294901760
    %v520 = vsub.f32 %v518, %v519
    %v521 = vand.u32 %v520, 4294901760
    %522 = vmatpush1.msra.mxu0 %v521
    %523 = vmatprep.subr.mxu0 0.0
    %524 = vmatpush2.msra.mxu0 0.0
    %525 = vmatprep.subr.mxu0 0.0
    %526 = vmatpush2.msra.mxu0 0.0
    %527 = vmatprep.subr.mxu0 0.0
    %528 = vmatpush2.msra.mxu0 0.0
    %529 = vmatprep.subr.mxu0 0.0
    %530 = vmatpush2.msra.mxu0 0.0
    %531 = vmatprep.subr.mxu0 0.0
    %532 = vmatpush2.msra.mxu0 0.0
    %533 = vmatprep.subr.mxu0 0.0
    %534 = vmatpush2.msra.mxu0 0.0
    %535 = vmatprep.subr.mxu0 0.0
    %536 = vmatpush2.msra.mxu0 0.0
    %537 = vmatprep.subr.mxu0 0.0
    %538 = vmatpush2.msra.mxu0 0.0
    %539 = vmatprep.subr.mxu0 0.0
    %540 = vmatpush2.msra.mxu0 0.0
    %541 = vmatprep.subr.mxu0 0.0
    %542 = vmatpush2.msra.mxu0 0.0
    %543 = vmatprep.subr.mxu0 0.0
    %544 = vmatpush2.msra.mxu0 0.0
    %545 = vmatprep.subr.mxu0 0.0
    %546 = vmatpush2.msra.mxu0 0.0
    %547 = vmatprep.subr.mxu0 0.0
    %548 = vmatpush2.msra.mxu0 0.0
    %549 = vmatprep.subr.mxu0 0.0
    %550 = vmatpush2.msra.mxu0 0.0
    %551 = vmatprep.subr.mxu0 0.0
    %552 = vmatpush2.msra.mxu0 0.0
    %553 = vmatprep.subr.mxu0 0.0
    %554 = vmatpush2.msra.mxu0 0.0
    %555 = vmatprep.mubr.f32.mxu0 0.0
    %v556 = vand.u32 %v305, 4294901760
    %557 = vmatmul.mubr.f32.gmra.mxu0 %v556
    %v558 = vpop.f32.mrf.mxu0
    %v559 = vadd.f32 %v397, %v558
    %v560 = vpop.f32.mrf.mxu0
    %v561 = vadd.f32 %v399, %v560
    %562 = vdwg.mxu0
    %563 = vmatprep.subr.mxu0 0.0
    %564 = vmatpush1.msra.mxu0 0.0
    %565 = vmatprep.subr.mxu0 0.0
    %566 = vmatpush1.msra.mxu0 0.0
    %567 = vmatprep.subr.mxu0 0.0
    %568 = vmatpush1.msra.mxu0 0.0
    %569 = vmatprep.subr.mxu0 0.0
    %570 = vmatpush1.msra.mxu0 0.0
    %571 = vmatprep.subr.mxu0 0.0
    %572 = vmatpush1.msra.mxu0 0.0
    %573 = vmatprep.subr.mxu0 0.0
    %574 = vmatpush1.msra.mxu0 0.0
    %575 = vmatprep.subr.mxu0 0.0
    %576 = vmatpush1.msra.mxu0 0.0
    %v577 = vand.u32 %v295, 4294901760
    %v578 = vsub.f32 %v295, %v577
    %579 = vmatprep.subr.mxu0 %v578
    %v580 = vand.u32 %v294, 4294901760
    %v581 = vsub.f32 %v294, %v580
    %582 = vmatpush1.msra.mxu0 %v581
    %v583 = vand.u32 %v291, 4294901760
    %v584 = vsub.f32 %v291, %v583
    %585 = vmatprep.subr.mxu0 %v584
    %v586 = vand.u32 %v290, 4294901760
    %v587 = vsub.f32 %v290, %v586
    %588 = vmatpush1.msra.mxu0 %v587
    %v589 = vand.u32 %v287, 4294901760
    %v590 = vsub.f32 %v287, %v589
    %591 = vmatprep.subr.mxu0 %v590
    %v592 = vand.u32 %v286, 4294901760
    %v593 = vsub.f32 %v286, %v592
    %594 = vmatpush1.msra.mxu0 %v593
    %v595 = vand.u32 %v283, 4294901760
    %v596 = vsub.f32 %v283, %v595
    %597 = vmatprep.subr.mxu0 %v596
    %v598 = vand.u32 %v282, 4294901760
    %v599 = vsub.f32 %v282, %v598
    %600 = vmatpush1.msra.mxu0 %v599
    %v601 = vand.u32 %v279, 4294901760
    %v602 = vsub.f32 %v279, %v601
    %603 = vmatprep.subr.mxu0 %v602
    %v604 = vand.u32 %v278, 4294901760
    %v605 = vsub.f32 %v278, %v604
    %606 = vmatpush1.msra.mxu0 %v605
    %v607 = vand.u32 %v275, 4294901760
    %v608 = vsub.f32 %v275, %v607
    %609 = vmatprep.subr.mxu0 %v608
    %v610 = vand.u32 %v274, 4294901760
    %v611 = vsub.f32 %v274, %v610
    %612 = vmatpush1.msra.mxu0 %v611
    %v613 = vand.u32 %v271, 4294901760
    %v614 = vsub.f32 %v271, %v613
    %615 = vmatprep.subr.mxu0 %v614
    %v616 = vand.u32 %v270, 4294901760
    %v617 = vsub.f32 %v270, %v616
    %618 = vmatpush1.msra.mxu0 %v617
    %v619 = vand.u32 %v267, 4294901760
    %v620 = vsub.f32 %v267, %v619
    %621 = vmatprep.subr.mxu0 %v620
    %v622 = vand.u32 %v266, 4294901760
    %v623 = vsub.f32 %v266, %v622
    %624 = vmatpush1.msra.mxu0 %v623
    %v625 = vand.u32 %v263, 4294901760
    %v626 = vsub.f32 %v263, %v625
    %627 = vmatprep.subr.mxu0 %v626
    %v628 = vand.u32 %v262, 4294901760
    %v629 = vsub.f32 %v262, %v628
    %630 = vmatpush1.msra.mxu0 %v629
    %631 = vmatprep.subr.mxu0 0.0
    %632 = vmatpush2.msra.mxu0 0.0
    %633 = vmatprep.subr.mxu0 0.0
    %634 = vmatpush2.msra.mxu0 0.0
    %635 = vmatprep.subr.mxu0 0.0
    %636 = vmatpush2.msra.mxu0 0.0
    %637 = vmatprep.subr.mxu0 0.0
    %638 = vmatpush2.msra.mxu0 0.0
    %639 = vmatprep.subr.mxu0 0.0
    %640 = vmatpush2.msra.mxu0 0.0
    %641 = vmatprep.subr.mxu0 0.0
    %642 = vmatpush2.msra.mxu0 0.0
    %643 = vmatprep.subr.mxu0 0.0
    %644 = vmatpush2.msra.mxu0 0.0
    %645 = vmatprep.subr.mxu0 0.0
    %646 = vmatpush2.msra.mxu0 0.0
    %647 = vmatprep.subr.mxu0 0.0
    %648 = vmatpush2.msra.mxu0 0.0
    %649 = vmatprep.subr.mxu0 0.0
    %650 = vmatpush2.msra.mxu0 0.0
    %651 = vmatprep.subr.mxu0 0.0
    %652 = vmatpush2.msra.mxu0 0.0
    %653 = vmatprep.subr.mxu0 0.0
    %654 = vmatpush2.msra.mxu0 0.0
    %655 = vmatprep.subr.mxu0 0.0
    %656 = vmatpush2.msra.mxu0 0.0
    %657 = vmatprep.subr.mxu0 0.0
    %658 = vmatpush2.msra.mxu0 0.0
    %659 = vmatprep.subr.mxu0 0.0
    %660 = vmatpush2.msra.mxu0 0.0
    %661 = vmatprep.subr.mxu0 0.0
    %662 = vmatpush2.msra.mxu0 0.0
    %663 = vmatprep.mubr.f32.mxu0 0.0
    %v664 = vand.u32 %v305, 4294901760
    %v665 = vsub.f32 %v305, %v664
    %666 = vmatmul.mubr.f32.gmra.mxu0 %v665
    %v667 = vpop.f32.mrf.mxu0
    %v668 = vadd.f32 %v559, %v667
    %v669 = vpop.f32.mrf.mxu0
    %v670 = vadd.f32 %v561, %v669
    %671 = vdwg.mxu0
    %672 = vmatprep.subr.mxu0 0.0
    %673 = vmatpush1.msra.mxu0 0.0
    %674 = vmatprep.subr.mxu0 0.0
    %675 = vmatpush1.msra.mxu0 0.0
    %676 = vmatprep.subr.mxu0 0.0
    %677 = vmatpush1.msra.mxu0 0.0
    %678 = vmatprep.subr.mxu0 0.0
    %679 = vmatpush1.msra.mxu0 0.0
    %680 = vmatprep.subr.mxu0 0.0
    %681 = vmatpush1.msra.mxu0 0.0
    %682 = vmatprep.subr.mxu0 0.0
    %683 = vmatpush1.msra.mxu0 0.0
    %684 = vmatprep.subr.mxu0 0.0
    %685 = vmatpush1.msra.mxu0 0.0
    %v686 = vand.u32 %v295, 4294901760
    %687 = vmatprep.subr.mxu0 %v686
    %v688 = vand.u32 %v294, 4294901760
    %689 = vmatpush1.msra.mxu0 %v688
    %v690 = vand.u32 %v291, 4294901760
    %691 = vmatprep.subr.mxu0 %v690
    %v692 = vand.u32 %v290, 4294901760
    %693 = vmatpush1.msra.mxu0 %v692
    %v694 = vand.u32 %v287, 4294901760
    %695 = vmatprep.subr.mxu0 %v694
    %v696 = vand.u32 %v286, 4294901760
    %697 = vmatpush1.msra.mxu0 %v696
    %v698 = vand.u32 %v283, 4294901760
    %699 = vmatprep.subr.mxu0 %v698
    %v700 = vand.u32 %v282, 4294901760
    %701 = vmatpush1.msra.mxu0 %v700
    %v702 = vand.u32 %v279, 4294901760
    %703 = vmatprep.subr.mxu0 %v702
    %v704 = vand.u32 %v278, 4294901760
    %705 = vmatpush1.msra.mxu0 %v704
    %v706 = vand.u32 %v275, 4294901760
    %707 = vmatprep.subr.mxu0 %v706
    %v708 = vand.u32 %v274, 4294901760
    %709 = vmatpush1.msra.mxu0 %v708
    %v710 = vand.u32 %v271, 4294901760
    %711 = vmatprep.subr.mxu0 %v710
    %v712 = vand.u32 %v270, 4294901760
    %713 = vmatpush1.msra.mxu0 %v712
    %v714 = vand.u32 %v267, 4294901760
    %715 = vmatprep.subr.mxu0 %v714
    %v716 = vand.u32 %v266, 4294901760
    %717 = vmatpush1.msra.mxu0 %v716
    %v718 = vand.u32 %v263, 4294901760
    %719 = vmatprep.subr.mxu0 %v718
    %v720 = vand.u32 %v262, 4294901760
    %721 = vmatpush1.msra.mxu0 %v720
    %722 = vmatprep.subr.mxu0 0.0
    %723 = vmatpush2.msra.mxu0 0.0
    %724 = vmatprep.subr.mxu0 0.0
    %725 = vmatpush2.msra.mxu0 0.0
    %726 = vmatprep.subr.mxu0 0.0
    %727 = vmatpush2.msra.mxu0 0.0
    %728 = vmatprep.subr.mxu0 0.0
    %729 = vmatpush2.msra.mxu0 0.0
    %730 = vmatprep.subr.mxu0 0.0
    %731 = vmatpush2.msra.mxu0 0.0
    %732 = vmatprep.subr.mxu0 0.0
    %733 = vmatpush2.msra.mxu0 0.0
    %734 = vmatprep.subr.mxu0 0.0
    %735 = vmatpush2.msra.mxu0 0.0
    %736 = vmatprep.subr.mxu0 0.0
    %737 = vmatpush2.msra.mxu0 0.0
    %738 = vmatprep.subr.mxu0 0.0
    %739 = vmatpush2.msra.mxu0 0.0
    %740 = vmatprep.subr.mxu0 0.0
    %741 = vmatpush2.msra.mxu0 0.0
    %742 = vmatprep.subr.mxu0 0.0
    %743 = vmatpush2.msra.mxu0 0.0
    %744 = vmatprep.subr.mxu0 0.0
    %745 = vmatpush2.msra.mxu0 0.0
    %746 = vmatprep.subr.mxu0 0.0
    %747 = vmatpush2.msra.mxu0 0.0
    %748 = vmatprep.subr.mxu0 0.0
    %749 = vmatpush2.msra.mxu0 0.0
    %750 = vmatprep.subr.mxu0 0.0
    %751 = vmatpush2.msra.mxu0 0.0
    %752 = vmatprep.subr.mxu0 0.0
    %753 = vmatpush2.msra.mxu0 0.0
    %754 = vmatprep.mubr.f32.mxu0 0.0
    %v755 = vand.u32 %v305, 4294901760
    %v756 = vsub.f32 %v305, %v755
    %v757 = vand.u32 %v756, 4294901760
    %758 = vmatmul.mubr.f32.gmra.mxu0 %v757
    %v759 = vpop.f32.mrf.mxu0
    %v760 = vadd.f32 %v668, %v759
    %v761 = vpop.f32.mrf.mxu0
    %v762 = vadd.f32 %v670, %v761
    %763 = vdwg.mxu0
    %764 = vmatprep.subr.mxu0 0.0
    %765 = vmatpush1.msra.mxu0 0.0
    %766 = vmatprep.subr.mxu0 0.0
    %767 = vmatpush1.msra.mxu0 0.0
    %768 = vmatprep.subr.mxu0 0.0
    %769 = vmatpush1.msra.mxu0 0.0
    %770 = vmatprep.subr.mxu0 0.0
    %771 = vmatpush1.msra.mxu0 0.0
    %772 = vmatprep.subr.mxu0 0.0
    %773 = vmatpush1.msra.mxu0 0.0
    %774 = vmatprep.subr.mxu0 0.0
    %775 = vmatpush1.msra.mxu0 0.0
    %776 = vmatprep.subr.mxu0 0.0
    %777 = vmatpush1.msra.mxu0 0.0
    %v778 = vand.u32 %v295, 4294901760
    %v779 = vsub.f32 %v295, %v778
    %v780 = vand.u32 %v779, 4294901760
    %781 = vmatprep.subr.mxu0 %v780
    %v782 = vand.u32 %v294, 4294901760
    %v783 = vsub.f32 %v294, %v782
    %v784 = vand.u32 %v783, 4294901760
    %785 = vmatpush1.msra.mxu0 %v784
    %v786 = vand.u32 %v291, 4294901760
    %v787 = vsub.f32 %v291, %v786
    %v788 = vand.u32 %v787, 4294901760
    %789 = vmatprep.subr.mxu0 %v788
    %v790 = vand.u32 %v290, 4294901760
    %v791 = vsub.f32 %v290, %v790
    %v792 = vand.u32 %v791, 4294901760
    %793 = vmatpush1.msra.mxu0 %v792
    %v794 = vand.u32 %v287, 4294901760
    %v795 = vsub.f32 %v287, %v794
    %v796 = vand.u32 %v795, 4294901760
    %797 = vmatprep.subr.mxu0 %v796
    %v798 = vand.u32 %v286, 4294901760
    %v799 = vsub.f32 %v286, %v798
    %v800 = vand.u32 %v799, 4294901760
    %801 = vmatpush1.msra.mxu0 %v800
    %v802 = vand.u32 %v283, 4294901760
    %v803 = vsub.f32 %v283, %v802
    %v804 = vand.u32 %v803, 4294901760
    %805 = vmatprep.subr.mxu0 %v804
    %v806 = vand.u32 %v282, 4294901760
    %v807 = vsub.f32 %v282, %v806
    %v808 = vand.u32 %v807, 4294901760
    %809 = vmatpush1.msra.mxu0 %v808
    %v810 = vand.u32 %v279, 4294901760
    %v811 = vsub.f32 %v279, %v810
    %v812 = vand.u32 %v811, 4294901760
    %813 = vmatprep.subr.mxu0 %v812
    %v814 = vand.u32 %v278, 4294901760
    %v815 = vsub.f32 %v278, %v814
    %v816 = vand.u32 %v815, 4294901760
    %817 = vmatpush1.msra.mxu0 %v816
    %v818 = vand.u32 %v275, 4294901760
    %v819 = vsub.f32 %v275, %v818
    %v820 = vand.u32 %v819, 4294901760
    %821 = vmatprep.subr.mxu0 %v820
    %v822 = vand.u32 %v274, 4294901760
    %v823 = vsub.f32 %v274, %v822
    %v824 = vand.u32 %v823, 4294901760
    %825 = vmatpush1.msra.mxu0 %v824
    %v826 = vand.u32 %v271, 4294901760
    %v827 = vsub.f32 %v271, %v826
    %v828 = vand.u32 %v827, 4294901760
    %829 = vmatprep.subr.mxu0 %v828
    %v830 = vand.u32 %v270, 4294901760
    %v831 = vsub.f32 %v270, %v830
    %v832 = vand.u32 %v831, 4294901760
    %833 = vmatpush1.msra.mxu0 %v832
    %v834 = vand.u32 %v267, 4294901760
    %v835 = vsub.f32 %v267, %v834
    %v836 = vand.u32 %v835, 4294901760
    %837 = vmatprep.subr.mxu0 %v836
    %v838 = vand.u32 %v266, 4294901760
    %v839 = vsub.f32 %v266, %v838
    %v840 = vand.u32 %v839, 4294901760
    %841 = vmatpush1.msra.mxu0 %v840
    %v842 = vand.u32 %v263, 4294901760
    %v843 = vsub.f32 %v263, %v842
    %v844 = vand.u32 %v843, 4294901760
    %845 = vmatprep.subr.mxu0 %v844
    %v846 = vand.u32 %v262, 4294901760
    %v847 = vsub.f32 %v262, %v846
    %v848 = vand.u32 %v847, 4294901760
    %849 = vmatpush1.msra.mxu0 %v848
    %850 = vmatprep.subr.mxu0 0.0
    %851 = vmatpush2.msra.mxu0 0.0
    %852 = vmatprep.subr.mxu0 0.0
    %853 = vmatpush2.msra.mxu0 0.0
    %854 = vmatprep.subr.mxu0 0.0
    %855 = vmatpush2.msra.mxu0 0.0
    %856 = vmatprep.subr.mxu0 0.0
    %857 = vmatpush2.msra.mxu0 0.0
    %858 = vmatprep.subr.mxu0 0.0
    %859 = vmatpush2.msra.mxu0 0.0
    %860 = vmatprep.subr.mxu0 0.0
    %861 = vmatpush2.msra.mxu0 0.0
    %862 = vmatprep.subr.mxu0 0.0
    %863 = vmatpush2.msra.mxu0 0.0
    %864 = vmatprep.subr.mxu0 0.0
    %865 = vmatpush2.msra.mxu0 0.0
    %866 = vmatprep.subr.mxu0 0.0
    %867 = vmatpush2.msra.mxu0 0.0
    %868 = vmatprep.subr.mxu0 0.0
    %869 = vmatpush2.msra.mxu0 0.0
    %870 = vmatprep.subr.mxu0 0.0
    %871 = vmatpush2.msra.mxu0 0.0
    %872 = vmatprep.subr.mxu0 0.0
    %873 = vmatpush2.msra.mxu0 0.0
    %874 = vmatprep.subr.mxu0 0.0
    %875 = vmatpush2.msra.mxu0 0.0
    %876 = vmatprep.subr.mxu0 0.0
    %877 = vmatpush2.msra.mxu0 0.0
    %878 = vmatprep.subr.mxu0 0.0
    %879 = vmatpush2.msra.mxu0 0.0
    %880 = vmatprep.subr.mxu0 0.0
    %881 = vmatpush2.msra.mxu0 0.0
    %882 = vmatprep.mubr.f32.mxu0 0.0
    %v883 = vand.u32 %v305, 4294901760
    %884 = vmatmul.mubr.f32.gmra.mxu0 %v883
    %v885 = vpop.f32.mrf.mxu0
    %v886 = vadd.f32 %v760, %v885
    %v887 = vpop.f32.mrf.mxu0
    %v888 = vadd.f32 %v762, %v887
    %889 = vdwg.mxu0
    %890 = vmatprep.subr.mxu0 0.0
    %891 = vmatpush1.msra.mxu0 0.0
    %892 = vmatprep.subr.mxu0 0.0
    %893 = vmatpush1.msra.mxu0 0.0
    %894 = vmatprep.subr.mxu0 0.0
    %895 = vmatpush1.msra.mxu0 0.0
    %896 = vmatprep.subr.mxu0 0.0
    %897 = vmatpush1.msra.mxu0 0.0
    %898 = vmatprep.subr.mxu0 0.0
    %899 = vmatpush1.msra.mxu0 0.0
    %900 = vmatprep.subr.mxu0 0.0
    %901 = vmatpush1.msra.mxu0 0.0
    %902 = vmatprep.subr.mxu0 0.0
    %903 = vmatpush1.msra.mxu0 0.0
    %v904 = vand.u32 %v295, 4294901760
    %905 = vmatprep.subr.mxu0 %v904
    %v906 = vand.u32 %v294, 4294901760
    %907 = vmatpush1.msra.mxu0 %v906
    %v908 = vand.u32 %v291, 4294901760
    %909 = vmatprep.subr.mxu0 %v908
    %v910 = vand.u32 %v290, 4294901760
    %911 = vmatpush1.msra.mxu0 %v910
    %v912 = vand.u32 %v287, 4294901760
    %913 = vmatprep.subr.mxu0 %v912
    %v914 = vand.u32 %v286, 4294901760
    %915 = vmatpush1.msra.mxu0 %v914
    %v916 = vand.u32 %v283, 4294901760
    %917 = vmatprep.subr.mxu0 %v916
    %v918 = vand.u32 %v282, 4294901760
    %919 = vmatpush1.msra.mxu0 %v918
    %v920 = vand.u32 %v279, 4294901760
    %921 = vmatprep.subr.mxu0 %v920
    %v922 = vand.u32 %v278, 4294901760
    %923 = vmatpush1.msra.mxu0 %v922
    %v924 = vand.u32 %v275, 4294901760
    %925 = vmatprep.subr.mxu0 %v924
    %v926 = vand.u32 %v274, 4294901760
    %927 = vmatpush1.msra.mxu0 %v926
    %v928 = vand.u32 %v271, 4294901760
    %929 = vmatprep.subr.mxu0 %v928
    %v930 = vand.u32 %v270, 4294901760
    %931 = vmatpush1.msra.mxu0 %v930
    %v932 = vand.u32 %v267, 4294901760
    %933 = vmatprep.subr.mxu0 %v932
    %v934 = vand.u32 %v266, 4294901760
    %935 = vmatpush1.msra.mxu0 %v934
    %v936 = vand.u32 %v263, 4294901760
    %937 = vmatprep.subr.mxu0 %v936
    %v938 = vand.u32 %v262, 4294901760
    %939 = vmatpush1.msra.mxu0 %v938
    %940 = vmatprep.subr.mxu0 0.0
    %941 = vmatpush2.msra.mxu0 0.0
    %942 = vmatprep.subr.mxu0 0.0
    %943 = vmatpush2.msra.mxu0 0.0
    %944 = vmatprep.subr.mxu0 0.0
    %945 = vmatpush2.msra.mxu0 0.0
    %946 = vmatprep.subr.mxu0 0.0
    %947 = vmatpush2.msra.mxu0 0.0
    %948 = vmatprep.subr.mxu0 0.0
    %949 = vmatpush2.msra.mxu0 0.0
    %950 = vmatprep.subr.mxu0 0.0
    %951 = vmatpush2.msra.mxu0 0.0
    %952 = vmatprep.subr.mxu0 0.0
    %953 = vmatpush2.msra.mxu0 0.0
    %954 = vmatprep.subr.mxu0 0.0
    %955 = vmatpush2.msra.mxu0 0.0
    %956 = vmatprep.subr.mxu0 0.0
    %957 = vmatpush2.msra.mxu0 0.0
    %958 = vmatprep.subr.mxu0 0.0
    %959 = vmatpush2.msra.mxu0 0.0
    %960 = vmatprep.subr.mxu0 0.0
    %961 = vmatpush2.msra.mxu0 0.0
    %962 = vmatprep.subr.mxu0 0.0
    %963 = vmatpush2.msra.mxu0 0.0
    %964 = vmatprep.subr.mxu0 0.0
    %965 = vmatpush2.msra.mxu0 0.0
    %966 = vmatprep.subr.mxu0 0.0
    %967 = vmatpush2.msra.mxu0 0.0
    %968 = vmatprep.subr.mxu0 0.0
    %969 = vmatpush2.msra.mxu0 0.0
    %970 = vmatprep.subr.mxu0 0.0
    %971 = vmatpush2.msra.mxu0 0.0
    %972 = vmatprep.mubr.f32.mxu0 0.0
    %v973 = vand.u32 %v305, 4294901760
    %974 = vmatmul.mubr.f32.gmra.mxu0 %v973
    %v975 = vpop.f32.mrf.mxu0
    %v976 = vadd.f32 %v886, %v975
    %v977 = vpop.f32.mrf.mxu0
    %v978 = vadd.f32 %v888, %v977
    %979 = vdwg.mxu0
    %980 = vmatprep.subr.mxu0 0.0
    %981 = vmatpush1.msra.mxu0 0.0
    %982 = vmatprep.subr.mxu0 0.0
    %983 = vmatpush1.msra.mxu0 0.0
    %984 = vmatprep.subr.mxu0 0.0
    %985 = vmatpush1.msra.mxu0 0.0
    %986 = vmatprep.subr.mxu0 0.0
    %987 = vmatpush1.msra.mxu0 0.0
    %988 = vmatprep.subr.mxu0 0.0
    %989 = vmatpush1.msra.mxu0 0.0
    %990 = vmatprep.subr.mxu0 0.0
    %991 = vmatpush1.msra.mxu0 0.0
    %992 = vmatprep.subr.mxu0 0.0
    %993 = vmatpush1.msra.mxu0 0.0
    %v994 = vand.u32 %v297, 4294901760
    %995 = vmatprep.subr.mxu0 %v994
    %v996 = vand.u32 %v296, 4294901760
    %997 = vmatpush1.msra.mxu0 %v996
    %v998 = vand.u32 %v293, 4294901760
    %999 = vmatprep.subr.mxu0 %v998
    %v1000 = vand.u32 %v292, 4294901760
    %1001 = vmatpush1.msra.mxu0 %v1000
    %v1002 = vand.u32 %v289, 4294901760
    %1003 = vmatprep.subr.mxu0 %v1002
    %v1004 = vand.u32 %v288, 4294901760
    %1005 = vmatpush1.msra.mxu0 %v1004
    %v1006 = vand.u32 %v285, 4294901760
    %1007 = vmatprep.subr.mxu0 %v1006
    %v1008 = vand.u32 %v284, 4294901760
    %1009 = vmatpush1.msra.mxu0 %v1008
    %v1010 = vand.u32 %v281, 4294901760
    %1011 = vmatprep.subr.mxu0 %v1010
    %v1012 = vand.u32 %v280, 4294901760
    %1013 = vmatpush1.msra.mxu0 %v1012
    %v1014 = vand.u32 %v277, 4294901760
    %1015 = vmatprep.subr.mxu0 %v1014
    %v1016 = vand.u32 %v276, 4294901760
    %1017 = vmatpush1.msra.mxu0 %v1016
    %v1018 = vand.u32 %v273, 4294901760
    %1019 = vmatprep.subr.mxu0 %v1018
    %v1020 = vand.u32 %v272, 4294901760
    %1021 = vmatpush1.msra.mxu0 %v1020
    %v1022 = vand.u32 %v269, 4294901760
    %1023 = vmatprep.subr.mxu0 %v1022
    %v1024 = vand.u32 %v268, 4294901760
    %1025 = vmatpush1.msra.mxu0 %v1024
    %v1026 = vand.u32 %v265, 4294901760
    %1027 = vmatprep.subr.mxu0 %v1026
    %v1028 = vand.u32 %v264, 4294901760
    %1029 = vmatpush1.msra.mxu0 %v1028
    %1030 = vmatprep.subr.mxu0 0.0
    %1031 = vmatpush2.msra.mxu0 0.0
    %1032 = vmatprep.subr.mxu0 0.0
    %1033 = vmatpush2.msra.mxu0 0.0
    %1034 = vmatprep.subr.mxu0 0.0
    %1035 = vmatpush2.msra.mxu0 0.0
    %1036 = vmatprep.subr.mxu0 0.0
    %1037 = vmatpush2.msra.mxu0 0.0
    %1038 = vmatprep.subr.mxu0 0.0
    %1039 = vmatpush2.msra.mxu0 0.0
    %1040 = vmatprep.subr.mxu0 0.0
    %1041 = vmatpush2.msra.mxu0 0.0
    %1042 = vmatprep.subr.mxu0 0.0
    %1043 = vmatpush2.msra.mxu0 0.0
    %1044 = vmatprep.subr.mxu0 0.0
    %1045 = vmatpush2.msra.mxu0 0.0
    %1046 = vmatprep.subr.mxu0 0.0
    %1047 = vmatpush2.msra.mxu0 0.0
    %1048 = vmatprep.subr.mxu0 0.0
    %1049 = vmatpush2.msra.mxu0 0.0
    %1050 = vmatprep.subr.mxu0 0.0
    %1051 = vmatpush2.msra.mxu0 0.0
    %1052 = vmatprep.subr.mxu0 0.0
    %1053 = vmatpush2.msra.mxu0 0.0
    %1054 = vmatprep.subr.mxu0 0.0
    %1055 = vmatpush2.msra.mxu0 0.0
    %1056 = vmatprep.subr.mxu0 0.0
    %1057 = vmatpush2.msra.mxu0 0.0
    %1058 = vmatprep.subr.mxu0 0.0
    %1059 = vmatpush2.msra.mxu0 0.0
    %1060 = vmatprep.subr.mxu0 0.0
    %1061 = vmatpush2.msra.mxu0 0.0
    %1062 = vmatprep.mubr.f32.mxu0 0.0
    %v1063 = vand.u32 %v305, 4294901760
    %v1064 = vsub.f32 %v305, %v1063
    %v1065 = vand.u32 %v1064, 4294901760
    %v1066 = vsub.f32 %v1064, %v1065
    %v1067 = vand.u32 %v1066, 4294901760
    %1068 = vmatmul.mubr.f32.gmra.mxu0 %v1067
    %v1069 = vpop.f32.mrf.mxu0
    %v1070 = vadd.f32 %v301, %v1069
    %v1071 = vpop.f32.mrf.mxu0
    %v1072 = vadd.f32 %v301, %v1071
    %1073 = vdwg.mxu0
    %1074 = vmatprep.subr.mxu0 0.0
    %1075 = vmatpush1.msra.mxu0 0.0
    %1076 = vmatprep.subr.mxu0 0.0
    %1077 = vmatpush1.msra.mxu0 0.0
    %1078 = vmatprep.subr.mxu0 0.0
    %1079 = vmatpush1.msra.mxu0 0.0
    %1080 = vmatprep.subr.mxu0 0.0
    %1081 = vmatpush1.msra.mxu0 0.0
    %1082 = vmatprep.subr.mxu0 0.0
    %1083 = vmatpush1.msra.mxu0 0.0
    %1084 = vmatprep.subr.mxu0 0.0
    %1085 = vmatpush1.msra.mxu0 0.0
    %1086 = vmatprep.subr.mxu0 0.0
    %1087 = vmatpush1.msra.mxu0 0.0
    %v1088 = vand.u32 %v297, 4294901760
    %v1089 = vsub.f32 %v297, %v1088
    %v1090 = vand.u32 %v1089, 4294901760
    %v1091 = vsub.f32 %v1089, %v1090
    %v1092 = vand.u32 %v1091, 4294901760
    %1093 = vmatprep.subr.mxu0 %v1092
    %v1094 = vand.u32 %v296, 4294901760
    %v1095 = vsub.f32 %v296, %v1094
    %v1096 = vand.u32 %v1095, 4294901760
    %v1097 = vsub.f32 %v1095, %v1096
    %v1098 = vand.u32 %v1097, 4294901760
    %1099 = vmatpush1.msra.mxu0 %v1098
    %v1100 = vand.u32 %v293, 4294901760
    %v1101 = vsub.f32 %v293, %v1100
    %v1102 = vand.u32 %v1101, 4294901760
    %v1103 = vsub.f32 %v1101, %v1102
    %v1104 = vand.u32 %v1103, 4294901760
    %1105 = vmatprep.subr.mxu0 %v1104
    %v1106 = vand.u32 %v292, 4294901760
    %v1107 = vsub.f32 %v292, %v1106
    %v1108 = vand.u32 %v1107, 4294901760
    %v1109 = vsub.f32 %v1107, %v1108
    %v1110 = vand.u32 %v1109, 4294901760
    %1111 = vmatpush1.msra.mxu0 %v1110
    %v1112 = vand.u32 %v289, 4294901760
    %v1113 = vsub.f32 %v289, %v1112
    %v1114 = vand.u32 %v1113, 4294901760
    %v1115 = vsub.f32 %v1113, %v1114
    %v1116 = vand.u32 %v1115, 4294901760
    %1117 = vmatprep.subr.mxu0 %v1116
    %v1118 = vand.u32 %v288, 4294901760
    %v1119 = vsub.f32 %v288, %v1118
    %v1120 = vand.u32 %v1119, 4294901760
    %v1121 = vsub.f32 %v1119, %v1120
    %v1122 = vand.u32 %v1121, 4294901760
    %1123 = vmatpush1.msra.mxu0 %v1122
    %v1124 = vand.u32 %v285, 4294901760
    %v1125 = vsub.f32 %v285, %v1124
    %v1126 = vand.u32 %v1125, 4294901760
    %v1127 = vsub.f32 %v1125, %v1126
    %v1128 = vand.u32 %v1127, 4294901760
    %1129 = vmatprep.subr.mxu0 %v1128
    %v1130 = vand.u32 %v284, 4294901760
    %v1131 = vsub.f32 %v284, %v1130
    %v1132 = vand.u32 %v1131, 4294901760
    %v1133 = vsub.f32 %v1131, %v1132
    %v1134 = vand.u32 %v1133, 4294901760
    %1135 = vmatpush1.msra.mxu0 %v1134
    %v1136 = vand.u32 %v281, 4294901760
    %v1137 = vsub.f32 %v281, %v1136
    %v1138 = vand.u32 %v1137, 4294901760
    %v1139 = vsub.f32 %v1137, %v1138
    %v1140 = vand.u32 %v1139, 4294901760
    %1141 = vmatprep.subr.mxu0 %v1140
    %v1142 = vand.u32 %v280, 4294901760
    %v1143 = vsub.f32 %v280, %v1142
    %v1144 = vand.u32 %v1143, 4294901760
    %v1145 = vsub.f32 %v1143, %v1144
    %v1146 = vand.u32 %v1145, 4294901760
    %1147 = vmatpush1.msra.mxu0 %v1146
    %v1148 = vand.u32 %v277, 4294901760
    %v1149 = vsub.f32 %v277, %v1148
    %v1150 = vand.u32 %v1149, 4294901760
    %v1151 = vsub.f32 %v1149, %v1150
    %v1152 = vand.u32 %v1151, 4294901760
    %1153 = vmatprep.subr.mxu0 %v1152
    %v1154 = vand.u32 %v276, 4294901760
    %v1155 = vsub.f32 %v276, %v1154
    %v1156 = vand.u32 %v1155, 4294901760
    %v1157 = vsub.f32 %v1155, %v1156
    %v1158 = vand.u32 %v1157, 4294901760
    %1159 = vmatpush1.msra.mxu0 %v1158
    %v1160 = vand.u32 %v273, 4294901760
    %v1161 = vsub.f32 %v273, %v1160
    %v1162 = vand.u32 %v1161, 4294901760
    %v1163 = vsub.f32 %v1161, %v1162
    %v1164 = vand.u32 %v1163, 4294901760
    %1165 = vmatprep.subr.mxu0 %v1164
    %v1166 = vand.u32 %v272, 4294901760
    %v1167 = vsub.f32 %v272, %v1166
    %v1168 = vand.u32 %v1167, 4294901760
    %v1169 = vsub.f32 %v1167, %v1168
    %v1170 = vand.u32 %v1169, 4294901760
    %1171 = vmatpush1.msra.mxu0 %v1170
    %v1172 = vand.u32 %v269, 4294901760
    %v1173 = vsub.f32 %v269, %v1172
    %v1174 = vand.u32 %v1173, 4294901760
    %v1175 = vsub.f32 %v1173, %v1174
    %v1176 = vand.u32 %v1175, 4294901760
    %1177 = vmatprep.subr.mxu0 %v1176
    %v1178 = vand.u32 %v268, 4294901760
    %v1179 = vsub.f32 %v268, %v1178
    %v1180 = vand.u32 %v1179, 4294901760
    %v1181 = vsub.f32 %v1179, %v1180
    %v1182 = vand.u32 %v1181, 4294901760
    %1183 = vmatpush1.msra.mxu0 %v1182
    %v1184 = vand.u32 %v265, 4294901760
    %v1185 = vsub.f32 %v265, %v1184
    %v1186 = vand.u32 %v1185, 4294901760
    %v1187 = vsub.f32 %v1185, %v1186
    %v1188 = vand.u32 %v1187, 4294901760
    %1189 = vmatprep.subr.mxu0 %v1188
    %v1190 = vand.u32 %v264, 4294901760
    %v1191 = vsub.f32 %v264, %v1190
    %v1192 = vand.u32 %v1191, 4294901760
    %v1193 = vsub.f32 %v1191, %v1192
    %v1194 = vand.u32 %v1193, 4294901760
    %1195 = vmatpush1.msra.mxu0 %v1194
    %1196 = vmatprep.subr.mxu0 0.0
    %1197 = vmatpush2.msra.mxu0 0.0
    %1198 = vmatprep.subr.mxu0 0.0
    %1199 = vmatpush2.msra.mxu0 0.0
    %1200 = vmatprep.subr.mxu0 0.0
    %1201 = vmatpush2.msra.mxu0 0.0
    %1202 = vmatprep.subr.mxu0 0.0
    %1203 = vmatpush2.msra.mxu0 0.0
    %1204 = vmatprep.subr.mxu0 0.0
    %1205 = vmatpush2.msra.mxu0 0.0
    %1206 = vmatprep.subr.mxu0 0.0
    %1207 = vmatpush2.msra.mxu0 0.0
    %1208 = vmatprep.subr.mxu0 0.0
    %1209 = vmatpush2.msra.mxu0 0.0
    %1210 = vmatprep.subr.mxu0 0.0
    %1211 = vmatpush2.msra.mxu0 0.0
    %1212 = vmatprep.subr.mxu0 0.0
    %1213 = vmatpush2.msra.mxu0 0.0
    %1214 = vmatprep.subr.mxu0 0.0
    %1215 = vmatpush2.msra.mxu0 0.0
    %1216 = vmatprep.subr.mxu0 0.0
    %1217 = vmatpush2.msra.mxu0 0.0
    %1218 = vmatprep.subr.mxu0 0.0
    %1219 = vmatpush2.msra.mxu0 0.0
    %1220 = vmatprep.subr.mxu0 0.0
    %1221 = vmatpush2.msra.mxu0 0.0
    %1222 = vmatprep.subr.mxu0 0.0
    %1223 = vmatpush2.msra.mxu0 0.0
    %1224 = vmatprep.subr.mxu0 0.0
    %1225 = vmatpush2.msra.mxu0 0.0
    %1226 = vmatprep.subr.mxu0 0.0
    %1227 = vmatpush2.msra.mxu0 0.0
    %1228 = vmatprep.mubr.f32.mxu0 0.0
    %v1229 = vand.u32 %v305, 4294901760
    %1230 = vmatmul.mubr.f32.gmra.mxu0 %v1229
    %v1231 = vpop.f32.mrf.mxu0
    %v1232 = vadd.f32 %v1070, %v1231
    %v1233 = vpop.f32.mrf.mxu0
    %v1234 = vadd.f32 %v1072, %v1233
    %1235 = vdwg.mxu0
    %1236 = vmatprep.subr.mxu0 0.0
    %1237 = vmatpush1.msra.mxu0 0.0
    %1238 = vmatprep.subr.mxu0 0.0
    %1239 = vmatpush1.msra.mxu0 0.0
    %1240 = vmatprep.subr.mxu0 0.0
    %1241 = vmatpush1.msra.mxu0 0.0
    %1242 = vmatprep.subr.mxu0 0.0
    %1243 = vmatpush1.msra.mxu0 0.0
    %1244 = vmatprep.subr.mxu0 0.0
    %1245 = vmatpush1.msra.mxu0 0.0
    %1246 = vmatprep.subr.mxu0 0.0
    %1247 = vmatpush1.msra.mxu0 0.0
    %1248 = vmatprep.subr.mxu0 0.0
    %1249 = vmatpush1.msra.mxu0 0.0
    %v1250 = vand.u32 %v297, 4294901760
    %v1251 = vsub.f32 %v297, %v1250
    %1252 = vmatprep.subr.mxu0 %v1251
    %v1253 = vand.u32 %v296, 4294901760
    %v1254 = vsub.f32 %v296, %v1253
    %1255 = vmatpush1.msra.mxu0 %v1254
    %v1256 = vand.u32 %v293, 4294901760
    %v1257 = vsub.f32 %v293, %v1256
    %1258 = vmatprep.subr.mxu0 %v1257
    %v1259 = vand.u32 %v292, 4294901760
    %v1260 = vsub.f32 %v292, %v1259
    %1261 = vmatpush1.msra.mxu0 %v1260
    %v1262 = vand.u32 %v289, 4294901760
    %v1263 = vsub.f32 %v289, %v1262
    %1264 = vmatprep.subr.mxu0 %v1263
    %v1265 = vand.u32 %v288, 4294901760
    %v1266 = vsub.f32 %v288, %v1265
    %1267 = vmatpush1.msra.mxu0 %v1266
    %v1268 = vand.u32 %v285, 4294901760
    %v1269 = vsub.f32 %v285, %v1268
    %1270 = vmatprep.subr.mxu0 %v1269
    %v1271 = vand.u32 %v284, 4294901760
    %v1272 = vsub.f32 %v284, %v1271
    %1273 = vmatpush1.msra.mxu0 %v1272
    %v1274 = vand.u32 %v281, 4294901760
    %v1275 = vsub.f32 %v281, %v1274
    %1276 = vmatprep.subr.mxu0 %v1275
    %v1277 = vand.u32 %v280, 4294901760
    %v1278 = vsub.f32 %v280, %v1277
    %1279 = vmatpush1.msra.mxu0 %v1278
    %v1280 = vand.u32 %v277, 4294901760
    %v1281 = vsub.f32 %v277, %v1280
    %1282 = vmatprep.subr.mxu0 %v1281
    %v1283 = vand.u32 %v276, 4294901760
    %v1284 = vsub.f32 %v276, %v1283
    %1285 = vmatpush1.msra.mxu0 %v1284
    %v1286 = vand.u32 %v273, 4294901760
    %v1287 = vsub.f32 %v273, %v1286
    %1288 = vmatprep.subr.mxu0 %v1287
    %v1289 = vand.u32 %v272, 4294901760
    %v1290 = vsub.f32 %v272, %v1289
    %1291 = vmatpush1.msra.mxu0 %v1290
    %v1292 = vand.u32 %v269, 4294901760
    %v1293 = vsub.f32 %v269, %v1292
    %1294 = vmatprep.subr.mxu0 %v1293
    %v1295 = vand.u32 %v268, 4294901760
    %v1296 = vsub.f32 %v268, %v1295
    %1297 = vmatpush1.msra.mxu0 %v1296
    %v1298 = vand.u32 %v265, 4294901760
    %v1299 = vsub.f32 %v265, %v1298
    %1300 = vmatprep.subr.mxu0 %v1299
    %v1301 = vand.u32 %v264, 4294901760
    %v1302 = vsub.f32 %v264, %v1301
    %1303 = vmatpush1.msra.mxu0 %v1302
    %1304 = vmatprep.subr.mxu0 0.0
    %1305 = vmatpush2.msra.mxu0 0.0
    %1306 = vmatprep.subr.mxu0 0.0
    %1307 = vmatpush2.msra.mxu0 0.0
    %1308 = vmatprep.subr.mxu0 0.0
    %1309 = vmatpush2.msra.mxu0 0.0
    %1310 = vmatprep.subr.mxu0 0.0
    %1311 = vmatpush2.msra.mxu0 0.0
    %1312 = vmatprep.subr.mxu0 0.0
    %1313 = vmatpush2.msra.mxu0 0.0
    %1314 = vmatprep.subr.mxu0 0.0
    %1315 = vmatpush2.msra.mxu0 0.0
    %1316 = vmatprep.subr.mxu0 0.0
    %1317 = vmatpush2.msra.mxu0 0.0
    %1318 = vmatprep.subr.mxu0 0.0
    %1319 = vmatpush2.msra.mxu0 0.0
    %1320 = vmatprep.subr.mxu0 0.0
    %1321 = vmatpush2.msra.mxu0 0.0
    %1322 = vmatprep.subr.mxu0 0.0
    %1323 = vmatpush2.msra.mxu0 0.0
    %1324 = vmatprep.subr.mxu0 0.0
    %1325 = vmatpush2.msra.mxu0 0.0
    %1326 = vmatprep.subr.mxu0 0.0
    %1327 = vmatpush2.msra.mxu0 0.0
    %1328 = vmatprep.subr.mxu0 0.0
    %1329 = vmatpush2.msra.mxu0 0.0
    %1330 = vmatprep.subr.mxu0 0.0
    %1331 = vmatpush2.msra.mxu0 0.0
    %1332 = vmatprep.subr.mxu0 0.0
    %1333 = vmatpush2.msra.mxu0 0.0
    %1334 = vmatprep.subr.mxu0 0.0
    %1335 = vmatpush2.msra.mxu0 0.0
    %1336 = vmatprep.mubr.f32.mxu0 0.0
    %v1337 = vand.u32 %v305, 4294901760
    %v1338 = vsub.f32 %v305, %v1337
    %1339 = vmatmul.mubr.f32.gmra.mxu0 %v1338
    %v1340 = vpop.f32.mrf.mxu0
    %v1341 = vadd.f32 %v1232, %v1340
    %v1342 = vpop.f32.mrf.mxu0
    %v1343 = vadd.f32 %v1234, %v1342
    %1344 = vdwg.mxu0
    %1345 = vmatprep.subr.mxu0 0.0
    %1346 = vmatpush1.msra.mxu0 0.0
    %1347 = vmatprep.subr.mxu0 0.0
    %1348 = vmatpush1.msra.mxu0 0.0
    %1349 = vmatprep.subr.mxu0 0.0
    %1350 = vmatpush1.msra.mxu0 0.0
    %1351 = vmatprep.subr.mxu0 0.0
    %1352 = vmatpush1.msra.mxu0 0.0
    %1353 = vmatprep.subr.mxu0 0.0
    %1354 = vmatpush1.msra.mxu0 0.0
    %1355 = vmatprep.subr.mxu0 0.0
    %1356 = vmatpush1.msra.mxu0 0.0
    %1357 = vmatprep.subr.mxu0 0.0
    %1358 = vmatpush1.msra.mxu0 0.0
    %v1359 = vand.u32 %v297, 4294901760
    %1360 = vmatprep.subr.mxu0 %v1359
    %v1361 = vand.u32 %v296, 4294901760
    %1362 = vmatpush1.msra.mxu0 %v1361
    %v1363 = vand.u32 %v293, 4294901760
    %1364 = vmatprep.subr.mxu0 %v1363
    %v1365 = vand.u32 %v292, 4294901760
    %1366 = vmatpush1.msra.mxu0 %v1365
    %v1367 = vand.u32 %v289, 4294901760
    %1368 = vmatprep.subr.mxu0 %v1367
    %v1369 = vand.u32 %v288, 4294901760
    %1370 = vmatpush1.msra.mxu0 %v1369
    %v1371 = vand.u32 %v285, 4294901760
    %1372 = vmatprep.subr.mxu0 %v1371
    %v1373 = vand.u32 %v284, 4294901760
    %1374 = vmatpush1.msra.mxu0 %v1373
    %v1375 = vand.u32 %v281, 4294901760
    %1376 = vmatprep.subr.mxu0 %v1375
    %v1377 = vand.u32 %v280, 4294901760
    %1378 = vmatpush1.msra.mxu0 %v1377
    %v1379 = vand.u32 %v277, 4294901760
    %1380 = vmatprep.subr.mxu0 %v1379
    %v1381 = vand.u32 %v276, 4294901760
    %1382 = vmatpush1.msra.mxu0 %v1381
    %v1383 = vand.u32 %v273, 4294901760
    %1384 = vmatprep.subr.mxu0 %v1383
    %v1385 = vand.u32 %v272, 4294901760
    %1386 = vmatpush1.msra.mxu0 %v1385
    %v1387 = vand.u32 %v269, 4294901760
    %1388 = vmatprep.subr.mxu0 %v1387
    %v1389 = vand.u32 %v268, 4294901760
    %1390 = vmatpush1.msra.mxu0 %v1389
    %v1391 = vand.u32 %v265, 4294901760
    %1392 = vmatprep.subr.mxu0 %v1391
    %v1393 = vand.u32 %v264, 4294901760
    %1394 = vmatpush1.msra.mxu0 %v1393
    %1395 = vmatprep.subr.mxu0 0.0
    %1396 = vmatpush2.msra.mxu0 0.0
    %1397 = vmatprep.subr.mxu0 0.0
    %1398 = vmatpush2.msra.mxu0 0.0
    %1399 = vmatprep.subr.mxu0 0.0
    %1400 = vmatpush2.msra.mxu0 0.0
    %1401 = vmatprep.subr.mxu0 0.0
    %1402 = vmatpush2.msra.mxu0 0.0
    %1403 = vmatprep.subr.mxu0 0.0
    %1404 = vmatpush2.msra.mxu0 0.0
    %1405 = vmatprep.subr.mxu0 0.0
    %1406 = vmatpush2.msra.mxu0 0.0
    %1407 = vmatprep.subr.mxu0 0.0
    %1408 = vmatpush2.msra.mxu0 0.0
    %1409 = vmatprep.subr.mxu0 0.0
    %1410 = vmatpush2.msra.mxu0 0.0
    %1411 = vmatprep.subr.mxu0 0.0
    %1412 = vmatpush2.msra.mxu0 0.0
    %1413 = vmatprep.subr.mxu0 0.0
    %1414 = vmatpush2.msra.mxu0 0.0
    %1415 = vmatprep.subr.mxu0 0.0
    %1416 = vmatpush2.msra.mxu0 0.0
    %1417 = vmatprep.subr.mxu0 0.0
    %1418 = vmatpush2.msra.mxu0 0.0
    %1419 = vmatprep.subr.mxu0 0.0
    %1420 = vmatpush2.msra.mxu0 0.0
    %1421 = vmatprep.subr.mxu0 0.0
    %1422 = vmatpush2.msra.mxu0 0.0
    %1423 = vmatprep.subr.mxu0 0.0
    %1424 = vmatpush2.msra.mxu0 0.0
    %1425 = vmatprep.subr.mxu0 0.0
    %1426 = vmatpush2.msra.mxu0 0.0
    %1427 = vmatprep.mubr.f32.mxu0 0.0
    %v1428 = vand.u32 %v305, 4294901760
    %v1429 = vsub.f32 %v305, %v1428
    %v1430 = vand.u32 %v1429, 4294901760
    %1431 = vmatmul.mubr.f32.gmra.mxu0 %v1430
    %v1432 = vpop.f32.mrf.mxu0
    %v1433 = vadd.f32 %v1341, %v1432
    %v1434 = vpop.f32.mrf.mxu0
    %v1435 = vadd.f32 %v1343, %v1434
    %1436 = vdwg.mxu0
    %1437 = vmatprep.subr.mxu0 0.0
    %1438 = vmatpush1.msra.mxu0 0.0
    %1439 = vmatprep.subr.mxu0 0.0
    %1440 = vmatpush1.msra.mxu0 0.0
    %1441 = vmatprep.subr.mxu0 0.0
    %1442 = vmatpush1.msra.mxu0 0.0
    %1443 = vmatprep.subr.mxu0 0.0
    %1444 = vmatpush1.msra.mxu0 0.0
    %1445 = vmatprep.subr.mxu0 0.0
    %1446 = vmatpush1.msra.mxu0 0.0
    %1447 = vmatprep.subr.mxu0 0.0
    %1448 = vmatpush1.msra.mxu0 0.0
    %1449 = vmatprep.subr.mxu0 0.0
    %1450 = vmatpush1.msra.mxu0 0.0
    %v1451 = vand.u32 %v297, 4294901760
    %v1452 = vsub.f32 %v297, %v1451
    %v1453 = vand.u32 %v1452, 4294901760
    %1454 = vmatprep.subr.mxu0 %v1453
    %v1455 = vand.u32 %v296, 4294901760
    %v1456 = vsub.f32 %v296, %v1455
    %v1457 = vand.u32 %v1456, 4294901760
    %1458 = vmatpush1.msra.mxu0 %v1457
    %v1459 = vand.u32 %v293, 4294901760
    %v1460 = vsub.f32 %v293, %v1459
    %v1461 = vand.u32 %v1460, 4294901760
    %1462 = vmatprep.subr.mxu0 %v1461
    %v1463 = vand.u32 %v292, 4294901760
    %v1464 = vsub.f32 %v292, %v1463
    %v1465 = vand.u32 %v1464, 4294901760
    %1466 = vmatpush1.msra.mxu0 %v1465
    %v1467 = vand.u32 %v289, 4294901760
    %v1468 = vsub.f32 %v289, %v1467
    %v1469 = vand.u32 %v1468, 4294901760
    %1470 = vmatprep.subr.mxu0 %v1469
    %v1471 = vand.u32 %v288, 4294901760
    %v1472 = vsub.f32 %v288, %v1471
    %v1473 = vand.u32 %v1472, 4294901760
    %1474 = vmatpush1.msra.mxu0 %v1473
    %v1475 = vand.u32 %v285, 4294901760
    %v1476 = vsub.f32 %v285, %v1475
    %v1477 = vand.u32 %v1476, 4294901760
    %1478 = vmatprep.subr.mxu0 %v1477
    %v1479 = vand.u32 %v284, 4294901760
    %v1480 = vsub.f32 %v284, %v1479
    %v1481 = vand.u32 %v1480, 4294901760
    %1482 = vmatpush1.msra.mxu0 %v1481
    %v1483 = vand.u32 %v281, 4294901760
    %v1484 = vsub.f32 %v281, %v1483
    %v1485 = vand.u32 %v1484, 4294901760
    %1486 = vmatprep.subr.mxu0 %v1485
    %v1487 = vand.u32 %v280, 4294901760
    %v1488 = vsub.f32 %v280, %v1487
    %v1489 = vand.u32 %v1488, 4294901760
    %1490 = vmatpush1.msra.mxu0 %v1489
    %v1491 = vand.u32 %v277, 4294901760
    %v1492 = vsub.f32 %v277, %v1491
    %v1493 = vand.u32 %v1492, 4294901760
    %1494 = vmatprep.subr.mxu0 %v1493
    %v1495 = vand.u32 %v276, 4294901760
    %v1496 = vsub.f32 %v276, %v1495
    %v1497 = vand.u32 %v1496, 4294901760
    %1498 = vmatpush1.msra.mxu0 %v1497
    %v1499 = vand.u32 %v273, 4294901760
    %v1500 = vsub.f32 %v273, %v1499
    %v1501 = vand.u32 %v1500, 4294901760
    %1502 = vmatprep.subr.mxu0 %v1501
    %v1503 = vand.u32 %v272, 4294901760
    %v1504 = vsub.f32 %v272, %v1503
    %v1505 = vand.u32 %v1504, 4294901760
    %1506 = vmatpush1.msra.mxu0 %v1505
    %v1507 = vand.u32 %v269, 4294901760
    %v1508 = vsub.f32 %v269, %v1507
    %v1509 = vand.u32 %v1508, 4294901760
    %1510 = vmatprep.subr.mxu0 %v1509
    %v1511 = vand.u32 %v268, 4294901760
    %v1512 = vsub.f32 %v268, %v1511
    %v1513 = vand.u32 %v1512, 4294901760
    %1514 = vmatpush1.msra.mxu0 %v1513
    %v1515 = vand.u32 %v265, 4294901760
    %v1516 = vsub.f32 %v265, %v1515
    %v1517 = vand.u32 %v1516, 4294901760
    %1518 = vmatprep.subr.mxu0 %v1517
    %v1519 = vand.u32 %v264, 4294901760
    %v1520 = vsub.f32 %v264, %v1519
    %v1521 = vand.u32 %v1520, 4294901760
    %1522 = vmatpush1.msra.mxu0 %v1521
    %1523 = vmatprep.subr.mxu0 0.0
    %1524 = vmatpush2.msra.mxu0 0.0
    %1525 = vmatprep.subr.mxu0 0.0
    %1526 = vmatpush2.msra.mxu0 0.0
    %1527 = vmatprep.subr.mxu0 0.0
    %1528 = vmatpush2.msra.mxu0 0.0
    %1529 = vmatprep.subr.mxu0 0.0
    %1530 = vmatpush2.msra.mxu0 0.0
    %1531 = vmatprep.subr.mxu0 0.0
    %1532 = vmatpush2.msra.mxu0 0.0
    %1533 = vmatprep.subr.mxu0 0.0
    %1534 = vmatpush2.msra.mxu0 0.0
    %1535 = vmatprep.subr.mxu0 0.0
    %1536 = vmatpush2.msra.mxu0 0.0
    %1537 = vmatprep.subr.mxu0 0.0
    %1538 = vmatpush2.msra.mxu0 0.0
    %1539 = vmatprep.subr.mxu0 0.0
    %1540 = vmatpush2.msra.mxu0 0.0
    %1541 = vmatprep.subr.mxu0 0.0
    %1542 = vmatpush2.msra.mxu0 0.0
    %1543 = vmatprep.subr.mxu0 0.0
    %1544 = vmatpush2.msra.mxu0 0.0
    %1545 = vmatprep.subr.mxu0 0.0
    %1546 = vmatpush2.msra.mxu0 0.0
    %1547 = vmatprep.subr.mxu0 0.0
    %1548 = vmatpush2.msra.mxu0 0.0
    %1549 = vmatprep.subr.mxu0 0.0
    %1550 = vmatpush2.msra.mxu0 0.0
    %1551 = vmatprep.subr.mxu0 0.0
    %1552 = vmatpush2.msra.mxu0 0.0
    %1553 = vmatprep.subr.mxu0 0.0
    %1554 = vmatpush2.msra.mxu0 0.0
    %1555 = vmatprep.mubr.f32.mxu0 0.0
    %v1556 = vand.u32 %v305, 4294901760
    %1557 = vmatmul.mubr.f32.gmra.mxu0 %v1556
    %v1558 = vpop.f32.mrf.mxu0
    %v1559 = vadd.f32 %v1433, %v1558
    %v1560 = vpop.f32.mrf.mxu0
    %v1561 = vadd.f32 %v1435, %v1560
    %1562 = vdwg.mxu0
    %1563 = vmatprep.subr.mxu0 0.0
    %1564 = vmatpush1.msra.mxu0 0.0
    %1565 = vmatprep.subr.mxu0 0.0
    %1566 = vmatpush1.msra.mxu0 0.0
    %1567 = vmatprep.subr.mxu0 0.0
    %1568 = vmatpush1.msra.mxu0 0.0
    %1569 = vmatprep.subr.mxu0 0.0
    %1570 = vmatpush1.msra.mxu0 0.0
    %1571 = vmatprep.subr.mxu0 0.0
    %1572 = vmatpush1.msra.mxu0 0.0
    %1573 = vmatprep.subr.mxu0 0.0
    %1574 = vmatpush1.msra.mxu0 0.0
    %1575 = vmatprep.subr.mxu0 0.0
    %1576 = vmatpush1.msra.mxu0 0.0
    %v1577 = vand.u32 %v297, 4294901760
    %1578 = vmatprep.subr.mxu0 %v1577
    %v1579 = vand.u32 %v296, 4294901760
    %1580 = vmatpush1.msra.mxu0 %v1579
    %v1581 = vand.u32 %v293, 4294901760
    %1582 = vmatprep.subr.mxu0 %v1581
    %v1583 = vand.u32 %v292, 4294901760
    %1584 = vmatpush1.msra.mxu0 %v1583
    %v1585 = vand.u32 %v289, 4294901760
    %1586 = vmatprep.subr.mxu0 %v1585
    %v1587 = vand.u32 %v288, 4294901760
    %1588 = vmatpush1.msra.mxu0 %v1587
    %v1589 = vand.u32 %v285, 4294901760
    %1590 = vmatprep.subr.mxu0 %v1589
    %v1591 = vand.u32 %v284, 4294901760
    %1592 = vmatpush1.msra.mxu0 %v1591
    %v1593 = vand.u32 %v281, 4294901760
    %1594 = vmatprep.subr.mxu0 %v1593
    %v1595 = vand.u32 %v280, 4294901760
    %1596 = vmatpush1.msra.mxu0 %v1595
    %v1597 = vand.u32 %v277, 4294901760
    %1598 = vmatprep.subr.mxu0 %v1597
    %v1599 = vand.u32 %v276, 4294901760
    %1600 = vmatpush1.msra.mxu0 %v1599
    %v1601 = vand.u32 %v273, 4294901760
    %1602 = vmatprep.subr.mxu0 %v1601
    %v1603 = vand.u32 %v272, 4294901760
    %1604 = vmatpush1.msra.mxu0 %v1603
    %v1605 = vand.u32 %v269, 4294901760
    %1606 = vmatprep.subr.mxu0 %v1605
    %v1607 = vand.u32 %v268, 4294901760
    %1608 = vmatpush1.msra.mxu0 %v1607
    %v1609 = vand.u32 %v265, 4294901760
    %1610 = vmatprep.subr.mxu0 %v1609
    %v1611 = vand.u32 %v264, 4294901760
    %1612 = vmatpush1.msra.mxu0 %v1611
    %1613 = vmatprep.subr.mxu0 0.0
    %1614 = vmatpush2.msra.mxu0 0.0
    %1615 = vmatprep.subr.mxu0 0.0
    %1616 = vmatpush2.msra.mxu0 0.0
    %1617 = vmatprep.subr.mxu0 0.0
    %1618 = vmatpush2.msra.mxu0 0.0
    %1619 = vmatprep.subr.mxu0 0.0
    %1620 = vmatpush2.msra.mxu0 0.0
    %1621 = vmatprep.subr.mxu0 0.0
    %1622 = vmatpush2.msra.mxu0 0.0
    %1623 = vmatprep.subr.mxu0 0.0
    %1624 = vmatpush2.msra.mxu0 0.0
    %1625 = vmatprep.subr.mxu0 0.0
    %1626 = vmatpush2.msra.mxu0 0.0
    %1627 = vmatprep.subr.mxu0 0.0
    %1628 = vmatpush2.msra.mxu0 0.0
    %1629 = vmatprep.subr.mxu0 0.0
    %1630 = vmatpush2.msra.mxu0 0.0
    %1631 = vmatprep.subr.mxu0 0.0
    %1632 = vmatpush2.msra.mxu0 0.0
    %1633 = vmatprep.subr.mxu0 0.0
    %1634 = vmatpush2.msra.mxu0 0.0
    %1635 = vmatprep.subr.mxu0 0.0
    %1636 = vmatpush2.msra.mxu0 0.0
    %1637 = vmatprep.subr.mxu0 0.0
    %1638 = vmatpush2.msra.mxu0 0.0
    %1639 = vmatprep.subr.mxu0 0.0
    %1640 = vmatpush2.msra.mxu0 0.0
    %1641 = vmatprep.subr.mxu0 0.0
    %1642 = vmatpush2.msra.mxu0 0.0
    %1643 = vmatprep.subr.mxu0 0.0
    %1644 = vmatpush2.msra.mxu0 0.0
    %1645 = vmatprep.mubr.f32.mxu0 0.0
    %v1646 = vand.u32 %v305, 4294901760
    %1647 = vmatmul.mubr.f32.gmra.mxu0 %v1646
    %v1648 = vpop.f32.mrf.mxu0
    %v1649 = vadd.f32 %v1559, %v1648
    %v1650 = vpop.f32.mrf.mxu0
    %v1651 = vadd.f32 %v1561, %v1650
    %1652 = vdwg.mxu0
    %v1653 = vmax.f32 %v976, 0.0
    %v1654 = vmax.f32 %v978, 0.0
    %v1655 = vmax.f32 %v1649, 0.0
    %v1656 = vmax.f32 %v1651, 0.0
    %s1657 = scalar_lea.vmem %s2, 8
    %v1658 = vld [vmem:[%s1657] sm:$0xff]
    %s1659 = scalar_lea.vmem %s3, 8
    %v1660 = vld [vmem:[%s1659] sm:$0xff]
    %1661 = vrot.lane.b32.xlu0 %v1653, 17
    %v1662 = vpop.permute.xlu0 %1661
    %1663 = vrot.lane.b32.xlu0 %v1654, 17
    %v1664 = vpop.permute.xlu0 %1663
    %1665 = vrot.lane.b32.xlu0 %v1655, 17
    %v1666 = vpop.permute.xlu0 %1665
    %1667 = vrot.lane.b32.xlu0 %v1656, 17
    %v1668 = vpop.permute.xlu0 %1667
    %v1669 = vsel %vm66, %v1666, %v1668
    %v1670 = vsel %vm66, %v1664, %v1666
    %v1671 = vsel %vm66, %v1662, %v1664
    %v1672 = vsel %vm66, %v1668, %v1662
    %v1673 = vld [vmem:[#allocation6] sm:$0xff]
    %v1674 = vld [vmem:[#allocation6 + $0x8] sm:$0xff]
    %v1675 = vld [vmem:[#allocation6 + $0x10] sm:$0xff]
    %v1676 = vld [vmem:[#allocation6 + $0x18] sm:$0xff]
    %v1677 = vmul.f32 %v1672, %v1673
    %v1678 = vmul.f32 %v1671, %v1674
    %v1679 = vmul.f32 %v1670, %v1675
    %v1680 = vmul.f32 %v1669, %v1676
    %1681 = vst [vmem:[#allocation2] sm:$0xff] %v1677
    %1682 = vst [vmem:[#allocation2 + $0x8] sm:$0xff] %v1678
    %1683 = vst [vmem:[#allocation2 + $0x10] sm:$0xff] %v1679
    %1684 = vst [vmem:[#allocation2 + $0x18] sm:$0xff] %v1680
    %1685 = vrot.lane.b32.xlu0 %v1653, 16
    %v1686 = vpop.permute.xlu0 %1685
    %1687 = vrot.lane.b32.xlu0 %v1654, 16
    %v1688 = vpop.permute.xlu0 %1687
    %1689 = vrot.lane.b32.xlu0 %v1655, 16
    %v1690 = vpop.permute.xlu0 %1689
    %1691 = vrot.lane.b32.xlu0 %v1656, 16
    %v1692 = vpop.permute.xlu0 %1691
    %v1693 = vsel %vm91, %v1690, %v1692
    %v1694 = vsel %vm91, %v1688, %v1690
    %v1695 = vsel %vm91, %v1686, %v1688
    %v1696 = vsel %vm91, %v1692, %v1686
    %v1697 = vld [vmem:[#allocation6 + $0x20] sm:$0xff]
    %v1698 = vld [vmem:[#allocation6 + $0x28] sm:$0xff]
    %v1699 = vld [vmem:[#allocation6 + $0x30] sm:$0xff]
    %v1700 = vld [vmem:[#allocation6 + $0x38] sm:$0xff]
    %v1701 = vmul.f32 %v1696, %v1697
    %v1702 = vmul.f32 %v1695, %v1698
    %v1703 = vmul.f32 %v1694, %v1699
    %v1704 = vmul.f32 %v1693, %v1700
    %1705 = vst [vmem:[#allocation2 + $0x20] sm:$0xff] %v1701
    %1706 = vst [vmem:[#allocation2 + $0x28] sm:$0xff] %v1702
    %1707 = vst [vmem:[#allocation2 + $0x30] sm:$0xff] %v1703
    %1708 = vst [vmem:[#allocation2 + $0x38] sm:$0xff] %v1704
    %1709 = vrot.lane.b32.xlu0 %v1653, 15
    %v1710 = vpop.permute.xlu0 %1709
    %1711 = vrot.lane.b32.xlu0 %v1654, 15
    %v1712 = vpop.permute.xlu0 %1711
    %1713 = vrot.lane.b32.xlu0 %v1655, 15
    %v1714 = vpop.permute.xlu0 %1713
    %1715 = vrot.lane.b32.xlu0 %v1656, 15
    %v1716 = vpop.permute.xlu0 %1715
    %v1717 = vsel %vm116, %v1714, %v1716
    %v1718 = vsel %vm116, %v1712, %v1714
    %v1719 = vsel %vm116, %v1710, %v1712
    %v1720 = vsel %vm116, %v1716, %v1710
    %v1721 = vld [vmem:[#allocation6 + $0x40] sm:$0xff]
    %v1722 = vld [vmem:[#allocation6 + $0x48] sm:$0xff]
    %v1723 = vld [vmem:[#allocation6 + $0x50] sm:$0xff]
    %v1724 = vld [vmem:[#allocation6 + $0x58] sm:$0xff]
    %v1725 = vmul.f32 %v1720, %v1721
    %v1726 = vmul.f32 %v1719, %v1722
    %v1727 = vmul.f32 %v1718, %v1723
    %v1728 = vmul.f32 %v1717, %v1724
    %1729 = vst [vmem:[#allocation2 + $0x40] sm:$0xff] %v1725
    %1730 = vst [vmem:[#allocation2 + $0x48] sm:$0xff] %v1726
    %1731 = vst [vmem:[#allocation2 + $0x50] sm:$0xff] %v1727
    %1732 = vst [vmem:[#allocation2 + $0x58] sm:$0xff] %v1728
    %1733 = vrot.lane.b32.xlu0 %v1653, 1
    %v1734 = vpop.permute.xlu0 %1733
    %1735 = vrot.lane.b32.xlu0 %v1654, 1
    %v1736 = vpop.permute.xlu0 %1735
    %1737 = vrot.lane.b32.xlu0 %v1655, 1
    %v1738 = vpop.permute.xlu0 %1737
    %1739 = vrot.lane.b32.xlu0 %v1656, 1
    %v1740 = vpop.permute.xlu0 %1739
    %v1741 = vsel %vm141, %v1738, %v1740
    %v1742 = vsel %vm141, %v1736, %v1738
    %v1743 = vsel %vm141, %v1734, %v1736
    %v1744 = vsel %vm141, %v1740, %v1734
    %v1745 = vld [vmem:[#allocation6 + $0x60] sm:$0xff]
    %v1746 = vld [vmem:[#allocation6 + $0x68] sm:$0xff]
    %v1747 = vld [vmem:[#allocation6 + $0x70] sm:$0xff]
    %v1748 = vld [vmem:[#allocation6 + $0x78] sm:$0xff]
    %v1749 = vmul.f32 %v1744, %v1745
    %v1750 = vmul.f32 %v1743, %v1746
    %v1751 = vmul.f32 %v1742, %v1747
    %v1752 = vmul.f32 %v1741, %v1748
    %1753 = vst [vmem:[#allocation2 + $0x60] sm:$0xff] %v1749
    %1754 = vst [vmem:[#allocation2 + $0x68] sm:$0xff] %v1750
    %1755 = vst [vmem:[#allocation2 + $0x70] sm:$0xff] %v1751
    %1756 = vst [vmem:[#allocation2 + $0x78] sm:$0xff] %v1752
    %1757 = vst [vmem:[#allocation2 + $0x80] sm:$0xff] %v1653
    %1758 = vst [vmem:[#allocation2 + $0x88] sm:$0xff] %v1654
    %1759 = vst [vmem:[#allocation2 + $0x90] sm:$0xff] %v1655
    %1760 = vst [vmem:[#allocation2 + $0x98] sm:$0xff] %v1656
    %1761 = vrot.lane.b32.xlu0 %v1653, 127
    %v1762 = vpop.permute.xlu0 %1761
    %1763 = vrot.lane.b32.xlu0 %v1654, 127
    %v1764 = vpop.permute.xlu0 %1763
    %1765 = vrot.lane.b32.xlu0 %v1655, 127
    %v1766 = vpop.permute.xlu0 %1765
    %1767 = vrot.lane.b32.xlu0 %v1656, 127
    %v1768 = vpop.permute.xlu0 %1767
    %v1769 = vsel %vm170, %v1766, %v1768
    %v1770 = vsel %vm170, %v1764, %v1766
    %v1771 = vsel %vm170, %v1762, %v1764
    %v1772 = vsel %vm170, %v1768, %v1762
    %v1773 = vld [vmem:[#allocation6 + $0xa0] sm:$0xff]
    %v1774 = vld [vmem:[#allocation6 + $0xa8] sm:$0xff]
    %v1775 = vld [vmem:[#allocation6 + $0xb0] sm:$0xff]
    %v1776 = vld [vmem:[#allocation6 + $0xb8] sm:$0xff]
    %v1777 = vmul.f32 %v1771, %v1773
    %v1778 = vmul.f32 %v1770, %v1774
    %v1779 = vmul.f32 %v1769, %v1775
    %v1780 = vmul.f32 %v1772, %v1776
    %1781 = vst [vmem:[#allocation2 + $0xa0] sm:$0xff] %v1777
    %1782 = vst [vmem:[#allocation2 + $0xa8] sm:$0xff] %v1778
    %1783 = vst [vmem:[#allocation2 + $0xb0] sm:$0xff] %v1779
    %1784 = vst [vmem:[#allocation2 + $0xb8] sm:$0xff] %v1780
    %1785 = vrot.lane.b32.xlu0 %v1653, 113
    %v1786 = vpop.permute.xlu0 %1785
    %1787 = vrot.lane.b32.xlu0 %v1654, 113
    %v1788 = vpop.permute.xlu0 %1787
    %1789 = vrot.lane.b32.xlu0 %v1655, 113
    %v1790 = vpop.permute.xlu0 %1789
    %1791 = vrot.lane.b32.xlu0 %v1656, 113
    %v1792 = vpop.permute.xlu0 %1791
    %v1793 = vsel %vm195, %v1790, %v1792
    %v1794 = vsel %vm195, %v1788, %v1790
    %v1795 = vsel %vm195, %v1786, %v1788
    %v1796 = vsel %vm195, %v1792, %v1786
    %v1797 = vld [vmem:[#allocation6 + $0xc0] sm:$0xff]
    %v1798 = vld [vmem:[#allocation6 + $0xc8] sm:$0xff]
    %v1799 = vld [vmem:[#allocation6 + $0xd0] sm:$0xff]
    %v1800 = vld [vmem:[#allocation6 + $0xd8] sm:$0xff]
    %v1801 = vmul.f32 %v1795, %v1797
    %v1802 = vmul.f32 %v1794, %v1798
    %v1803 = vmul.f32 %v1793, %v1799
    %v1804 = vmul.f32 %v1796, %v1800
    %1805 = vst [vmem:[#allocation2 + $0xc0] sm:$0xff] %v1801
    %1806 = vst [vmem:[#allocation2 + $0xc8] sm:$0xff] %v1802
    %1807 = vst [vmem:[#allocation2 + $0xd0] sm:$0xff] %v1803
    %1808 = vst [vmem:[#allocation2 + $0xd8] sm:$0xff] %v1804
    %1809 = vrot.lane.b32.xlu0 %v1653, 112
    %v1810 = vpop.permute.xlu0 %1809
    %1811 = vrot.lane.b32.xlu0 %v1654, 112
    %v1812 = vpop.permute.xlu0 %1811
    %1813 = vrot.lane.b32.xlu0 %v1655, 112
    %v1814 = vpop.permute.xlu0 %1813
    %1815 = vrot.lane.b32.xlu0 %v1656, 112
    %v1816 = vpop.permute.xlu0 %1815
    %v1817 = vsel %vm220, %v1814, %v1816
    %v1818 = vsel %vm220, %v1812, %v1814
    %v1819 = vsel %vm220, %v1810, %v1812
    %v1820 = vsel %vm220, %v1816, %v1810
    %v1821 = vld [vmem:[#allocation6 + $0xe0] sm:$0xff]
    %v1822 = vld [vmem:[#allocation6 + $0xe8] sm:$0xff]
    %v1823 = vld [vmem:[#allocation6 + $0xf0] sm:$0xff]
    %v1824 = vld [vmem:[#allocation6 + $0xf8] sm:$0xff]
    %v1825 = vmul.f32 %v1819, %v1821
    %v1826 = vmul.f32 %v1818, %v1822
    %v1827 = vmul.f32 %v1817, %v1823
    %v1828 = vmul.f32 %v1820, %v1824
    %1829 = vst [vmem:[#allocation2 + $0xe0] sm:$0xff] %v1825
    %1830 = vst [vmem:[#allocation2 + $0xe8] sm:$0xff] %v1826
    %1831 = vst [vmem:[#allocation2 + $0xf0] sm:$0xff] %v1827
    %1832 = vst [vmem:[#allocation2 + $0xf8] sm:$0xff] %v1828
    %1833 = vrot.lane.b32.xlu0 %v1653, 111
    %v1834 = vpop.permute.xlu0 %1833
    %1835 = vrot.lane.b32.xlu0 %v1654, 111
    %v1836 = vpop.permute.xlu0 %1835
    %1837 = vrot.lane.b32.xlu0 %v1655, 111
    %v1838 = vpop.permute.xlu0 %1837
    %1839 = vrot.lane.b32.xlu0 %v1656, 111
    %v1840 = vpop.permute.xlu0 %1839
    %v1841 = vsel %vm245, %v1838, %v1840
    %v1842 = vsel %vm245, %v1836, %v1838
    %v1843 = vsel %vm245, %v1834, %v1836
    %v1844 = vsel %vm245, %v1840, %v1834
    %v1845 = vld [vmem:[#allocation6 + $0x100] sm:$0xff]
    %v1846 = vld [vmem:[#allocation6 + $0x108] sm:$0xff]
    %v1847 = vld [vmem:[#allocation6 + $0x110] sm:$0xff]
    %v1848 = vld [vmem:[#allocation6 + $0x118] sm:$0xff]
    %v1849 = vmul.f32 %v1843, %v1845
    %v1850 = vmul.f32 %v1842, %v1846
    %v1851 = vmul.f32 %v1841, %v1847
    %v1852 = vmul.f32 %v1844, %v1848
    %1853 = vst [vmem:[#allocation2 + $0x100] sm:$0xff] %v1849
    %1854 = vst [vmem:[#allocation2 + $0x108] sm:$0xff] %v1850
    %1855 = vst [vmem:[#allocation2 + $0x110] sm:$0xff] %v1851
    %1856 = vst [vmem:[#allocation2 + $0x118] sm:$0xff] %v1852
    %v1857 = vld [vmem:[#allocation2] sm:$0xff]
    %v1858 = vld [vmem:[#allocation2 + $0x8] sm:$0xff]
    %v1859 = vld [vmem:[#allocation2 + $0x10] sm:$0xff]
    %v1860 = vld [vmem:[#allocation2 + $0x18] sm:$0xff]
    %v1861 = vld [vmem:[#allocation2 + $0x20] sm:$0xff]
    %v1862 = vld [vmem:[#allocation2 + $0x28] sm:$0xff]
    %v1863 = vld [vmem:[#allocation2 + $0x30] sm:$0xff]
    %v1864 = vld [vmem:[#allocation2 + $0x38] sm:$0xff]
    %v1865 = vld [vmem:[#allocation2 + $0x40] sm:$0xff]
    %v1866 = vld [vmem:[#allocation2 + $0x48] sm:$0xff]
    %v1867 = vld [vmem:[#allocation2 + $0x50] sm:$0xff]
    %v1868 = vld [vmem:[#allocation2 + $0x58] sm:$0xff]
    %v1869 = vld [vmem:[#allocation2 + $0x60] sm:$0xff]
    %v1870 = vld [vmem:[#allocation2 + $0x68] sm:$0xff]
    %v1871 = vld [vmem:[#allocation2 + $0x70] sm:$0xff]
    %v1872 = vld [vmem:[#allocation2 + $0x78] sm:$0xff]
    %v1873 = vld [vmem:[#allocation2 + $0x80] sm:$0xff]
    %v1874 = vld [vmem:[#allocation2 + $0x88] sm:$0xff]
    %v1875 = vld [vmem:[#allocation2 + $0x90] sm:$0xff]
    %v1876 = vld [vmem:[#allocation2 + $0x98] sm:$0xff]
    %v1877 = vld [vmem:[#allocation2 + $0xa0] sm:$0xff]
    %v1878 = vld [vmem:[#allocation2 + $0xa8] sm:$0xff]
    %v1879 = vld [vmem:[#allocation2 + $0xb0] sm:$0xff]
    %v1880 = vld [vmem:[#allocation2 + $0xb8] sm:$0xff]
    %v1881 = vld [vmem:[#allocation2 + $0xc0] sm:$0xff]
    %v1882 = vld [vmem:[#allocation2 + $0xc8] sm:$0xff]
    %v1883 = vld [vmem:[#allocation2 + $0xd0] sm:$0xff]
    %v1884 = vld [vmem:[#allocation2 + $0xd8] sm:$0xff]
    %v1885 = vld [vmem:[#allocation2 + $0xe0] sm:$0xff]
    %v1886 = vld [vmem:[#allocation2 + $0xe8] sm:$0xff]
    %v1887 = vld [vmem:[#allocation2 + $0xf0] sm:$0xff]
    %v1888 = vld [vmem:[#allocation2 + $0xf8] sm:$0xff]
    %v1889 = vld [vmem:[#allocation2 + $0x100] sm:$0xff]
    %v1890 = vld [vmem:[#allocation2 + $0x108] sm:$0xff]
    %v1891 = vld [vmem:[#allocation2 + $0x110] sm:$0xff]
    %v1892 = vld [vmem:[#allocation2 + $0x118] sm:$0xff]
    %1894 = vset.pattern.permute.xlu0 0
    %1895 = vperm.xlu0 %1894, %v1660
    %v1896 = vpop.permute.xlu0 %1895
    %v1899 = vsel %vm303, %v1658, 0
    %1901 = vmatprep.subr.mxu0 0.0
    %1902 = vmatpush1.msra.mxu0 0.0
    %1903 = vmatprep.subr.mxu0 0.0
    %1904 = vmatpush1.msra.mxu0 0.0
    %1905 = vmatprep.subr.mxu0 0.0
    %1906 = vmatpush1.msra.mxu0 0.0
    %1907 = vmatprep.subr.mxu0 0.0
    %1908 = vmatpush1.msra.mxu0 0.0
    %1909 = vmatprep.subr.mxu0 0.0
    %1910 = vmatpush1.msra.mxu0 0.0
    %1911 = vmatprep.subr.mxu0 0.0
    %1912 = vmatpush1.msra.mxu0 0.0
    %1913 = vmatprep.subr.mxu0 0.0
    %1914 = vmatpush1.msra.mxu0 0.0
    %v1915 = vand.u32 %v1890, 4294901760
    %1916 = vmatprep.subr.mxu0 %v1915
    %v1917 = vand.u32 %v1889, 4294901760
    %1918 = vmatpush1.msra.mxu0 %v1917
    %v1919 = vand.u32 %v1886, 4294901760
    %1920 = vmatprep.subr.mxu0 %v1919
    %v1921 = vand.u32 %v1885, 4294901760
    %1922 = vmatpush1.msra.mxu0 %v1921
    %v1923 = vand.u32 %v1882, 4294901760
    %1924 = vmatprep.subr.mxu0 %v1923
    %v1925 = vand.u32 %v1881, 4294901760
    %1926 = vmatpush1.msra.mxu0 %v1925
    %v1927 = vand.u32 %v1878, 4294901760
    %1928 = vmatprep.subr.mxu0 %v1927
    %v1929 = vand.u32 %v1877, 4294901760
    %1930 = vmatpush1.msra.mxu0 %v1929
    %v1931 = vand.u32 %v1874, 4294901760
    %1932 = vmatprep.subr.mxu0 %v1931
    %v1933 = vand.u32 %v1873, 4294901760
    %1934 = vmatpush1.msra.mxu0 %v1933
    %v1935 = vand.u32 %v1870, 4294901760
    %1936 = vmatprep.subr.mxu0 %v1935
    %v1937 = vand.u32 %v1869, 4294901760
    %1938 = vmatpush1.msra.mxu0 %v1937
    %v1939 = vand.u32 %v1866, 4294901760
    %1940 = vmatprep.subr.mxu0 %v1939
    %v1941 = vand.u32 %v1865, 4294901760
    %1942 = vmatpush1.msra.mxu0 %v1941
    %v1943 = vand.u32 %v1862, 4294901760
    %1944 = vmatprep.subr.mxu0 %v1943
    %v1945 = vand.u32 %v1861, 4294901760
    %1946 = vmatpush1.msra.mxu0 %v1945
    %v1947 = vand.u32 %v1858, 4294901760
    %1948 = vmatprep.subr.mxu0 %v1947
    %v1949 = vand.u32 %v1857, 4294901760
    %1950 = vmatpush1.msra.mxu0 %v1949
    %1951 = vmatprep.subr.mxu0 0.0
    %1952 = vmatpush2.msra.mxu0 0.0
    %1953 = vmatprep.subr.mxu0 0.0
    %1954 = vmatpush2.msra.mxu0 0.0
    %1955 = vmatprep.subr.mxu0 0.0
    %1956 = vmatpush2.msra.mxu0 0.0
    %1957 = vmatprep.subr.mxu0 0.0
    %1958 = vmatpush2.msra.mxu0 0.0
    %1959 = vmatprep.subr.mxu0 0.0
    %1960 = vmatpush2.msra.mxu0 0.0
    %1961 = vmatprep.subr.mxu0 0.0
    %1962 = vmatpush2.msra.mxu0 0.0
    %1963 = vmatprep.subr.mxu0 0.0
    %1964 = vmatpush2.msra.mxu0 0.0
    %1965 = vmatprep.subr.mxu0 0.0
    %1966 = vmatpush2.msra.mxu0 0.0
    %1967 = vmatprep.subr.mxu0 0.0
    %1968 = vmatpush2.msra.mxu0 0.0
    %1969 = vmatprep.subr.mxu0 0.0
    %1970 = vmatpush2.msra.mxu0 0.0
    %1971 = vmatprep.subr.mxu0 0.0
    %1972 = vmatpush2.msra.mxu0 0.0
    %1973 = vmatprep.subr.mxu0 0.0
    %1974 = vmatpush2.msra.mxu0 0.0
    %1975 = vmatprep.subr.mxu0 0.0
    %1976 = vmatpush2.msra.mxu0 0.0
    %1977 = vmatprep.subr.mxu0 0.0
    %1978 = vmatpush2.msra.mxu0 0.0
    %1979 = vmatprep.subr.mxu0 0.0
    %1980 = vmatpush2.msra.mxu0 0.0
    %1981 = vmatprep.subr.mxu0 0.0
    %1982 = vmatpush2.msra.mxu0 0.0
    %1983 = vmatprep.mubr.f32.mxu0 0.0
    %v1984 = vand.u32 %v1899, 4294901760
    %v1985 = vsub.f32 %v1899, %v1984
    %v1986 = vand.u32 %v1985, 4294901760
    %v1987 = vsub.f32 %v1985, %v1986
    %v1988 = vand.u32 %v1987, 4294901760
    %1989 = vmatmul.mubr.f32.gmra.mxu0 %v1988
    %v1990 = vpop.f32.mrf.mxu0
    %v1991 = vadd.f32 %v1896, %v1990
    %v1992 = vpop.f32.mrf.mxu0
    %v1993 = vadd.f32 %v1896, %v1992
    %1994 = vdwg.mxu0
    %1995 = vmatprep.subr.mxu0 0.0
    %1996 = vmatpush1.msra.mxu0 0.0
    %1997 = vmatprep.subr.mxu0 0.0
    %1998 = vmatpush1.msra.mxu0 0.0
    %1999 = vmatprep.subr.mxu0 0.0
    %2000 = vmatpush1.msra.mxu0 0.0
    %2001 = vmatprep.subr.mxu0 0.0
    %2002 = vmatpush1.msra.mxu0 0.0
    %2003 = vmatprep.subr.mxu0 0.0
    %2004 = vmatpush1.msra.mxu0 0.0
    %2005 = vmatprep.subr.mxu0 0.0
    %2006 = vmatpush1.msra.mxu0 0.0
    %2007 = vmatprep.subr.mxu0 0.0
    %2008 = vmatpush1.msra.mxu0 0.0
    %v2009 = vand.u32 %v1890, 4294901760
    %v2010 = vsub.f32 %v1890, %v2009
    %v2011 = vand.u32 %v2010, 4294901760
    %v2012 = vsub.f32 %v2010, %v2011
    %v2013 = vand.u32 %v2012, 4294901760
    %2014 = vmatprep.subr.mxu0 %v2013
    %v2015 = vand.u32 %v1889, 4294901760
    %v2016 = vsub.f32 %v1889, %v2015
    %v2017 = vand.u32 %v2016, 4294901760
    %v2018 = vsub.f32 %v2016, %v2017
    %v2019 = vand.u32 %v2018, 4294901760
    %2020 = vmatpush1.msra.mxu0 %v2019
    %v2021 = vand.u32 %v1886, 4294901760
    %v2022 = vsub.f32 %v1886, %v2021
    %v2023 = vand.u32 %v2022, 4294901760
    %v2024 = vsub.f32 %v2022, %v2023
    %v2025 = vand.u32 %v2024, 4294901760
    %2026 = vmatprep.subr.mxu0 %v2025
    %v2027 = vand.u32 %v1885, 4294901760
    %v2028 = vsub.f32 %v1885, %v2027
    %v2029 = vand.u32 %v2028, 4294901760
    %v2030 = vsub.f32 %v2028, %v2029
    %v2031 = vand.u32 %v2030, 4294901760
    %2032 = vmatpush1.msra.mxu0 %v2031
    %v2033 = vand.u32 %v1882, 4294901760
    %v2034 = vsub.f32 %v1882, %v2033
    %v2035 = vand.u32 %v2034, 4294901760
    %v2036 = vsub.f32 %v2034, %v2035
    %v2037 = vand.u32 %v2036, 4294901760
    %2038 = vmatprep.subr.mxu0 %v2037
    %v2039 = vand.u32 %v1881, 4294901760
    %v2040 = vsub.f32 %v1881, %v2039
    %v2041 = vand.u32 %v2040, 4294901760
    %v2042 = vsub.f32 %v2040, %v2041
    %v2043 = vand.u32 %v2042, 4294901760
    %2044 = vmatpush1.msra.mxu0 %v2043
    %v2045 = vand.u32 %v1878, 4294901760
    %v2046 = vsub.f32 %v1878, %v2045
    %v2047 = vand.u32 %v2046, 4294901760
    %v2048 = vsub.f32 %v2046, %v2047
    %v2049 = vand.u32 %v2048, 4294901760
    %2050 = vmatprep.subr.mxu0 %v2049
    %v2051 = vand.u32 %v1877, 4294901760
    %v2052 = vsub.f32 %v1877, %v2051
    %v2053 = vand.u32 %v2052, 4294901760
    %v2054 = vsub.f32 %v2052, %v2053
    %v2055 = vand.u32 %v2054, 4294901760
    %2056 = vmatpush1.msra.mxu0 %v2055
    %v2057 = vand.u32 %v1874, 4294901760
    %v2058 = vsub.f32 %v1874, %v2057
    %v2059 = vand.u32 %v2058, 4294901760
    %v2060 = vsub.f32 %v2058, %v2059
    %v2061 = vand.u32 %v2060, 4294901760
    %2062 = vmatprep.subr.mxu0 %v2061
    %v2063 = vand.u32 %v1873, 4294901760
    %v2064 = vsub.f32 %v1873, %v2063
    %v2065 = vand.u32 %v2064, 4294901760
    %v2066 = vsub.f32 %v2064, %v2065
    %v2067 = vand.u32 %v2066, 4294901760
    %2068 = vmatpush1.msra.mxu0 %v2067
    %v2069 = vand.u32 %v1870, 4294901760
    %v2070 = vsub.f32 %v1870, %v2069
    %v2071 = vand.u32 %v2070, 4294901760
    %v2072 = vsub.f32 %v2070, %v2071
    %v2073 = vand.u32 %v2072, 4294901760
    %2074 = vmatprep.subr.mxu0 %v2073
    %v2075 = vand.u32 %v1869, 4294901760
    %v2076 = vsub.f32 %v1869, %v2075
    %v2077 = vand.u32 %v2076, 4294901760
    %v2078 = vsub.f32 %v2076, %v2077
    %v2079 = vand.u32 %v2078, 4294901760
    %2080 = vmatpush1.msra.mxu0 %v2079
    %v2081 = vand.u32 %v1866, 4294901760
    %v2082 = vsub.f32 %v1866, %v2081
    %v2083 = vand.u32 %v2082, 4294901760
    %v2084 = vsub.f32 %v2082, %v2083
    %v2085 = vand.u32 %v2084, 4294901760
    %2086 = vmatprep.subr.mxu0 %v2085
    %v2087 = vand.u32 %v1865, 4294901760
    %v2088 = vsub.f32 %v1865, %v2087
    %v2089 = vand.u32 %v2088, 4294901760
    %v2090 = vsub.f32 %v2088, %v2089
    %v2091 = vand.u32 %v2090, 4294901760
    %2092 = vmatpush1.msra.mxu0 %v2091
    %v2093 = vand.u32 %v1862, 4294901760
    %v2094 = vsub.f32 %v1862, %v2093
    %v2095 = vand.u32 %v2094, 4294901760
    %v2096 = vsub.f32 %v2094, %v2095
    %v2097 = vand.u32 %v2096, 4294901760
    %2098 = vmatprep.subr.mxu0 %v2097
    %v2099 = vand.u32 %v1861, 4294901760
    %v2100 = vsub.f32 %v1861, %v2099
    %v2101 = vand.u32 %v2100, 4294901760
    %v2102 = vsub.f32 %v2100, %v2101
    %v2103 = vand.u32 %v2102, 4294901760
    %2104 = vmatpush1.msra.mxu0 %v2103
    %v2105 = vand.u32 %v1858, 4294901760
    %v2106 = vsub.f32 %v1858, %v2105
    %v2107 = vand.u32 %v2106, 4294901760
    %v2108 = vsub.f32 %v2106, %v2107
    %v2109 = vand.u32 %v2108, 4294901760
    %2110 = vmatprep.subr.mxu0 %v2109
    %v2111 = vand.u32 %v1857, 4294901760
    %v2112 = vsub.f32 %v1857, %v2111
    %v2113 = vand.u32 %v2112, 4294901760
    %v2114 = vsub.f32 %v2112, %v2113
    %v2115 = vand.u32 %v2114, 4294901760
    %2116 = vmatpush1.msra.mxu0 %v2115
    %2117 = vmatprep.subr.mxu0 0.0
    %2118 = vmatpush2.msra.mxu0 0.0
    %2119 = vmatprep.subr.mxu0 0.0
    %2120 = vmatpush2.msra.mxu0 0.0
    %2121 = vmatprep.subr.mxu0 0.0
    %2122 = vmatpush2.msra.mxu0 0.0
    %2123 = vmatprep.subr.mxu0 0.0
    %2124 = vmatpush2.msra.mxu0 0.0
    %2125 = vmatprep.subr.mxu0 0.0
    %2126 = vmatpush2.msra.mxu0 0.0
    %2127 = vmatprep.subr.mxu0 0.0
    %2128 = vmatpush2.msra.mxu0 0.0
    %2129 = vmatprep.subr.mxu0 0.0
    %2130 = vmatpush2.msra.mxu0 0.0
    %2131 = vmatprep.subr.mxu0 0.0
    %2132 = vmatpush2.msra.mxu0 0.0
    %2133 = vmatprep.subr.mxu0 0.0
    %2134 = vmatpush2.msra.mxu0 0.0
    %2135 = vmatprep.subr.mxu0 0.0
    %2136 = vmatpush2.msra.mxu0 0.0
    %2137 = vmatprep.subr.mxu0 0.0
    %2138 = vmatpush2.msra.mxu0 0.0
    %2139 = vmatprep.subr.mxu0 0.0
    %2140 = vmatpush2.msra.mxu0 0.0
    %2141 = vmatprep.subr.mxu0 0.0
    %2142 = vmatpush2.msra.mxu0 0.0
    %2143 = vmatprep.subr.mxu0 0.0
    %2144 = vmatpush2.msra.mxu0 0.0
    %2145 = vmatprep.subr.mxu0 0.0
    %2146 = vmatpush2.msra.mxu0 0.0
    %2147 = vmatprep.subr.mxu0 0.0
    %2148 = vmatpush2.msra.mxu0 0.0
    %2149 = vmatprep.mubr.f32.mxu0 0.0
    %v2150 = vand.u32 %v1899, 4294901760
    %2151 = vmatmul.mubr.f32.gmra.mxu0 %v2150
    %v2152 = vpop.f32.mrf.mxu0
    %v2153 = vadd.f32 %v1991, %v2152
    %v2154 = vpop.f32.mrf.mxu0
    %v2155 = vadd.f32 %v1993, %v2154
    %2156 = vdwg.mxu0
    %2157 = vmatprep.subr.mxu0 0.0
    %2158 = vmatpush1.msra.mxu0 0.0
    %2159 = vmatprep.subr.mxu0 0.0
    %2160 = vmatpush1.msra.mxu0 0.0
    %2161 = vmatprep.subr.mxu0 0.0
    %2162 = vmatpush1.msra.mxu0 0.0
    %2163 = vmatprep.subr.mxu0 0.0
    %2164 = vmatpush1.msra.mxu0 0.0
    %2165 = vmatprep.subr.mxu0 0.0
    %2166 = vmatpush1.msra.mxu0 0.0
    %2167 = vmatprep.subr.mxu0 0.0
    %2168 = vmatpush1.msra.mxu0 0.0
    %2169 = vmatprep.subr.mxu0 0.0
    %2170 = vmatpush1.msra.mxu0 0.0
    %v2171 = vand.u32 %v1890, 4294901760
    %v2172 = vsub.f32 %v1890, %v2171
    %2173 = vmatprep.subr.mxu0 %v2172
    %v2174 = vand.u32 %v1889, 4294901760
    %v2175 = vsub.f32 %v1889, %v2174
    %2176 = vmatpush1.msra.mxu0 %v2175
    %v2177 = vand.u32 %v1886, 4294901760
    %v2178 = vsub.f32 %v1886, %v2177
    %2179 = vmatprep.subr.mxu0 %v2178
    %v2180 = vand.u32 %v1885, 4294901760
    %v2181 = vsub.f32 %v1885, %v2180
    %2182 = vmatpush1.msra.mxu0 %v2181
    %v2183 = vand.u32 %v1882, 4294901760
    %v2184 = vsub.f32 %v1882, %v2183
    %2185 = vmatprep.subr.mxu0 %v2184
    %v2186 = vand.u32 %v1881, 4294901760
    %v2187 = vsub.f32 %v1881, %v2186
    %2188 = vmatpush1.msra.mxu0 %v2187
    %v2189 = vand.u32 %v1878, 4294901760
    %v2190 = vsub.f32 %v1878, %v2189
    %2191 = vmatprep.subr.mxu0 %v2190
    %v2192 = vand.u32 %v1877, 4294901760
    %v2193 = vsub.f32 %v1877, %v2192
    %2194 = vmatpush1.msra.mxu0 %v2193
    %v2195 = vand.u32 %v1874, 4294901760
    %v2196 = vsub.f32 %v1874, %v2195
    %2197 = vmatprep.subr.mxu0 %v2196
    %v2198 = vand.u32 %v1873, 4294901760
    %v2199 = vsub.f32 %v1873, %v2198
    %2200 = vmatpush1.msra.mxu0 %v2199
    %v2201 = vand.u32 %v1870, 4294901760
    %v2202 = vsub.f32 %v1870, %v2201
    %2203 = vmatprep.subr.mxu0 %v2202
    %v2204 = vand.u32 %v1869, 4294901760
    %v2205 = vsub.f32 %v1869, %v2204
    %2206 = vmatpush1.msra.mxu0 %v2205
    %v2207 = vand.u32 %v1866, 4294901760
    %v2208 = vsub.f32 %v1866, %v2207
    %2209 = vmatprep.subr.mxu0 %v2208
    %v2210 = vand.u32 %v1865, 4294901760
    %v2211 = vsub.f32 %v1865, %v2210
    %2212 = vmatpush1.msra.mxu0 %v2211
    %v2213 = vand.u32 %v1862, 4294901760
    %v2214 = vsub.f32 %v1862, %v2213
    %2215 = vmatprep.subr.mxu0 %v2214
    %v2216 = vand.u32 %v1861, 4294901760
    %v2217 = vsub.f32 %v1861, %v2216
    %2218 = vmatpush1.msra.mxu0 %v2217
    %v2219 = vand.u32 %v1858, 4294901760
    %v2220 = vsub.f32 %v1858, %v2219
    %2221 = vmatprep.subr.mxu0 %v2220
    %v2222 = vand.u32 %v1857, 4294901760
    %v2223 = vsub.f32 %v1857, %v2222
    %2224 = vmatpush1.msra.mxu0 %v2223
    %2225 = vmatprep.subr.mxu0 0.0
    %2226 = vmatpush2.msra.mxu0 0.0
    %2227 = vmatprep.subr.mxu0 0.0
    %2228 = vmatpush2.msra.mxu0 0.0
    %2229 = vmatprep.subr.mxu0 0.0
    %2230 = vmatpush2.msra.mxu0 0.0
    %2231 = vmatprep.subr.mxu0 0.0
    %2232 = vmatpush2.msra.mxu0 0.0
    %2233 = vmatprep.subr.mxu0 0.0
    %2234 = vmatpush2.msra.mxu0 0.0
    %2235 = vmatprep.subr.mxu0 0.0
    %2236 = vmatpush2.msra.mxu0 0.0
    %2237 = vmatprep.subr.mxu0 0.0
    %2238 = vmatpush2.msra.mxu0 0.0
    %2239 = vmatprep.subr.mxu0 0.0
    %2240 = vmatpush2.msra.mxu0 0.0
    %2241 = vmatprep.subr.mxu0 0.0
    %2242 = vmatpush2.msra.mxu0 0.0
    %2243 = vmatprep.subr.mxu0 0.0
    %2244 = vmatpush2.msra.mxu0 0.0
    %2245 = vmatprep.subr.mxu0 0.0
    %2246 = vmatpush2.msra.mxu0 0.0
    %2247 = vmatprep.subr.mxu0 0.0
    %2248 = vmatpush2.msra.mxu0 0.0
    %2249 = vmatprep.subr.mxu0 0.0
    %2250 = vmatpush2.msra.mxu0 0.0
    %2251 = vmatprep.subr.mxu0 0.0
    %2252 = vmatpush2.msra.mxu0 0.0
    %2253 = vmatprep.subr.mxu0 0.0
    %2254 = vmatpush2.msra.mxu0 0.0
    %2255 = vmatprep.subr.mxu0 0.0
    %2256 = vmatpush2.msra.mxu0 0.0
    %2257 = vmatprep.mubr.f32.mxu0 0.0
    %v2258 = vand.u32 %v1899, 4294901760
    %v2259 = vsub.f32 %v1899, %v2258
    %2260 = vmatmul.mubr.f32.gmra.mxu0 %v2259
    %v2261 = vpop.f32.mrf.mxu0
    %v2262 = vadd.f32 %v2153, %v2261
    %v2263 = vpop.f32.mrf.mxu0
    %v2264 = vadd.f32 %v2155, %v2263
    %2265 = vdwg.mxu0
    %2266 = vmatprep.subr.mxu0 0.0
    %2267 = vmatpush1.msra.mxu0 0.0
    %2268 = vmatprep.subr.mxu0 0.0
    %2269 = vmatpush1.msra.mxu0 0.0
    %2270 = vmatprep.subr.mxu0 0.0
    %2271 = vmatpush1.msra.mxu0 0.0
    %2272 = vmatprep.subr.mxu0 0.0
    %2273 = vmatpush1.msra.mxu0 0.0
    %2274 = vmatprep.subr.mxu0 0.0
    %2275 = vmatpush1.msra.mxu0 0.0
    %2276 = vmatprep.subr.mxu0 0.0
    %2277 = vmatpush1.msra.mxu0 0.0
    %2278 = vmatprep.subr.mxu0 0.0
    %2279 = vmatpush1.msra.mxu0 0.0
    %v2280 = vand.u32 %v1890, 4294901760
    %2281 = vmatprep.subr.mxu0 %v2280
    %v2282 = vand.u32 %v1889, 4294901760
    %2283 = vmatpush1.msra.mxu0 %v2282
    %v2284 = vand.u32 %v1886, 4294901760
    %2285 = vmatprep.subr.mxu0 %v2284
    %v2286 = vand.u32 %v1885, 4294901760
    %2287 = vmatpush1.msra.mxu0 %v2286
    %v2288 = vand.u32 %v1882, 4294901760
    %2289 = vmatprep.subr.mxu0 %v2288
    %v2290 = vand.u32 %v1881, 4294901760
    %2291 = vmatpush1.msra.mxu0 %v2290
    %v2292 = vand.u32 %v1878, 4294901760
    %2293 = vmatprep.subr.mxu0 %v2292
    %v2294 = vand.u32 %v1877, 4294901760
    %2295 = vmatpush1.msra.mxu0 %v2294
    %v2296 = vand.u32 %v1874, 4294901760
    %2297 = vmatprep.subr.mxu0 %v2296
    %v2298 = vand.u32 %v1873, 4294901760
    %2299 = vmatpush1.msra.mxu0 %v2298
    %v2300 = vand.u32 %v1870, 4294901760
    %2301 = vmatprep.subr.mxu0 %v2300
    %v2302 = vand.u32 %v1869, 4294901760
    %2303 = vmatpush1.msra.mxu0 %v2302
    %v2304 = vand.u32 %v1866, 4294901760
    %2305 = vmatprep.subr.mxu0 %v2304
    %v2306 = vand.u32 %v1865, 4294901760
    %2307 = vmatpush1.msra.mxu0 %v2306
    %v2308 = vand.u32 %v1862, 4294901760
    %2309 = vmatprep.subr.mxu0 %v2308
    %v2310 = vand.u32 %v1861, 4294901760
    %2311 = vmatpush1.msra.mxu0 %v2310
    %v2312 = vand.u32 %v1858, 4294901760
    %2313 = vmatprep.subr.mxu0 %v2312
    %v2314 = vand.u32 %v1857, 4294901760
    %2315 = vmatpush1.msra.mxu0 %v2314
    %2316 = vmatprep.subr.mxu0 0.0
    %2317 = vmatpush2.msra.mxu0 0.0
    %2318 = vmatprep.subr.mxu0 0.0
    %2319 = vmatpush2.msra.mxu0 0.0
    %2320 = vmatprep.subr.mxu0 0.0
    %2321 = vmatpush2.msra.mxu0 0.0
    %2322 = vmatprep.subr.mxu0 0.0
    %2323 = vmatpush2.msra.mxu0 0.0
    %2324 = vmatprep.subr.mxu0 0.0
    %2325 = vmatpush2.msra.mxu0 0.0
    %2326 = vmatprep.subr.mxu0 0.0
    %2327 = vmatpush2.msra.mxu0 0.0
    %2328 = vmatprep.subr.mxu0 0.0
    %2329 = vmatpush2.msra.mxu0 0.0
    %2330 = vmatprep.subr.mxu0 0.0
    %2331 = vmatpush2.msra.mxu0 0.0
    %2332 = vmatprep.subr.mxu0 0.0
    %2333 = vmatpush2.msra.mxu0 0.0
    %2334 = vmatprep.subr.mxu0 0.0
    %2335 = vmatpush2.msra.mxu0 0.0
    %2336 = vmatprep.subr.mxu0 0.0
    %2337 = vmatpush2.msra.mxu0 0.0
    %2338 = vmatprep.subr.mxu0 0.0
    %2339 = vmatpush2.msra.mxu0 0.0
    %2340 = vmatprep.subr.mxu0 0.0
    %2341 = vmatpush2.msra.mxu0 0.0
    %2342 = vmatprep.subr.mxu0 0.0
    %2343 = vmatpush2.msra.mxu0 0.0
    %2344 = vmatprep.subr.mxu0 0.0
    %2345 = vmatpush2.msra.mxu0 0.0
    %2346 = vmatprep.subr.mxu0 0.0
    %2347 = vmatpush2.msra.mxu0 0.0
    %2348 = vmatprep.mubr.f32.mxu0 0.0
    %v2349 = vand.u32 %v1899, 4294901760
    %v2350 = vsub.f32 %v1899, %v2349
    %v2351 = vand.u32 %v2350, 4294901760
    %2352 = vmatmul.mubr.f32.gmra.mxu0 %v2351
    %v2353 = vpop.f32.mrf.mxu0
    %v2354 = vadd.f32 %v2262, %v2353
    %v2355 = vpop.f32.mrf.mxu0
    %v2356 = vadd.f32 %v2264, %v2355
    %2357 = vdwg.mxu0
    %2358 = vmatprep.subr.mxu0 0.0
    %2359 = vmatpush1.msra.mxu0 0.0
    %2360 = vmatprep.subr.mxu0 0.0
    %2361 = vmatpush1.msra.mxu0 0.0
    %2362 = vmatprep.subr.mxu0 0.0
    %2363 = vmatpush1.msra.mxu0 0.0
    %2364 = vmatprep.subr.mxu0 0.0
    %2365 = vmatpush1.msra.mxu0 0.0
    %2366 = vmatprep.subr.mxu0 0.0
    %2367 = vmatpush1.msra.mxu0 0.0
    %2368 = vmatprep.subr.mxu0 0.0
    %2369 = vmatpush1.msra.mxu0 0.0
    %2370 = vmatprep.subr.mxu0 0.0
    %2371 = vmatpush1.msra.mxu0 0.0
    %v2372 = vand.u32 %v1890, 4294901760
    %v2373 = vsub.f32 %v1890, %v2372
    %v2374 = vand.u32 %v2373, 4294901760
    %2375 = vmatprep.subr.mxu0 %v2374
    %v2376 = vand.u32 %v1889, 4294901760
    %v2377 = vsub.f32 %v1889, %v2376
    %v2378 = vand.u32 %v2377, 4294901760
    %2379 = vmatpush1.msra.mxu0 %v2378
    %v2380 = vand.u32 %v1886, 4294901760
    %v2381 = vsub.f32 %v1886, %v2380
    %v2382 = vand.u32 %v2381, 4294901760
    %2383 = vmatprep.subr.mxu0 %v2382
    %v2384 = vand.u32 %v1885, 4294901760
    %v2385 = vsub.f32 %v1885, %v2384
    %v2386 = vand.u32 %v2385, 4294901760
    %2387 = vmatpush1.msra.mxu0 %v2386
    %v2388 = vand.u32 %v1882, 4294901760
    %v2389 = vsub.f32 %v1882, %v2388
    %v2390 = vand.u32 %v2389, 4294901760
    %2391 = vmatprep.subr.mxu0 %v2390
    %v2392 = vand.u32 %v1881, 4294901760
    %v2393 = vsub.f32 %v1881, %v2392
    %v2394 = vand.u32 %v2393, 4294901760
    %2395 = vmatpush1.msra.mxu0 %v2394
    %v2396 = vand.u32 %v1878, 4294901760
    %v2397 = vsub.f32 %v1878, %v2396
    %v2398 = vand.u32 %v2397, 4294901760
    %2399 = vmatprep.subr.mxu0 %v2398
    %v2400 = vand.u32 %v1877, 4294901760
    %v2401 = vsub.f32 %v1877, %v2400
    %v2402 = vand.u32 %v2401, 4294901760
    %2403 = vmatpush1.msra.mxu0 %v2402
    %v2404 = vand.u32 %v1874, 4294901760
    %v2405 = vsub.f32 %v1874, %v2404
    %v2406 = vand.u32 %v2405, 4294901760
    %2407 = vmatprep.subr.mxu0 %v2406
    %v2408 = vand.u32 %v1873, 4294901760
    %v2409 = vsub.f32 %v1873, %v2408
    %v2410 = vand.u32 %v2409, 4294901760
    %2411 = vmatpush1.msra.mxu0 %v2410
    %v2412 = vand.u32 %v1870, 4294901760
    %v2413 = vsub.f32 %v1870, %v2412
    %v2414 = vand.u32 %v2413, 4294901760
    %2415 = vmatprep.subr.mxu0 %v2414
    %v2416 = vand.u32 %v1869, 4294901760
    %v2417 = vsub.f32 %v1869, %v2416
    %v2418 = vand.u32 %v2417, 4294901760
    %2419 = vmatpush1.msra.mxu0 %v2418
    %v2420 = vand.u32 %v1866, 4294901760
    %v2421 = vsub.f32 %v1866, %v2420
    %v2422 = vand.u32 %v2421, 4294901760
    %2423 = vmatprep.subr.mxu0 %v2422
    %v2424 = vand.u32 %v1865, 4294901760
    %v2425 = vsub.f32 %v1865, %v2424
    %v2426 = vand.u32 %v2425, 4294901760
    %2427 = vmatpush1.msra.mxu0 %v2426
    %v2428 = vand.u32 %v1862, 4294901760
    %v2429 = vsub.f32 %v1862, %v2428
    %v2430 = vand.u32 %v2429, 4294901760
    %2431 = vmatprep.subr.mxu0 %v2430
    %v2432 = vand.u32 %v1861, 4294901760
    %v2433 = vsub.f32 %v1861, %v2432
    %v2434 = vand.u32 %v2433, 4294901760
    %2435 = vmatpush1.msra.mxu0 %v2434
    %v2436 = vand.u32 %v1858, 4294901760
    %v2437 = vsub.f32 %v1858, %v2436
    %v2438 = vand.u32 %v2437, 4294901760
    %2439 = vmatprep.subr.mxu0 %v2438
    %v2440 = vand.u32 %v1857, 4294901760
    %v2441 = vsub.f32 %v1857, %v2440
    %v2442 = vand.u32 %v2441, 4294901760
    %2443 = vmatpush1.msra.mxu0 %v2442
    %2444 = vmatprep.subr.mxu0 0.0
    %2445 = vmatpush2.msra.mxu0 0.0
    %2446 = vmatprep.subr.mxu0 0.0
    %2447 = vmatpush2.msra.mxu0 0.0
    %2448 = vmatprep.subr.mxu0 0.0
    %2449 = vmatpush2.msra.mxu0 0.0
    %2450 = vmatprep.subr.mxu0 0.0
    %2451 = vmatpush2.msra.mxu0 0.0
    %2452 = vmatprep.subr.mxu0 0.0
    %2453 = vmatpush2.msra.mxu0 0.0
    %2454 = vmatprep.subr.mxu0 0.0
    %2455 = vmatpush2.msra.mxu0 0.0
    %2456 = vmatprep.subr.mxu0 0.0
    %2457 = vmatpush2.msra.mxu0 0.0
    %2458 = vmatprep.subr.mxu0 0.0
    %2459 = vmatpush2.msra.mxu0 0.0
    %2460 = vmatprep.subr.mxu0 0.0
    %2461 = vmatpush2.msra.mxu0 0.0
    %2462 = vmatprep.subr.mxu0 0.0
    %2463 = vmatpush2.msra.mxu0 0.0
    %2464 = vmatprep.subr.mxu0 0.0
    %2465 = vmatpush2.msra.mxu0 0.0
    %2466 = vmatprep.subr.mxu0 0.0
    %2467 = vmatpush2.msra.mxu0 0.0
    %2468 = vmatprep.subr.mxu0 0.0
    %2469 = vmatpush2.msra.mxu0 0.0
    %2470 = vmatprep.subr.mxu0 0.0
    %2471 = vmatpush2.msra.mxu0 0.0
    %2472 = vmatprep.subr.mxu0 0.0
    %2473 = vmatpush2.msra.mxu0 0.0
    %2474 = vmatprep.subr.mxu0 0.0
    %2475 = vmatpush2.msra.mxu0 0.0
    %2476 = vmatprep.mubr.f32.mxu0 0.0
    %v2477 = vand.u32 %v1899, 4294901760
    %2478 = vmatmul.mubr.f32.gmra.mxu0 %v2477
    %v2479 = vpop.f32.mrf.mxu0
    %v2480 = vadd.f32 %v2354, %v2479
    %v2481 = vpop.f32.mrf.mxu0
    %v2482 = vadd.f32 %v2356, %v2481
    %2483 = vdwg.mxu0
    %2484 = vmatprep.subr.mxu0 0.0
    %2485 = vmatpush1.msra.mxu0 0.0
    %2486 = vmatprep.subr.mxu0 0.0
    %2487 = vmatpush1.msra.mxu0 0.0
    %2488 = vmatprep.subr.mxu0 0.0
    %2489 = vmatpush1.msra.mxu0 0.0
    %2490 = vmatprep.subr.mxu0 0.0
    %2491 = vmatpush1.msra.mxu0 0.0
    %2492 = vmatprep.subr.mxu0 0.0
    %2493 = vmatpush1.msra.mxu0 0.0
    %2494 = vmatprep.subr.mxu0 0.0
    %2495 = vmatpush1.msra.mxu0 0.0
    %2496 = vmatprep.subr.mxu0 0.0
    %2497 = vmatpush1.msra.mxu0 0.0
    %v2498 = vand.u32 %v1890, 4294901760
    %2499 = vmatprep.subr.mxu0 %v2498
    %v2500 = vand.u32 %v1889, 4294901760
    %2501 = vmatpush1.msra.mxu0 %v2500
    %v2502 = vand.u32 %v1886, 4294901760
    %2503 = vmatprep.subr.mxu0 %v2502
    %v2504 = vand.u32 %v1885, 4294901760
    %2505 = vmatpush1.msra.mxu0 %v2504
    %v2506 = vand.u32 %v1882, 4294901760
    %2507 = vmatprep.subr.mxu0 %v2506
    %v2508 = vand.u32 %v1881, 4294901760
    %2509 = vmatpush1.msra.mxu0 %v2508
    %v2510 = vand.u32 %v1878, 4294901760
    %2511 = vmatprep.subr.mxu0 %v2510
    %v2512 = vand.u32 %v1877, 4294901760
    %2513 = vmatpush1.msra.mxu0 %v2512
    %v2514 = vand.u32 %v1874, 4294901760
    %2515 = vmatprep.subr.mxu0 %v2514
    %v2516 = vand.u32 %v1873, 4294901760
    %2517 = vmatpush1.msra.mxu0 %v2516
    %v2518 = vand.u32 %v1870, 4294901760
    %2519 = vmatprep.subr.mxu0 %v2518
    %v2520 = vand.u32 %v1869, 4294901760
    %2521 = vmatpush1.msra.mxu0 %v2520
    %v2522 = vand.u32 %v1866, 4294901760
    %2523 = vmatprep.subr.mxu0 %v2522
    %v2524 = vand.u32 %v1865, 4294901760
    %2525 = vmatpush1.msra.mxu0 %v2524
    %v2526 = vand.u32 %v1862, 4294901760
    %2527 = vmatprep.subr.mxu0 %v2526
    %v2528 = vand.u32 %v1861, 4294901760
    %2529 = vmatpush1.msra.mxu0 %v2528
    %v2530 = vand.u32 %v1858, 4294901760
    %2531 = vmatprep.subr.mxu0 %v2530
    %v2532 = vand.u32 %v1857, 4294901760
    %2533 = vmatpush1.msra.mxu0 %v2532
    %2534 = vmatprep.subr.mxu0 0.0
    %2535 = vmatpush2.msra.mxu0 0.0
    %2536 = vmatprep.subr.mxu0 0.0
    %2537 = vmatpush2.msra.mxu0 0.0
    %2538 = vmatprep.subr.mxu0 0.0
    %2539 = vmatpush2.msra.mxu0 0.0
    %2540 = vmatprep.subr.mxu0 0.0
    %2541 = vmatpush2.msra.mxu0 0.0
    %2542 = vmatprep.subr.mxu0 0.0
    %2543 = vmatpush2.msra.mxu0 0.0
    %2544 = vmatprep.subr.mxu0 0.0
    %2545 = vmatpush2.msra.mxu0 0.0
    %2546 = vmatprep.subr.mxu0 0.0
    %2547 = vmatpush2.msra.mxu0 0.0
    %2548 = vmatprep.subr.mxu0 0.0
    %2549 = vmatpush2.msra.mxu0 0.0
    %2550 = vmatprep.subr.mxu0 0.0
    %2551 = vmatpush2.msra.mxu0 0.0
    %2552 = vmatprep.subr.mxu0 0.0
    %2553 = vmatpush2.msra.mxu0 0.0
    %2554 = vmatprep.subr.mxu0 0.0
    %2555 = vmatpush2.msra.mxu0 0.0
    %2556 = vmatprep.subr.mxu0 0.0
    %2557 = vmatpush2.msra.mxu0 0.0
    %2558 = vmatprep.subr.mxu0 0.0
    %2559 = vmatpush2.msra.mxu0 0.0
    %2560 = vmatprep.subr.mxu0 0.0
    %2561 = vmatpush2.msra.mxu0 0.0
    %2562 = vmatprep.subr.mxu0 0.0
    %2563 = vmatpush2.msra.mxu0 0.0
    %2564 = vmatprep.subr.mxu0 0.0
    %2565 = vmatpush2.msra.mxu0 0.0
    %2566 = vmatprep.mubr.f32.mxu0 0.0
    %v2567 = vand.u32 %v1899, 4294901760
    %2568 = vmatmul.mubr.f32.gmra.mxu0 %v2567
    %v2569 = vpop.f32.mrf.mxu0
    %v2570 = vadd.f32 %v2480, %v2569
    %v2571 = vpop.f32.mrf.mxu0
    %v2572 = vadd.f32 %v2482, %v2571
    %2573 = vdwg.mxu0
    %2574 = vmatprep.subr.mxu0 0.0
    %2575 = vmatpush1.msra.mxu0 0.0
    %2576 = vmatprep.subr.mxu0 0.0
    %2577 = vmatpush1.msra.mxu0 0.0
    %2578 = vmatprep.subr.mxu0 0.0
    %2579 = vmatpush1.msra.mxu0 0.0
    %2580 = vmatprep.subr.mxu0 0.0
    %2581 = vmatpush1.msra.mxu0 0.0
    %2582 = vmatprep.subr.mxu0 0.0
    %2583 = vmatpush1.msra.mxu0 0.0
    %2584 = vmatprep.subr.mxu0 0.0
    %2585 = vmatpush1.msra.mxu0 0.0
    %2586 = vmatprep.subr.mxu0 0.0
    %2587 = vmatpush1.msra.mxu0 0.0
    %v2588 = vand.u32 %v1892, 4294901760
    %2589 = vmatprep.subr.mxu0 %v2588
    %v2590 = vand.u32 %v1891, 4294901760
    %2591 = vmatpush1.msra.mxu0 %v2590
    %v2592 = vand.u32 %v1888, 4294901760
    %2593 = vmatprep.subr.mxu0 %v2592
    %v2594 = vand.u32 %v1887, 4294901760
    %2595 = vmatpush1.msra.mxu0 %v2594
    %v2596 = vand.u32 %v1884, 4294901760
    %2597 = vmatprep.subr.mxu0 %v2596
    %v2598 = vand.u32 %v1883, 4294901760
    %2599 = vmatpush1.msra.mxu0 %v2598
    %v2600 = vand.u32 %v1880, 4294901760
    %2601 = vmatprep.subr.mxu0 %v2600
    %v2602 = vand.u32 %v1879, 4294901760
    %2603 = vmatpush1.msra.mxu0 %v2602
    %v2604 = vand.u32 %v1876, 4294901760
    %2605 = vmatprep.subr.mxu0 %v2604
    %v2606 = vand.u32 %v1875, 4294901760
    %2607 = vmatpush1.msra.mxu0 %v2606
    %v2608 = vand.u32 %v1872, 4294901760
    %2609 = vmatprep.subr.mxu0 %v2608
    %v2610 = vand.u32 %v1871, 4294901760
    %2611 = vmatpush1.msra.mxu0 %v2610
    %v2612 = vand.u32 %v1868, 4294901760
    %2613 = vmatprep.subr.mxu0 %v2612
    %v2614 = vand.u32 %v1867, 4294901760
    %2615 = vmatpush1.msra.mxu0 %v2614
    %v2616 = vand.u32 %v1864, 4294901760
    %2617 = vmatprep.subr.mxu0 %v2616
    %v2618 = vand.u32 %v1863, 4294901760
    %2619 = vmatpush1.msra.mxu0 %v2618
    %v2620 = vand.u32 %v1860, 4294901760
    %2621 = vmatprep.subr.mxu0 %v2620
    %v2622 = vand.u32 %v1859, 4294901760
    %2623 = vmatpush1.msra.mxu0 %v2622
    %2624 = vmatprep.subr.mxu0 0.0
    %2625 = vmatpush2.msra.mxu0 0.0
    %2626 = vmatprep.subr.mxu0 0.0
    %2627 = vmatpush2.msra.mxu0 0.0
    %2628 = vmatprep.subr.mxu0 0.0
    %2629 = vmatpush2.msra.mxu0 0.0
    %2630 = vmatprep.subr.mxu0 0.0
    %2631 = vmatpush2.msra.mxu0 0.0
    %2632 = vmatprep.subr.mxu0 0.0
    %2633 = vmatpush2.msra.mxu0 0.0
    %2634 = vmatprep.subr.mxu0 0.0
    %2635 = vmatpush2.msra.mxu0 0.0
    %2636 = vmatprep.subr.mxu0 0.0
    %2637 = vmatpush2.msra.mxu0 0.0
    %2638 = vmatprep.subr.mxu0 0.0
    %2639 = vmatpush2.msra.mxu0 0.0
    %2640 = vmatprep.subr.mxu0 0.0
    %2641 = vmatpush2.msra.mxu0 0.0
    %2642 = vmatprep.subr.mxu0 0.0
    %2643 = vmatpush2.msra.mxu0 0.0
    %2644 = vmatprep.subr.mxu0 0.0
    %2645 = vmatpush2.msra.mxu0 0.0
    %2646 = vmatprep.subr.mxu0 0.0
    %2647 = vmatpush2.msra.mxu0 0.0
    %2648 = vmatprep.subr.mxu0 0.0
    %2649 = vmatpush2.msra.mxu0 0.0
    %2650 = vmatprep.subr.mxu0 0.0
    %2651 = vmatpush2.msra.mxu0 0.0
    %2652 = vmatprep.subr.mxu0 0.0
    %2653 = vmatpush2.msra.mxu0 0.0
    %2654 = vmatprep.subr.mxu0 0.0
    %2655 = vmatpush2.msra.mxu0 0.0
    %2656 = vmatprep.mubr.f32.mxu0 0.0
    %v2657 = vand.u32 %v1899, 4294901760
    %v2658 = vsub.f32 %v1899, %v2657
    %v2659 = vand.u32 %v2658, 4294901760
    %v2660 = vsub.f32 %v2658, %v2659
    %v2661 = vand.u32 %v2660, 4294901760
    %2662 = vmatmul.mubr.f32.gmra.mxu0 %v2661
    %v2663 = vpop.f32.mrf.mxu0
    %v2664 = vadd.f32 %v1896, %v2663
    %v2665 = vpop.f32.mrf.mxu0
    %v2666 = vadd.f32 %v1896, %v2665
    %2667 = vdwg.mxu0
    %2668 = vmatprep.subr.mxu0 0.0
    %2669 = vmatpush1.msra.mxu0 0.0
    %2670 = vmatprep.subr.mxu0 0.0
    %2671 = vmatpush1.msra.mxu0 0.0
    %2672 = vmatprep.subr.mxu0 0.0
    %2673 = vmatpush1.msra.mxu0 0.0
    %2674 = vmatprep.subr.mxu0 0.0
    %2675 = vmatpush1.msra.mxu0 0.0
    %2676 = vmatprep.subr.mxu0 0.0
    %2677 = vmatpush1.msra.mxu0 0.0
    %2678 = vmatprep.subr.mxu0 0.0
    %2679 = vmatpush1.msra.mxu0 0.0
    %2680 = vmatprep.subr.mxu0 0.0
    %2681 = vmatpush1.msra.mxu0 0.0
    %v2682 = vand.u32 %v1892, 4294901760
    %v2683 = vsub.f32 %v1892, %v2682
    %v2684 = vand.u32 %v2683, 4294901760
    %v2685 = vsub.f32 %v2683, %v2684
    %v2686 = vand.u32 %v2685, 4294901760
    %2687 = vmatprep.subr.mxu0 %v2686
    %v2688 = vand.u32 %v1891, 4294901760
    %v2689 = vsub.f32 %v1891, %v2688
    %v2690 = vand.u32 %v2689, 4294901760
    %v2691 = vsub.f32 %v2689, %v2690
    %v2692 = vand.u32 %v2691, 4294901760
    %2693 = vmatpush1.msra.mxu0 %v2692
    %v2694 = vand.u32 %v1888, 4294901760
    %v2695 = vsub.f32 %v1888, %v2694
    %v2696 = vand.u32 %v2695, 4294901760
    %v2697 = vsub.f32 %v2695, %v2696
    %v2698 = vand.u32 %v2697, 4294901760
    %2699 = vmatprep.subr.mxu0 %v2698
    %v2700 = vand.u32 %v1887, 4294901760
    %v2701 = vsub.f32 %v1887, %v2700
    %v2702 = vand.u32 %v2701, 4294901760
    %v2703 = vsub.f32 %v2701, %v2702
    %v2704 = vand.u32 %v2703, 4294901760
    %2705 = vmatpush1.msra.mxu0 %v2704
    %v2706 = vand.u32 %v1884, 4294901760
    %v2707 = vsub.f32 %v1884, %v2706
    %v2708 = vand.u32 %v2707, 4294901760
    %v2709 = vsub.f32 %v2707, %v2708
    %v2710 = vand.u32 %v2709, 4294901760
    %2711 = vmatprep.subr.mxu0 %v2710
    %v2712 = vand.u32 %v1883, 4294901760
    %v2713 = vsub.f32 %v1883, %v2712
    %v2714 = vand.u32 %v2713, 4294901760
    %v2715 = vsub.f32 %v2713, %v2714
    %v2716 = vand.u32 %v2715, 4294901760
    %2717 = vmatpush1.msra.mxu0 %v2716
    %v2718 = vand.u32 %v1880, 4294901760
    %v2719 = vsub.f32 %v1880, %v2718
    %v2720 = vand.u32 %v2719, 4294901760
    %v2721 = vsub.f32 %v2719, %v2720
    %v2722 = vand.u32 %v2721, 4294901760
    %2723 = vmatprep.subr.mxu0 %v2722
    %v2724 = vand.u32 %v1879, 4294901760
    %v2725 = vsub.f32 %v1879, %v2724
    %v2726 = vand.u32 %v2725, 4294901760
    %v2727 = vsub.f32 %v2725, %v2726
    %v2728 = vand.u32 %v2727, 4294901760
    %2729 = vmatpush1.msra.mxu0 %v2728
    %v2730 = vand.u32 %v1876, 4294901760
    %v2731 = vsub.f32 %v1876, %v2730
    %v2732 = vand.u32 %v2731, 4294901760
    %v2733 = vsub.f32 %v2731, %v2732
    %v2734 = vand.u32 %v2733, 4294901760
    %2735 = vmatprep.subr.mxu0 %v2734
    %v2736 = vand.u32 %v1875, 4294901760
    %v2737 = vsub.f32 %v1875, %v2736
    %v2738 = vand.u32 %v2737, 4294901760
    %v2739 = vsub.f32 %v2737, %v2738
    %v2740 = vand.u32 %v2739, 4294901760
    %2741 = vmatpush1.msra.mxu0 %v2740
    %v2742 = vand.u32 %v1872, 4294901760
    %v2743 = vsub.f32 %v1872, %v2742
    %v2744 = vand.u32 %v2743, 4294901760
    %v2745 = vsub.f32 %v2743, %v2744
    %v2746 = vand.u32 %v2745, 4294901760
    %2747 = vmatprep.subr.mxu0 %v2746
    %v2748 = vand.u32 %v1871, 4294901760
    %v2749 = vsub.f32 %v1871, %v2748
    %v2750 = vand.u32 %v2749, 4294901760
    %v2751 = vsub.f32 %v2749, %v2750
    %v2752 = vand.u32 %v2751, 4294901760
    %2753 = vmatpush1.msra.mxu0 %v2752
    %v2754 = vand.u32 %v1868, 4294901760
    %v2755 = vsub.f32 %v1868, %v2754
    %v2756 = vand.u32 %v2755, 4294901760
    %v2757 = vsub.f32 %v2755, %v2756
    %v2758 = vand.u32 %v2757, 4294901760
    %2759 = vmatprep.subr.mxu0 %v2758
    %v2760 = vand.u32 %v1867, 4294901760
    %v2761 = vsub.f32 %v1867, %v2760
    %v2762 = vand.u32 %v2761, 4294901760
    %v2763 = vsub.f32 %v2761, %v2762
    %v2764 = vand.u32 %v2763, 4294901760
    %2765 = vmatpush1.msra.mxu0 %v2764
    %v2766 = vand.u32 %v1864, 4294901760
    %v2767 = vsub.f32 %v1864, %v2766
    %v2768 = vand.u32 %v2767, 4294901760
    %v2769 = vsub.f32 %v2767, %v2768
    %v2770 = vand.u32 %v2769, 4294901760
    %2771 = vmatprep.subr.mxu0 %v2770
    %v2772 = vand.u32 %v1863, 4294901760
    %v2773 = vsub.f32 %v1863, %v2772
    %v2774 = vand.u32 %v2773, 4294901760
    %v2775 = vsub.f32 %v2773, %v2774
    %v2776 = vand.u32 %v2775, 4294901760
    %2777 = vmatpush1.msra.mxu0 %v2776
    %v2778 = vand.u32 %v1860, 4294901760
    %v2779 = vsub.f32 %v1860, %v2778
    %v2780 = vand.u32 %v2779, 4294901760
    %v2781 = vsub.f32 %v2779, %v2780
    %v2782 = vand.u32 %v2781, 4294901760
    %2783 = vmatprep.subr.mxu0 %v2782
    %v2784 = vand.u32 %v1859, 4294901760
    %v2785 = vsub.f32 %v1859, %v2784
    %v2786 = vand.u32 %v2785, 4294901760
    %v2787 = vsub.f32 %v2785, %v2786
    %v2788 = vand.u32 %v2787, 4294901760
    %2789 = vmatpush1.msra.mxu0 %v2788
    %2790 = vmatprep.subr.mxu0 0.0
    %2791 = vmatpush2.msra.mxu0 0.0
    %2792 = vmatprep.subr.mxu0 0.0
    %2793 = vmatpush2.msra.mxu0 0.0
    %2794 = vmatprep.subr.mxu0 0.0
    %2795 = vmatpush2.msra.mxu0 0.0
    %2796 = vmatprep.subr.mxu0 0.0
    %2797 = vmatpush2.msra.mxu0 0.0
    %2798 = vmatprep.subr.mxu0 0.0
    %2799 = vmatpush2.msra.mxu0 0.0
    %2800 = vmatprep.subr.mxu0 0.0
    %2801 = vmatpush2.msra.mxu0 0.0
    %2802 = vmatprep.subr.mxu0 0.0
    %2803 = vmatpush2.msra.mxu0 0.0
    %2804 = vmatprep.subr.mxu0 0.0
    %2805 = vmatpush2.msra.mxu0 0.0
    %2806 = vmatprep.subr.mxu0 0.0
    %2807 = vmatpush2.msra.mxu0 0.0
    %2808 = vmatprep.subr.mxu0 0.0
    %2809 = vmatpush2.msra.mxu0 0.0
    %2810 = vmatprep.subr.mxu0 0.0
    %2811 = vmatpush2.msra.mxu0 0.0
    %2812 = vmatprep.subr.mxu0 0.0
    %2813 = vmatpush2.msra.mxu0 0.0
    %2814 = vmatprep.subr.mxu0 0.0
    %2815 = vmatpush2.msra.mxu0 0.0
    %2816 = vmatprep.subr.mxu0 0.0
    %2817 = vmatpush2.msra.mxu0 0.0
    %2818 = vmatprep.subr.mxu0 0.0
    %2819 = vmatpush2.msra.mxu0 0.0
    %2820 = vmatprep.subr.mxu0 0.0
    %2821 = vmatpush2.msra.mxu0 0.0
    %2822 = vmatprep.mubr.f32.mxu0 0.0
    %v2823 = vand.u32 %v1899, 4294901760
    %2824 = vmatmul.mubr.f32.gmra.mxu0 %v2823
    %v2825 = vpop.f32.mrf.mxu0
    %v2826 = vadd.f32 %v2664, %v2825
    %v2827 = vpop.f32.mrf.mxu0
    %v2828 = vadd.f32 %v2666, %v2827
    %2829 = vdwg.mxu0
    %2830 = vmatprep.subr.mxu0 0.0
    %2831 = vmatpush1.msra.mxu0 0.0
    %2832 = vmatprep.subr.mxu0 0.0
    %2833 = vmatpush1.msra.mxu0 0.0
    %2834 = vmatprep.subr.mxu0 0.0
    %2835 = vmatpush1.msra.mxu0 0.0
    %2836 = vmatprep.subr.mxu0 0.0
    %2837 = vmatpush1.msra.mxu0 0.0
    %2838 = vmatprep.subr.mxu0 0.0
    %2839 = vmatpush1.msra.mxu0 0.0
    %2840 = vmatprep.subr.mxu0 0.0
    %2841 = vmatpush1.msra.mxu0 0.0
    %2842 = vmatprep.subr.mxu0 0.0
    %2843 = vmatpush1.msra.mxu0 0.0
    %v2844 = vand.u32 %v1892, 4294901760
    %v2845 = vsub.f32 %v1892, %v2844
    %2846 = vmatprep.subr.mxu0 %v2845
    %v2847 = vand.u32 %v1891, 4294901760
    %v2848 = vsub.f32 %v1891, %v2847
    %2849 = vmatpush1.msra.mxu0 %v2848
    %v2850 = vand.u32 %v1888, 4294901760
    %v2851 = vsub.f32 %v1888, %v2850
    %2852 = vmatprep.subr.mxu0 %v2851
    %v2853 = vand.u32 %v1887, 4294901760
    %v2854 = vsub.f32 %v1887, %v2853
    %2855 = vmatpush1.msra.mxu0 %v2854
    %v2856 = vand.u32 %v1884, 4294901760
    %v2857 = vsub.f32 %v1884, %v2856
    %2858 = vmatprep.subr.mxu0 %v2857
    %v2859 = vand.u32 %v1883, 4294901760
    %v2860 = vsub.f32 %v1883, %v2859
    %2861 = vmatpush1.msra.mxu0 %v2860
    %v2862 = vand.u32 %v1880, 4294901760
    %v2863 = vsub.f32 %v1880, %v2862
    %2864 = vmatprep.subr.mxu0 %v2863
    %v2865 = vand.u32 %v1879, 4294901760
    %v2866 = vsub.f32 %v1879, %v2865
    %2867 = vmatpush1.msra.mxu0 %v2866
    %v2868 = vand.u32 %v1876, 4294901760
    %v2869 = vsub.f32 %v1876, %v2868
    %2870 = vmatprep.subr.mxu0 %v2869
    %v2871 = vand.u32 %v1875, 4294901760
    %v2872 = vsub.f32 %v1875, %v2871
    %2873 = vmatpush1.msra.mxu0 %v2872
    %v2874 = vand.u32 %v1872, 4294901760
    %v2875 = vsub.f32 %v1872, %v2874
    %2876 = vmatprep.subr.mxu0 %v2875
    %v2877 = vand.u32 %v1871, 4294901760
    %v2878 = vsub.f32 %v1871, %v2877
    %2879 = vmatpush1.msra.mxu0 %v2878
    %v2880 = vand.u32 %v1868, 4294901760
    %v2881 = vsub.f32 %v1868, %v2880
    %2882 = vmatprep.subr.mxu0 %v2881
    %v2883 = vand.u32 %v1867, 4294901760
    %v2884 = vsub.f32 %v1867, %v2883
    %2885 = vmatpush1.msra.mxu0 %v2884
    %v2886 = vand.u32 %v1864, 4294901760
    %v2887 = vsub.f32 %v1864, %v2886
    %2888 = vmatprep.subr.mxu0 %v2887
    %v2889 = vand.u32 %v1863, 4294901760
    %v2890 = vsub.f32 %v1863, %v2889
    %2891 = vmatpush1.msra.mxu0 %v2890
    %v2892 = vand.u32 %v1860, 4294901760
    %v2893 = vsub.f32 %v1860, %v2892
    %2894 = vmatprep.subr.mxu0 %v2893
    %v2895 = vand.u32 %v1859, 4294901760
    %v2896 = vsub.f32 %v1859, %v2895
    %2897 = vmatpush1.msra.mxu0 %v2896
    %2898 = vmatprep.subr.mxu0 0.0
    %2899 = vmatpush2.msra.mxu0 0.0
    %2900 = vmatprep.subr.mxu0 0.0
    %2901 = vmatpush2.msra.mxu0 0.0
    %2902 = vmatprep.subr.mxu0 0.0
    %2903 = vmatpush2.msra.mxu0 0.0
    %2904 = vmatprep.subr.mxu0 0.0
    %2905 = vmatpush2.msra.mxu0 0.0
    %2906 = vmatprep.subr.mxu0 0.0
    %2907 = vmatpush2.msra.mxu0 0.0
    %2908 = vmatprep.subr.mxu0 0.0
    %2909 = vmatpush2.msra.mxu0 0.0
    %2910 = vmatprep.subr.mxu0 0.0
    %2911 = vmatpush2.msra.mxu0 0.0
    %2912 = vmatprep.subr.mxu0 0.0
    %2913 = vmatpush2.msra.mxu0 0.0
    %2914 = vmatprep.subr.mxu0 0.0
    %2915 = vmatpush2.msra.mxu0 0.0
    %2916 = vmatprep.subr.mxu0 0.0
    %2917 = vmatpush2.msra.mxu0 0.0
    %2918 = vmatprep.subr.mxu0 0.0
    %2919 = vmatpush2.msra.mxu0 0.0
    %2920 = vmatprep.subr.mxu0 0.0
    %2921 = vmatpush2.msra.mxu0 0.0
    %2922 = vmatprep.subr.mxu0 0.0
    %2923 = vmatpush2.msra.mxu0 0.0
    %2924 = vmatprep.subr.mxu0 0.0
    %2925 = vmatpush2.msra.mxu0 0.0
    %2926 = vmatprep.subr.mxu0 0.0
    %2927 = vmatpush2.msra.mxu0 0.0
    %2928 = vmatprep.subr.mxu0 0.0
    %2929 = vmatpush2.msra.mxu0 0.0
    %2930 = vmatprep.mubr.f32.mxu0 0.0
    %v2931 = vand.u32 %v1899, 4294901760
    %v2932 = vsub.f32 %v1899, %v2931
    %2933 = vmatmul.mubr.f32.gmra.mxu0 %v2932
    %v2934 = vpop.f32.mrf.mxu0
    %v2935 = vadd.f32 %v2826, %v2934
    %v2936 = vpop.f32.mrf.mxu0
    %v2937 = vadd.f32 %v2828, %v2936
    %2938 = vdwg.mxu0
    %2939 = vmatprep.subr.mxu0 0.0
    %2940 = vmatpush1.msra.mxu0 0.0
    %2941 = vmatprep.subr.mxu0 0.0
    %2942 = vmatpush1.msra.mxu0 0.0
    %2943 = vmatprep.subr.mxu0 0.0
    %2944 = vmatpush1.msra.mxu0 0.0
    %2945 = vmatprep.subr.mxu0 0.0
    %2946 = vmatpush1.msra.mxu0 0.0
    %2947 = vmatprep.subr.mxu0 0.0
    %2948 = vmatpush1.msra.mxu0 0.0
    %2949 = vmatprep.subr.mxu0 0.0
    %2950 = vmatpush1.msra.mxu0 0.0
    %2951 = vmatprep.subr.mxu0 0.0
    %2952 = vmatpush1.msra.mxu0 0.0
    %v2953 = vand.u32 %v1892, 4294901760
    %2954 = vmatprep.subr.mxu0 %v2953
    %v2955 = vand.u32 %v1891, 4294901760
    %2956 = vmatpush1.msra.mxu0 %v2955
    %v2957 = vand.u32 %v1888, 4294901760
    %2958 = vmatprep.subr.mxu0 %v2957
    %v2959 = vand.u32 %v1887, 4294901760
    %2960 = vmatpush1.msra.mxu0 %v2959
    %v2961 = vand.u32 %v1884, 4294901760
    %2962 = vmatprep.subr.mxu0 %v2961
    %v2963 = vand.u32 %v1883, 4294901760
    %2964 = vmatpush1.msra.mxu0 %v2963
    %v2965 = vand.u32 %v1880, 4294901760
    %2966 = vmatprep.subr.mxu0 %v2965
    %v2967 = vand.u32 %v1879, 4294901760
    %2968 = vmatpush1.msra.mxu0 %v2967
    %v2969 = vand.u32 %v1876, 4294901760
    %2970 = vmatprep.subr.mxu0 %v2969
    %v2971 = vand.u32 %v1875, 4294901760
    %2972 = vmatpush1.msra.mxu0 %v2971
    %v2973 = vand.u32 %v1872, 4294901760
    %2974 = vmatprep.subr.mxu0 %v2973
    %v2975 = vand.u32 %v1871, 4294901760
    %2976 = vmatpush1.msra.mxu0 %v2975
    %v2977 = vand.u32 %v1868, 4294901760
    %2978 = vmatprep.subr.mxu0 %v2977
    %v2979 = vand.u32 %v1867, 4294901760
    %2980 = vmatpush1.msra.mxu0 %v2979
    %v2981 = vand.u32 %v1864, 4294901760
    %2982 = vmatprep.subr.mxu0 %v2981
    %v2983 = vand.u32 %v1863, 4294901760
    %2984 = vmatpush1.msra.mxu0 %v2983
    %v2985 = vand.u32 %v1860, 4294901760
    %2986 = vmatprep.subr.mxu0 %v2985
    %v2987 = vand.u32 %v1859, 4294901760
    %2988 = vmatpush1.msra.mxu0 %v2987
    %2989 = vmatprep.subr.mxu0 0.0
    %2990 = vmatpush2.msra.mxu0 0.0
    %2991 = vmatprep.subr.mxu0 0.0
    %2992 = vmatpush2.msra.mxu0 0.0
    %2993 = vmatprep.subr.mxu0 0.0
    %2994 = vmatpush2.msra.mxu0 0.0
    %2995 = vmatprep.subr.mxu0 0.0
    %2996 = vmatpush2.msra.mxu0 0.0
    %2997 = vmatprep.subr.mxu0 0.0
    %2998 = vmatpush2.msra.mxu0 0.0
    %2999 = vmatprep.subr.mxu0 0.0
    %3000 = vmatpush2.msra.mxu0 0.0
    %3001 = vmatprep.subr.mxu0 0.0
    %3002 = vmatpush2.msra.mxu0 0.0
    %3003 = vmatprep.subr.mxu0 0.0
    %3004 = vmatpush2.msra.mxu0 0.0
    %3005 = vmatprep.subr.mxu0 0.0
    %3006 = vmatpush2.msra.mxu0 0.0
    %3007 = vmatprep.subr.mxu0 0.0
    %3008 = vmatpush2.msra.mxu0 0.0
    %3009 = vmatprep.subr.mxu0 0.0
    %3010 = vmatpush2.msra.mxu0 0.0
    %3011 = vmatprep.subr.mxu0 0.0
    %3012 = vmatpush2.msra.mxu0 0.0
    %3013 = vmatprep.subr.mxu0 0.0
    %3014 = vmatpush2.msra.mxu0 0.0
    %3015 = vmatprep.subr.mxu0 0.0
    %3016 = vmatpush2.msra.mxu0 0.0
    %3017 = vmatprep.subr.mxu0 0.0
    %3018 = vmatpush2.msra.mxu0 0.0
    %3019 = vmatprep.subr.mxu0 0.0
    %3020 = vmatpush2.msra.mxu0 0.0
    %3021 = vmatprep.mubr.f32.mxu0 0.0
    %v3022 = vand.u32 %v1899, 4294901760
    %v3023 = vsub.f32 %v1899, %v3022
    %v3024 = vand.u32 %v3023, 4294901760
    %3025 = vmatmul.mubr.f32.gmra.mxu0 %v3024
    %v3026 = vpop.f32.mrf.mxu0
    %v3027 = vadd.f32 %v2935, %v3026
    %v3028 = vpop.f32.mrf.mxu0
    %v3029 = vadd.f32 %v2937, %v3028
    %3030 = vdwg.mxu0
    %3031 = vmatprep.subr.mxu0 0.0
    %3032 = vmatpush1.msra.mxu0 0.0
    %3033 = vmatprep.subr.mxu0 0.0
    %3034 = vmatpush1.msra.mxu0 0.0
    %3035 = vmatprep.subr.mxu0 0.0
    %3036 = vmatpush1.msra.mxu0 0.0
    %3037 = vmatprep.subr.mxu0 0.0
    %3038 = vmatpush1.msra.mxu0 0.0
    %3039 = vmatprep.subr.mxu0 0.0
    %3040 = vmatpush1.msra.mxu0 0.0
    %3041 = vmatprep.subr.mxu0 0.0
    %3042 = vmatpush1.msra.mxu0 0.0
    %3043 = vmatprep.subr.mxu0 0.0
    %3044 = vmatpush1.msra.mxu0 0.0
    %v3045 = vand.u32 %v1892, 4294901760
    %v3046 = vsub.f32 %v1892, %v3045
    %v3047 = vand.u32 %v3046, 4294901760
    %3048 = vmatprep.subr.mxu0 %v3047
    %v3049 = vand.u32 %v1891, 4294901760
    %v3050 = vsub.f32 %v1891, %v3049
    %v3051 = vand.u32 %v3050, 4294901760
    %3052 = vmatpush1.msra.mxu0 %v3051
    %v3053 = vand.u32 %v1888, 4294901760
    %v3054 = vsub.f32 %v1888, %v3053
    %v3055 = vand.u32 %v3054, 4294901760
    %3056 = vmatprep.subr.mxu0 %v3055
    %v3057 = vand.u32 %v1887, 4294901760
    %v3058 = vsub.f32 %v1887, %v3057
    %v3059 = vand.u32 %v3058, 4294901760
    %3060 = vmatpush1.msra.mxu0 %v3059
    %v3061 = vand.u32 %v1884, 4294901760
    %v3062 = vsub.f32 %v1884, %v3061
    %v3063 = vand.u32 %v3062, 4294901760
    %3064 = vmatprep.subr.mxu0 %v3063
    %v3065 = vand.u32 %v1883, 4294901760
    %v3066 = vsub.f32 %v1883, %v3065
    %v3067 = vand.u32 %v3066, 4294901760
    %3068 = vmatpush1.msra.mxu0 %v3067
    %v3069 = vand.u32 %v1880, 4294901760
    %v3070 = vsub.f32 %v1880, %v3069
    %v3071 = vand.u32 %v3070, 4294901760
    %3072 = vmatprep.subr.mxu0 %v3071
    %v3073 = vand.u32 %v1879, 4294901760
    %v3074 = vsub.f32 %v1879, %v3073
    %v3075 = vand.u32 %v3074, 4294901760
    %3076 = vmatpush1.msra.mxu0 %v3075
    %v3077 = vand.u32 %v1876, 4294901760
    %v3078 = vsub.f32 %v1876, %v3077
    %v3079 = vand.u32 %v3078, 4294901760
    %3080 = vmatprep.subr.mxu0 %v3079
    %v3081 = vand.u32 %v1875, 4294901760
    %v3082 = vsub.f32 %v1875, %v3081
    %v3083 = vand.u32 %v3082, 4294901760
    %3084 = vmatpush1.msra.mxu0 %v3083
    %v3085 = vand.u32 %v1872, 4294901760
    %v3086 = vsub.f32 %v1872, %v3085
    %v3087 = vand.u32 %v3086, 4294901760
    %3088 = vmatprep.subr.mxu0 %v3087
    %v3089 = vand.u32 %v1871, 4294901760
    %v3090 = vsub.f32 %v1871, %v3089
    %v3091 = vand.u32 %v3090, 4294901760
    %3092 = vmatpush1.msra.mxu0 %v3091
    %v3093 = vand.u32 %v1868, 4294901760
    %v3094 = vsub.f32 %v1868, %v3093
    %v3095 = vand.u32 %v3094, 4294901760
    %3096 = vmatprep.subr.mxu0 %v3095
    %v3097 = vand.u32 %v1867, 4294901760
    %v3098 = vsub.f32 %v1867, %v3097
    %v3099 = vand.u32 %v3098, 4294901760
    %3100 = vmatpush1.msra.mxu0 %v3099
    %v3101 = vand.u32 %v1864, 4294901760
    %v3102 = vsub.f32 %v1864, %v3101
    %v3103 = vand.u32 %v3102, 4294901760
    %3104 = vmatprep.subr.mxu0 %v3103
    %v3105 = vand.u32 %v1863, 4294901760
    %v3106 = vsub.f32 %v1863, %v3105
    %v3107 = vand.u32 %v3106, 4294901760
    %3108 = vmatpush1.msra.mxu0 %v3107
    %v3109 = vand.u32 %v1860, 4294901760
    %v3110 = vsub.f32 %v1860, %v3109
    %v3111 = vand.u32 %v3110, 4294901760
    %3112 = vmatprep.subr.mxu0 %v3111
    %v3113 = vand.u32 %v1859, 4294901760
    %v3114 = vsub.f32 %v1859, %v3113
    %v3115 = vand.u32 %v3114, 4294901760
    %3116 = vmatpush1.msra.mxu0 %v3115
    %3117 = vmatprep.subr.mxu0 0.0
    %3118 = vmatpush2.msra.mxu0 0.0
    %3119 = vmatprep.subr.mxu0 0.0
    %3120 = vmatpush2.msra.mxu0 0.0
    %3121 = vmatprep.subr.mxu0 0.0
    %3122 = vmatpush2.msra.mxu0 0.0
    %3123 = vmatprep.subr.mxu0 0.0
    %3124 = vmatpush2.msra.mxu0 0.0
    %3125 = vmatprep.subr.mxu0 0.0
    %3126 = vmatpush2.msra.mxu0 0.0
    %3127 = vmatprep.subr.mxu0 0.0
    %3128 = vmatpush2.msra.mxu0 0.0
    %3129 = vmatprep.subr.mxu0 0.0
    %3130 = vmatpush2.msra.mxu0 0.0
    %3131 = vmatprep.subr.mxu0 0.0
    %3132 = vmatpush2.msra.mxu0 0.0
    %3133 = vmatprep.subr.mxu0 0.0
    %3134 = vmatpush2.msra.mxu0 0.0
    %3135 = vmatprep.subr.mxu0 0.0
    %3136 = vmatpush2.msra.mxu0 0.0
    %3137 = vmatprep.subr.mxu0 0.0
    %3138 = vmatpush2.msra.mxu0 0.0
    %3139 = vmatprep.subr.mxu0 0.0
    %3140 = vmatpush2.msra.mxu0 0.0
    %3141 = vmatprep.subr.mxu0 0.0
    %3142 = vmatpush2.msra.mxu0 0.0
    %3143 = vmatprep.subr.mxu0 0.0
    %3144 = vmatpush2.msra.mxu0 0.0
    %3145 = vmatprep.subr.mxu0 0.0
    %3146 = vmatpush2.msra.mxu0 0.0
    %3147 = vmatprep.subr.mxu0 0.0
    %3148 = vmatpush2.msra.mxu0 0.0
    %3149 = vmatprep.mubr.f32.mxu0 0.0
    %v3150 = vand.u32 %v1899, 4294901760
    %3151 = vmatmul.mubr.f32.gmra.mxu0 %v3150
    %v3152 = vpop.f32.mrf.mxu0
    %v3153 = vadd.f32 %v3027, %v3152
    %v3154 = vpop.f32.mrf.mxu0
    %v3155 = vadd.f32 %v3029, %v3154
    %3156 = vdwg.mxu0
    %3157 = vmatprep.subr.mxu0 0.0
    %3158 = vmatpush1.msra.mxu0 0.0
    %3159 = vmatprep.subr.mxu0 0.0
    %3160 = vmatpush1.msra.mxu0 0.0
    %3161 = vmatprep.subr.mxu0 0.0
    %3162 = vmatpush1.msra.mxu0 0.0
    %3163 = vmatprep.subr.mxu0 0.0
    %3164 = vmatpush1.msra.mxu0 0.0
    %3165 = vmatprep.subr.mxu0 0.0
    %3166 = vmatpush1.msra.mxu0 0.0
    %3167 = vmatprep.subr.mxu0 0.0
    %3168 = vmatpush1.msra.mxu0 0.0
    %3169 = vmatprep.subr.mxu0 0.0
    %3170 = vmatpush1.msra.mxu0 0.0
    %v3171 = vand.u32 %v1892, 4294901760
    %3172 = vmatprep.subr.mxu0 %v3171
    %v3173 = vand.u32 %v1891, 4294901760
    %3174 = vmatpush1.msra.mxu0 %v3173
    %v3175 = vand.u32 %v1888, 4294901760
    %3176 = vmatprep.subr.mxu0 %v3175
    %v3177 = vand.u32 %v1887, 4294901760
    %3178 = vmatpush1.msra.mxu0 %v3177
    %v3179 = vand.u32 %v1884, 4294901760
    %3180 = vmatprep.subr.mxu0 %v3179
    %v3181 = vand.u32 %v1883, 4294901760
    %3182 = vmatpush1.msra.mxu0 %v3181
    %v3183 = vand.u32 %v1880, 4294901760
    %3184 = vmatprep.subr.mxu0 %v3183
    %v3185 = vand.u32 %v1879, 4294901760
    %3186 = vmatpush1.msra.mxu0 %v3185
    %v3187 = vand.u32 %v1876, 4294901760
    %3188 = vmatprep.subr.mxu0 %v3187
    %v3189 = vand.u32 %v1875, 4294901760
    %3190 = vmatpush1.msra.mxu0 %v3189
    %v3191 = vand.u32 %v1872, 4294901760
    %3192 = vmatprep.subr.mxu0 %v3191
    %v3193 = vand.u32 %v1871, 4294901760
    %3194 = vmatpush1.msra.mxu0 %v3193
    %v3195 = vand.u32 %v1868, 4294901760
    %3196 = vmatprep.subr.mxu0 %v3195
    %v3197 = vand.u32 %v1867, 4294901760
    %3198 = vmatpush1.msra.mxu0 %v3197
    %v3199 = vand.u32 %v1864, 4294901760
    %3200 = vmatprep.subr.mxu0 %v3199
    %v3201 = vand.u32 %v1863, 4294901760
    %3202 = vmatpush1.msra.mxu0 %v3201
    %v3203 = vand.u32 %v1860, 4294901760
    %3204 = vmatprep.subr.mxu0 %v3203
    %v3205 = vand.u32 %v1859, 4294901760
    %3206 = vmatpush1.msra.mxu0 %v3205
    %3207 = vmatprep.subr.mxu0 0.0
    %3208 = vmatpush2.msra.mxu0 0.0
    %3209 = vmatprep.subr.mxu0 0.0
    %3210 = vmatpush2.msra.mxu0 0.0
    %3211 = vmatprep.subr.mxu0 0.0
    %3212 = vmatpush2.msra.mxu0 0.0
    %3213 = vmatprep.subr.mxu0 0.0
    %3214 = vmatpush2.msra.mxu0 0.0
    %3215 = vmatprep.subr.mxu0 0.0
    %3216 = vmatpush2.msra.mxu0 0.0
    %3217 = vmatprep.subr.mxu0 0.0
    %3218 = vmatpush2.msra.mxu0 0.0
    %3219 = vmatprep.subr.mxu0 0.0
    %3220 = vmatpush2.msra.mxu0 0.0
    %3221 = vmatprep.subr.mxu0 0.0
    %3222 = vmatpush2.msra.mxu0 0.0
    %3223 = vmatprep.subr.mxu0 0.0
    %3224 = vmatpush2.msra.mxu0 0.0
    %3225 = vmatprep.subr.mxu0 0.0
    %3226 = vmatpush2.msra.mxu0 0.0
    %3227 = vmatprep.subr.mxu0 0.0
    %3228 = vmatpush2.msra.mxu0 0.0
    %3229 = vmatprep.subr.mxu0 0.0
    %3230 = vmatpush2.msra.mxu0 0.0
    %3231 = vmatprep.subr.mxu0 0.0
    %3232 = vmatpush2.msra.mxu0 0.0
    %3233 = vmatprep.subr.mxu0 0.0
    %3234 = vmatpush2.msra.mxu0 0.0
    %3235 = vmatprep.subr.mxu0 0.0
    %3236 = vmatpush2.msra.mxu0 0.0
    %3237 = vmatprep.subr.mxu0 0.0
    %3238 = vmatpush2.msra.mxu0 0.0
    %3239 = vmatprep.mubr.f32.mxu0 0.0
    %v3240 = vand.u32 %v1899, 4294901760
    %3241 = vmatmul.mubr.f32.gmra.mxu0 %v3240
    %v3242 = vpop.f32.mrf.mxu0
    %v3243 = vadd.f32 %v3153, %v3242
    %v3244 = vpop.f32.mrf.mxu0
    %v3245 = vadd.f32 %v3155, %v3244
    %3246 = vdwg.mxu0
    %v3247 = vmax.f32 %v2570, 0.0
    %v3248 = vmax.f32 %v2572, 0.0
    %v3249 = vmax.f32 %v3243, 0.0
    %v3250 = vmax.f32 %v3245, 0.0
    %v3251 = vld [vmem:[%s4] sm:$0xff]
    %v3252 = vld [vmem:[%s5] sm:$0xff]
    %3253 = vrot.lane.b32.xlu0 %v3247, 17
    %v3254 = vpop.permute.xlu0 %3253
    %3255 = vrot.lane.b32.xlu0 %v3248, 17
    %v3256 = vpop.permute.xlu0 %3255
    %3257 = vrot.lane.b32.xlu0 %v3249, 17
    %v3258 = vpop.permute.xlu0 %3257
    %3259 = vrot.lane.b32.xlu0 %v3250, 17
    %v3260 = vpop.permute.xlu0 %3259
    %v3261 = vsel %vm66, %v3258, %v3260
    %v3262 = vsel %vm66, %v3256, %v3258
    %v3263 = vsel %vm66, %v3254, %v3256
    %v3264 = vsel %vm66, %v3260, %v3254
    %v3265 = vld [vmem:[#allocation6] sm:$0xff]
    %v3266 = vld [vmem:[#allocation6 + $0x8] sm:$0xff]
    %v3267 = vld [vmem:[#allocation6 + $0x10] sm:$0xff]
    %v3268 = vld [vmem:[#allocation6 + $0x18] sm:$0xff]
    %v3269 = vmul.f32 %v3264, %v3265
    %v3270 = vmul.f32 %v3263, %v3266
    %v3271 = vmul.f32 %v3262, %v3267
    %v3272 = vmul.f32 %v3261, %v3268
    %3273 = vst [vmem:[#allocation2] sm:$0xff] %v3269
    %3274 = vst [vmem:[#allocation2 + $0x8] sm:$0xff] %v3270
    %3275 = vst [vmem:[#allocation2 + $0x10] sm:$0xff] %v3271
    %3276 = vst [vmem:[#allocation2 + $0x18] sm:$0xff] %v3272
    %3277 = vrot.lane.b32.xlu0 %v3247, 16
    %v3278 = vpop.permute.xlu0 %3277
    %3279 = vrot.lane.b32.xlu0 %v3248, 16
    %v3280 = vpop.permute.xlu0 %3279
    %3281 = vrot.lane.b32.xlu0 %v3249, 16
    %v3282 = vpop.permute.xlu0 %3281
    %3283 = vrot.lane.b32.xlu0 %v3250, 16
    %v3284 = vpop.permute.xlu0 %3283
    %v3285 = vsel %vm91, %v3282, %v3284
    %v3286 = vsel %vm91, %v3280, %v3282
    %v3287 = vsel %vm91, %v3278, %v3280
    %v3288 = vsel %vm91, %v3284, %v3278
    %v3289 = vld [vmem:[#allocation6 + $0x20] sm:$0xff]
    %v3290 = vld [vmem:[#allocation6 + $0x28] sm:$0xff]
    %v3291 = vld [vmem:[#allocation6 + $0x30] sm:$0xff]
    %v3292 = vld [vmem:[#allocation6 + $0x38] sm:$0xff]
    %v3293 = vmul.f32 %v3288, %v3289
    %v3294 = vmul.f32 %v3287, %v3290
    %v3295 = vmul.f32 %v3286, %v3291
    %v3296 = vmul.f32 %v3285, %v3292
    %3297 = vst [vmem:[#allocation2 + $0x20] sm:$0xff] %v3293
    %3298 = vst [vmem:[#allocation2 + $0x28] sm:$0xff] %v3294
    %3299 = vst [vmem:[#allocation2 + $0x30] sm:$0xff] %v3295
    %3300 = vst [vmem:[#allocation2 + $0x38] sm:$0xff] %v3296
    %3301 = vrot.lane.b32.xlu0 %v3247, 15
    %v3302 = vpop.permute.xlu0 %3301
    %3303 = vrot.lane.b32.xlu0 %v3248, 15
    %v3304 = vpop.permute.xlu0 %3303
    %3305 = vrot.lane.b32.xlu0 %v3249, 15
    %v3306 = vpop.permute.xlu0 %3305
    %3307 = vrot.lane.b32.xlu0 %v3250, 15
    %v3308 = vpop.permute.xlu0 %3307
    %v3309 = vsel %vm116, %v3306, %v3308
    %v3310 = vsel %vm116, %v3304, %v3306
    %v3311 = vsel %vm116, %v3302, %v3304
    %v3312 = vsel %vm116, %v3308, %v3302
    %v3313 = vld [vmem:[#allocation6 + $0x40] sm:$0xff]
    %v3314 = vld [vmem:[#allocation6 + $0x48] sm:$0xff]
    %v3315 = vld [vmem:[#allocation6 + $0x50] sm:$0xff]
    %v3316 = vld [vmem:[#allocation6 + $0x58] sm:$0xff]
    %v3317 = vmul.f32 %v3312, %v3313
    %v3318 = vmul.f32 %v3311, %v3314
    %v3319 = vmul.f32 %v3310, %v3315
    %v3320 = vmul.f32 %v3309, %v3316
    %3321 = vst [vmem:[#allocation2 + $0x40] sm:$0xff] %v3317
    %3322 = vst [vmem:[#allocation2 + $0x48] sm:$0xff] %v3318
    %3323 = vst [vmem:[#allocation2 + $0x50] sm:$0xff] %v3319
    %3324 = vst [vmem:[#allocation2 + $0x58] sm:$0xff] %v3320
    %3325 = vrot.lane.b32.xlu0 %v3247, 1
    %v3326 = vpop.permute.xlu0 %3325
    %3327 = vrot.lane.b32.xlu0 %v3248, 1
    %v3328 = vpop.permute.xlu0 %3327
    %3329 = vrot.lane.b32.xlu0 %v3249, 1
    %v3330 = vpop.permute.xlu0 %3329
    %3331 = vrot.lane.b32.xlu0 %v3250, 1
    %v3332 = vpop.permute.xlu0 %3331
    %v3333 = vsel %vm141, %v3330, %v3332
    %v3334 = vsel %vm141, %v3328, %v3330
    %v3335 = vsel %vm141, %v3326, %v3328
    %v3336 = vsel %vm141, %v3332, %v3326
    %v3337 = vld [vmem:[#allocation6 + $0x60] sm:$0xff]
    %v3338 = vld [vmem:[#allocation6 + $0x68] sm:$0xff]
    %v3339 = vld [vmem:[#allocation6 + $0x70] sm:$0xff]
    %v3340 = vld [vmem:[#allocation6 + $0x78] sm:$0xff]
    %v3341 = vmul.f32 %v3336, %v3337
    %v3342 = vmul.f32 %v3335, %v3338
    %v3343 = vmul.f32 %v3334, %v3339
    %v3344 = vmul.f32 %v3333, %v3340
    %3345 = vst [vmem:[#allocation2 + $0x60] sm:$0xff] %v3341
    %3346 = vst [vmem:[#allocation2 + $0x68] sm:$0xff] %v3342
    %3347 = vst [vmem:[#allocation2 + $0x70] sm:$0xff] %v3343
    %3348 = vst [vmem:[#allocation2 + $0x78] sm:$0xff] %v3344
    %3349 = vst [vmem:[#allocation2 + $0x80] sm:$0xff] %v3247
    %3350 = vst [vmem:[#allocation2 + $0x88] sm:$0xff] %v3248
    %3351 = vst [vmem:[#allocation2 + $0x90] sm:$0xff] %v3249
    %3352 = vst [vmem:[#allocation2 + $0x98] sm:$0xff] %v3250
    %3353 = vrot.lane.b32.xlu0 %v3247, 127
    %v3354 = vpop.permute.xlu0 %3353
    %3355 = vrot.lane.b32.xlu0 %v3248, 127
    %v3356 = vpop.permute.xlu0 %3355
    %3357 = vrot.lane.b32.xlu0 %v3249, 127
    %v3358 = vpop.permute.xlu0 %3357
    %3359 = vrot.lane.b32.xlu0 %v3250, 127
    %v3360 = vpop.permute.xlu0 %3359
    %v3361 = vsel %vm170, %v3358, %v3360
    %v3362 = vsel %vm170, %v3356, %v3358
    %v3363 = vsel %vm170, %v3354, %v3356
    %v3364 = vsel %vm170, %v3360, %v3354
    %v3365 = vld [vmem:[#allocation6 + $0xa0] sm:$0xff]
    %v3366 = vld [vmem:[#allocation6 + $0xa8] sm:$0xff]
    %v3367 = vld [vmem:[#allocation6 + $0xb0] sm:$0xff]
    %v3368 = vld [vmem:[#allocation6 + $0xb8] sm:$0xff]
    %v3369 = vmul.f32 %v3363, %v3365
    %v3370 = vmul.f32 %v3362, %v3366
    %v3371 = vmul.f32 %v3361, %v3367
    %v3372 = vmul.f32 %v3364, %v3368
    %3373 = vst [vmem:[#allocation2 + $0xa0] sm:$0xff] %v3369
    %3374 = vst [vmem:[#allocation2 + $0xa8] sm:$0xff] %v3370
    %3375 = vst [vmem:[#allocation2 + $0xb0] sm:$0xff] %v3371
    %3376 = vst [vmem:[#allocation2 + $0xb8] sm:$0xff] %v3372
    %3377 = vrot.lane.b32.xlu0 %v3247, 113
    %v3378 = vpop.permute.xlu0 %3377
    %3379 = vrot.lane.b32.xlu0 %v3248, 113
    %v3380 = vpop.permute.xlu0 %3379
    %3381 = vrot.lane.b32.xlu0 %v3249, 113
    %v3382 = vpop.permute.xlu0 %3381
    %3383 = vrot.lane.b32.xlu0 %v3250, 113
    %v3384 = vpop.permute.xlu0 %3383
    %v3385 = vsel %vm195, %v3382, %v3384
    %v3386 = vsel %vm195, %v3380, %v3382
    %v3387 = vsel %vm195, %v3378, %v3380
    %v3388 = vsel %vm195, %v3384, %v3378
    %v3389 = vld [vmem:[#allocation6 + $0xc0] sm:$0xff]
    %v3390 = vld [vmem:[#allocation6 + $0xc8] sm:$0xff]
    %v3391 = vld [vmem:[#allocation6 + $0xd0] sm:$0xff]
    %v3392 = vld [vmem:[#allocation6 + $0xd8] sm:$0xff]
    %v3393 = vmul.f32 %v3387, %v3389
    %v3394 = vmul.f32 %v3386, %v3390
    %v3395 = vmul.f32 %v3385, %v3391
    %v3396 = vmul.f32 %v3388, %v3392
    %3397 = vst [vmem:[#allocation2 + $0xc0] sm:$0xff] %v3393
    %3398 = vst [vmem:[#allocation2 + $0xc8] sm:$0xff] %v3394
    %3399 = vst [vmem:[#allocation2 + $0xd0] sm:$0xff] %v3395
    %3400 = vst [vmem:[#allocation2 + $0xd8] sm:$0xff] %v3396
    %3401 = vrot.lane.b32.xlu0 %v3247, 112
    %v3402 = vpop.permute.xlu0 %3401
    %3403 = vrot.lane.b32.xlu0 %v3248, 112
    %v3404 = vpop.permute.xlu0 %3403
    %3405 = vrot.lane.b32.xlu0 %v3249, 112
    %v3406 = vpop.permute.xlu0 %3405
    %3407 = vrot.lane.b32.xlu0 %v3250, 112
    %v3408 = vpop.permute.xlu0 %3407
    %v3409 = vsel %vm220, %v3406, %v3408
    %v3410 = vsel %vm220, %v3404, %v3406
    %v3411 = vsel %vm220, %v3402, %v3404
    %v3412 = vsel %vm220, %v3408, %v3402
    %v3413 = vld [vmem:[#allocation6 + $0xe0] sm:$0xff]
    %v3414 = vld [vmem:[#allocation6 + $0xe8] sm:$0xff]
    %v3415 = vld [vmem:[#allocation6 + $0xf0] sm:$0xff]
    %v3416 = vld [vmem:[#allocation6 + $0xf8] sm:$0xff]
    %v3417 = vmul.f32 %v3411, %v3413
    %v3418 = vmul.f32 %v3410, %v3414
    %v3419 = vmul.f32 %v3409, %v3415
    %v3420 = vmul.f32 %v3412, %v3416
    %3421 = vst [vmem:[#allocation2 + $0xe0] sm:$0xff] %v3417
    %3422 = vst [vmem:[#allocation2 + $0xe8] sm:$0xff] %v3418
    %3423 = vst [vmem:[#allocation2 + $0xf0] sm:$0xff] %v3419
    %3424 = vst [vmem:[#allocation2 + $0xf8] sm:$0xff] %v3420
    %3425 = vrot.lane.b32.xlu0 %v3247, 111
    %v3426 = vpop.permute.xlu0 %3425
    %3427 = vrot.lane.b32.xlu0 %v3248, 111
    %v3428 = vpop.permute.xlu0 %3427
    %3429 = vrot.lane.b32.xlu0 %v3249, 111
    %v3430 = vpop.permute.xlu0 %3429
    %3431 = vrot.lane.b32.xlu0 %v3250, 111
    %v3432 = vpop.permute.xlu0 %3431
    %v3433 = vsel %vm245, %v3430, %v3432
    %v3434 = vsel %vm245, %v3428, %v3430
    %v3435 = vsel %vm245, %v3426, %v3428
    %v3436 = vsel %vm245, %v3432, %v3426
    %v3437 = vld [vmem:[#allocation6 + $0x100] sm:$0xff]
    %v3438 = vld [vmem:[#allocation6 + $0x108] sm:$0xff]
    %v3439 = vld [vmem:[#allocation6 + $0x110] sm:$0xff]
    %v3440 = vld [vmem:[#allocation6 + $0x118] sm:$0xff]
    %v3441 = vmul.f32 %v3435, %v3437
    %v3442 = vmul.f32 %v3434, %v3438
    %v3443 = vmul.f32 %v3433, %v3439
    %v3444 = vmul.f32 %v3436, %v3440
    %3445 = vst [vmem:[#allocation2 + $0x100] sm:$0xff] %v3441
    %3446 = vst [vmem:[#allocation2 + $0x108] sm:$0xff] %v3442
    %3447 = vst [vmem:[#allocation2 + $0x110] sm:$0xff] %v3443
    %3448 = vst [vmem:[#allocation2 + $0x118] sm:$0xff] %v3444
    %v3449 = vld [vmem:[#allocation2] sm:$0xff]
    %v3450 = vld [vmem:[#allocation2 + $0x8] sm:$0xff]
    %v3451 = vld [vmem:[#allocation2 + $0x10] sm:$0xff]
    %v3452 = vld [vmem:[#allocation2 + $0x18] sm:$0xff]
    %v3453 = vld [vmem:[#allocation2 + $0x20] sm:$0xff]
    %v3454 = vld [vmem:[#allocation2 + $0x28] sm:$0xff]
    %v3455 = vld [vmem:[#allocation2 + $0x30] sm:$0xff]
    %v3456 = vld [vmem:[#allocation2 + $0x38] sm:$0xff]
    %v3457 = vld [vmem:[#allocation2 + $0x40] sm:$0xff]
    %v3458 = vld [vmem:[#allocation2 + $0x48] sm:$0xff]
    %v3459 = vld [vmem:[#allocation2 + $0x50] sm:$0xff]
    %v3460 = vld [vmem:[#allocation2 + $0x58] sm:$0xff]
    %v3461 = vld [vmem:[#allocation2 + $0x60] sm:$0xff]
    %v3462 = vld [vmem:[#allocation2 + $0x68] sm:$0xff]
    %v3463 = vld [vmem:[#allocation2 + $0x70] sm:$0xff]
    %v3464 = vld [vmem:[#allocation2 + $0x78] sm:$0xff]
    %v3465 = vld [vmem:[#allocation2 + $0x80] sm:$0xff]
    %v3466 = vld [vmem:[#allocation2 + $0x88] sm:$0xff]
    %v3467 = vld [vmem:[#allocation2 + $0x90] sm:$0xff]
    %v3468 = vld [vmem:[#allocation2 + $0x98] sm:$0xff]
    %v3469 = vld [vmem:[#allocation2 + $0xa0] sm:$0xff]
    %v3470 = vld [vmem:[#allocation2 + $0xa8] sm:$0xff]
    %v3471 = vld [vmem:[#allocation2 + $0xb0] sm:$0xff]
    %v3472 = vld [vmem:[#allocation2 + $0xb8] sm:$0xff]
    %v3473 = vld [vmem:[#allocation2 + $0xc0] sm:$0xff]
    %v3474 = vld [vmem:[#allocation2 + $0xc8] sm:$0xff]
    %v3475 = vld [vmem:[#allocation2 + $0xd0] sm:$0xff]
    %v3476 = vld [vmem:[#allocation2 + $0xd8] sm:$0xff]
    %v3477 = vld [vmem:[#allocation2 + $0xe0] sm:$0xff]
    %v3478 = vld [vmem:[#allocation2 + $0xe8] sm:$0xff]
    %v3479 = vld [vmem:[#allocation2 + $0xf0] sm:$0xff]
    %v3480 = vld [vmem:[#allocation2 + $0xf8] sm:$0xff]
    %v3481 = vld [vmem:[#allocation2 + $0x100] sm:$0xff]
    %v3482 = vld [vmem:[#allocation2 + $0x108] sm:$0xff]
    %v3483 = vld [vmem:[#allocation2 + $0x110] sm:$0xff]
    %v3484 = vld [vmem:[#allocation2 + $0x118] sm:$0xff]
    %3486 = vset.pattern.permute.xlu0 0
    %3487 = vperm.xlu0 %3486, %v3252
    %v3488 = vpop.permute.xlu0 %3487
    %v3491 = vsel %vm303, %v3251, 0
    %3493 = vmatprep.subr.mxu0 0.0
    %3494 = vmatpush1.msra.mxu0 0.0
    %3495 = vmatprep.subr.mxu0 0.0
    %3496 = vmatpush1.msra.mxu0 0.0
    %3497 = vmatprep.subr.mxu0 0.0
    %3498 = vmatpush1.msra.mxu0 0.0
    %3499 = vmatprep.subr.mxu0 0.0
    %3500 = vmatpush1.msra.mxu0 0.0
    %3501 = vmatprep.subr.mxu0 0.0
    %3502 = vmatpush1.msra.mxu0 0.0
    %3503 = vmatprep.subr.mxu0 0.0
    %3504 = vmatpush1.msra.mxu0 0.0
    %3505 = vmatprep.subr.mxu0 0.0
    %3506 = vmatpush1.msra.mxu0 0.0
    %v3507 = vand.u32 %v3482, 4294901760
    %3508 = vmatprep.subr.mxu0 %v3507
    %v3509 = vand.u32 %v3481, 4294901760
    %3510 = vmatpush1.msra.mxu0 %v3509
    %v3511 = vand.u32 %v3478, 4294901760
    %3512 = vmatprep.subr.mxu0 %v3511
    %v3513 = vand.u32 %v3477, 4294901760
    %3514 = vmatpush1.msra.mxu0 %v3513
    %v3515 = vand.u32 %v3474, 4294901760
    %3516 = vmatprep.subr.mxu0 %v3515
    %v3517 = vand.u32 %v3473, 4294901760
    %3518 = vmatpush1.msra.mxu0 %v3517
    %v3519 = vand.u32 %v3470, 4294901760
    %3520 = vmatprep.subr.mxu0 %v3519
    %v3521 = vand.u32 %v3469, 4294901760
    %3522 = vmatpush1.msra.mxu0 %v3521
    %v3523 = vand.u32 %v3466, 4294901760
    %3524 = vmatprep.subr.mxu0 %v3523
    %v3525 = vand.u32 %v3465, 4294901760
    %3526 = vmatpush1.msra.mxu0 %v3525
    %v3527 = vand.u32 %v3462, 4294901760
    %3528 = vmatprep.subr.mxu0 %v3527
    %v3529 = vand.u32 %v3461, 4294901760
    %3530 = vmatpush1.msra.mxu0 %v3529
    %v3531 = vand.u32 %v3458, 4294901760
    %3532 = vmatprep.subr.mxu0 %v3531
    %v3533 = vand.u32 %v3457, 4294901760
    %3534 = vmatpush1.msra.mxu0 %v3533
    %v3535 = vand.u32 %v3454, 4294901760
    %3536 = vmatprep.subr.mxu0 %v3535
    %v3537 = vand.u32 %v3453, 4294901760
    %3538 = vmatpush1.msra.mxu0 %v3537
    %v3539 = vand.u32 %v3450, 4294901760
    %3540 = vmatprep.subr.mxu0 %v3539
    %v3541 = vand.u32 %v3449, 4294901760
    %3542 = vmatpush1.msra.mxu0 %v3541
    %3543 = vmatprep.subr.mxu0 0.0
    %3544 = vmatpush2.msra.mxu0 0.0
    %3545 = vmatprep.subr.mxu0 0.0
    %3546 = vmatpush2.msra.mxu0 0.0
    %3547 = vmatprep.subr.mxu0 0.0
    %3548 = vmatpush2.msra.mxu0 0.0
    %3549 = vmatprep.subr.mxu0 0.0
    %3550 = vmatpush2.msra.mxu0 0.0
    %3551 = vmatprep.subr.mxu0 0.0
    %3552 = vmatpush2.msra.mxu0 0.0
    %3553 = vmatprep.subr.mxu0 0.0
    %3554 = vmatpush2.msra.mxu0 0.0
    %3555 = vmatprep.subr.mxu0 0.0
    %3556 = vmatpush2.msra.mxu0 0.0
    %3557 = vmatprep.subr.mxu0 0.0
    %3558 = vmatpush2.msra.mxu0 0.0
    %3559 = vmatprep.subr.mxu0 0.0
    %3560 = vmatpush2.msra.mxu0 0.0
    %3561 = vmatprep.subr.mxu0 0.0
    %3562 = vmatpush2.msra.mxu0 0.0
    %3563 = vmatprep.subr.mxu0 0.0
    %3564 = vmatpush2.msra.mxu0 0.0
    %3565 = vmatprep.subr.mxu0 0.0
    %3566 = vmatpush2.msra.mxu0 0.0
    %3567 = vmatprep.subr.mxu0 0.0
    %3568 = vmatpush2.msra.mxu0 0.0
    %3569 = vmatprep.subr.mxu0 0.0
    %3570 = vmatpush2.msra.mxu0 0.0
    %3571 = vmatprep.subr.mxu0 0.0
    %3572 = vmatpush2.msra.mxu0 0.0
    %3573 = vmatprep.subr.mxu0 0.0
    %3574 = vmatpush2.msra.mxu0 0.0
    %3575 = vmatprep.mubr.f32.mxu0 0.0
    %v3576 = vand.u32 %v3491, 4294901760
    %v3577 = vsub.f32 %v3491, %v3576
    %v3578 = vand.u32 %v3577, 4294901760
    %v3579 = vsub.f32 %v3577, %v3578
    %v3580 = vand.u32 %v3579, 4294901760
    %3581 = vmatmul.mubr.f32.gmra.mxu0 %v3580
    %v3582 = vpop.f32.mrf.mxu0
    %v3583 = vadd.f32 %v3488, %v3582
    %v3584 = vpop.f32.mrf.mxu0
    %v3585 = vadd.f32 %v3488, %v3584
    %3586 = vdwg.mxu0
    %3587 = vmatprep.subr.mxu0 0.0
    %3588 = vmatpush1.msra.mxu0 0.0
    %3589 = vmatprep.subr.mxu0 0.0
    %3590 = vmatpush1.msra.mxu0 0.0
    %3591 = vmatprep.subr.mxu0 0.0
    %3592 = vmatpush1.msra.mxu0 0.0
    %3593 = vmatprep.subr.mxu0 0.0
    %3594 = vmatpush1.msra.mxu0 0.0
    %3595 = vmatprep.subr.mxu0 0.0
    %3596 = vmatpush1.msra.mxu0 0.0
    %3597 = vmatprep.subr.mxu0 0.0
    %3598 = vmatpush1.msra.mxu0 0.0
    %3599 = vmatprep.subr.mxu0 0.0
    %3600 = vmatpush1.msra.mxu0 0.0
    %v3601 = vand.u32 %v3482, 4294901760
    %v3602 = vsub.f32 %v3482, %v3601
    %v3603 = vand.u32 %v3602, 4294901760
    %v3604 = vsub.f32 %v3602, %v3603
    %v3605 = vand.u32 %v3604, 4294901760
    %3606 = vmatprep.subr.mxu0 %v3605
    %v3607 = vand.u32 %v3481, 4294901760
    %v3608 = vsub.f32 %v3481, %v3607
    %v3609 = vand.u32 %v3608, 4294901760
    %v3610 = vsub.f32 %v3608, %v3609
    %v3611 = vand.u32 %v3610, 4294901760
    %3612 = vmatpush1.msra.mxu0 %v3611
    %v3613 = vand.u32 %v3478, 4294901760
    %v3614 = vsub.f32 %v3478, %v3613
    %v3615 = vand.u32 %v3614, 4294901760
    %v3616 = vsub.f32 %v3614, %v3615
    %v3617 = vand.u32 %v3616, 4294901760
    %3618 = vmatprep.subr.mxu0 %v3617
    %v3619 = vand.u32 %v3477, 4294901760
    %v3620 = vsub.f32 %v3477, %v3619
    %v3621 = vand.u32 %v3620, 4294901760
    %v3622 = vsub.f32 %v3620, %v3621
    %v3623 = vand.u32 %v3622, 4294901760
    %3624 = vmatpush1.msra.mxu0 %v3623
    %v3625 = vand.u32 %v3474, 4294901760
    %v3626 = vsub.f32 %v3474, %v3625
    %v3627 = vand.u32 %v3626, 4294901760
    %v3628 = vsub.f32 %v3626, %v3627
    %v3629 = vand.u32 %v3628, 4294901760
    %3630 = vmatprep.subr.mxu0 %v3629
    %v3631 = vand.u32 %v3473, 4294901760
    %v3632 = vsub.f32 %v3473, %v3631
    %v3633 = vand.u32 %v3632, 4294901760
    %v3634 = vsub.f32 %v3632, %v3633
    %v3635 = vand.u32 %v3634, 4294901760
    %3636 = vmatpush1.msra.mxu0 %v3635
    %v3637 = vand.u32 %v3470, 4294901760
    %v3638 = vsub.f32 %v3470, %v3637
    %v3639 = vand.u32 %v3638, 4294901760
    %v3640 = vsub.f32 %v3638, %v3639
    %v3641 = vand.u32 %v3640, 4294901760
    %3642 = vmatprep.subr.mxu0 %v3641
    %v3643 = vand.u32 %v3469, 4294901760
    %v3644 = vsub.f32 %v3469, %v3643
    %v3645 = vand.u32 %v3644, 4294901760
    %v3646 = vsub.f32 %v3644, %v3645
    %v3647 = vand.u32 %v3646, 4294901760
    %3648 = vmatpush1.msra.mxu0 %v3647
    %v3649 = vand.u32 %v3466, 4294901760
    %v3650 = vsub.f32 %v3466, %v3649
    %v3651 = vand.u32 %v3650, 4294901760
    %v3652 = vsub.f32 %v3650, %v3651
    %v3653 = vand.u32 %v3652, 4294901760
    %3654 = vmatprep.subr.mxu0 %v3653
    %v3655 = vand.u32 %v3465, 4294901760
    %v3656 = vsub.f32 %v3465, %v3655
    %v3657 = vand.u32 %v3656, 4294901760
    %v3658 = vsub.f32 %v3656, %v3657
    %v3659 = vand.u32 %v3658, 4294901760
    %3660 = vmatpush1.msra.mxu0 %v3659
    %v3661 = vand.u32 %v3462, 4294901760
    %v3662 = vsub.f32 %v3462, %v3661
    %v3663 = vand.u32 %v3662, 4294901760
    %v3664 = vsub.f32 %v3662, %v3663
    %v3665 = vand.u32 %v3664, 4294901760
    %3666 = vmatprep.subr.mxu0 %v3665
    %v3667 = vand.u32 %v3461, 4294901760
    %v3668 = vsub.f32 %v3461, %v3667
    %v3669 = vand.u32 %v3668, 4294901760
    %v3670 = vsub.f32 %v3668, %v3669
    %v3671 = vand.u32 %v3670, 4294901760
    %3672 = vmatpush1.msra.mxu0 %v3671
    %v3673 = vand.u32 %v3458, 4294901760
    %v3674 = vsub.f32 %v3458, %v3673
    %v3675 = vand.u32 %v3674, 4294901760
    %v3676 = vsub.f32 %v3674, %v3675
    %v3677 = vand.u32 %v3676, 4294901760
    %3678 = vmatprep.subr.mxu0 %v3677
    %v3679 = vand.u32 %v3457, 4294901760
    %v3680 = vsub.f32 %v3457, %v3679
    %v3681 = vand.u32 %v3680, 4294901760
    %v3682 = vsub.f32 %v3680, %v3681
    %v3683 = vand.u32 %v3682, 4294901760
    %3684 = vmatpush1.msra.mxu0 %v3683
    %v3685 = vand.u32 %v3454, 4294901760
    %v3686 = vsub.f32 %v3454, %v3685
    %v3687 = vand.u32 %v3686, 4294901760
    %v3688 = vsub.f32 %v3686, %v3687
    %v3689 = vand.u32 %v3688, 4294901760
    %3690 = vmatprep.subr.mxu0 %v3689
    %v3691 = vand.u32 %v3453, 4294901760
    %v3692 = vsub.f32 %v3453, %v3691
    %v3693 = vand.u32 %v3692, 4294901760
    %v3694 = vsub.f32 %v3692, %v3693
    %v3695 = vand.u32 %v3694, 4294901760
    %3696 = vmatpush1.msra.mxu0 %v3695
    %v3697 = vand.u32 %v3450, 4294901760
    %v3698 = vsub.f32 %v3450, %v3697
    %v3699 = vand.u32 %v3698, 4294901760
    %v3700 = vsub.f32 %v3698, %v3699
    %v3701 = vand.u32 %v3700, 4294901760
    %3702 = vmatprep.subr.mxu0 %v3701
    %v3703 = vand.u32 %v3449, 4294901760
    %v3704 = vsub.f32 %v3449, %v3703
    %v3705 = vand.u32 %v3704, 4294901760
    %v3706 = vsub.f32 %v3704, %v3705
    %v3707 = vand.u32 %v3706, 4294901760
    %3708 = vmatpush1.msra.mxu0 %v3707
    %3709 = vmatprep.subr.mxu0 0.0
    %3710 = vmatpush2.msra.mxu0 0.0
    %3711 = vmatprep.subr.mxu0 0.0
    %3712 = vmatpush2.msra.mxu0 0.0
    %3713 = vmatprep.subr.mxu0 0.0
    %3714 = vmatpush2.msra.mxu0 0.0
    %3715 = vmatprep.subr.mxu0 0.0
    %3716 = vmatpush2.msra.mxu0 0.0
    %3717 = vmatprep.subr.mxu0 0.0
    %3718 = vmatpush2.msra.mxu0 0.0
    %3719 = vmatprep.subr.mxu0 0.0
    %3720 = vmatpush2.msra.mxu0 0.0
    %3721 = vmatprep.subr.mxu0 0.0
    %3722 = vmatpush2.msra.mxu0 0.0
    %3723 = vmatprep.subr.mxu0 0.0
    %3724 = vmatpush2.msra.mxu0 0.0
    %3725 = vmatprep.subr.mxu0 0.0
    %3726 = vmatpush2.msra.mxu0 0.0
    %3727 = vmatprep.subr.mxu0 0.0
    %3728 = vmatpush2.msra.mxu0 0.0
    %3729 = vmatprep.subr.mxu0 0.0
    %3730 = vmatpush2.msra.mxu0 0.0
    %3731 = vmatprep.subr.mxu0 0.0
    %3732 = vmatpush2.msra.mxu0 0.0
    %3733 = vmatprep.subr.mxu0 0.0
    %3734 = vmatpush2.msra.mxu0 0.0
    %3735 = vmatprep.subr.mxu0 0.0
    %3736 = vmatpush2.msra.mxu0 0.0
    %3737 = vmatprep.subr.mxu0 0.0
    %3738 = vmatpush2.msra.mxu0 0.0
    %3739 = vmatprep.subr.mxu0 0.0
    %3740 = vmatpush2.msra.mxu0 0.0
    %3741 = vmatprep.mubr.f32.mxu0 0.0
    %v3742 = vand.u32 %v3491, 4294901760
    %3743 = vmatmul.mubr.f32.gmra.mxu0 %v3742
    %v3744 = vpop.f32.mrf.mxu0
    %v3745 = vadd.f32 %v3583, %v3744
    %v3746 = vpop.f32.mrf.mxu0
    %v3747 = vadd.f32 %v3585, %v3746
    %3748 = vdwg.mxu0
    %3749 = vmatprep.subr.mxu0 0.0
    %3750 = vmatpush1.msra.mxu0 0.0
    %3751 = vmatprep.subr.mxu0 0.0
    %3752 = vmatpush1.msra.mxu0 0.0
    %3753 = vmatprep.subr.mxu0 0.0
    %3754 = vmatpush1.msra.mxu0 0.0
    %3755 = vmatprep.subr.mxu0 0.0
    %3756 = vmatpush1.msra.mxu0 0.0
    %3757 = vmatprep.subr.mxu0 0.0
    %3758 = vmatpush1.msra.mxu0 0.0
    %3759 = vmatprep.subr.mxu0 0.0
    %3760 = vmatpush1.msra.mxu0 0.0
    %3761 = vmatprep.subr.mxu0 0.0
    %3762 = vmatpush1.msra.mxu0 0.0
    %v3763 = vand.u32 %v3482, 4294901760
    %v3764 = vsub.f32 %v3482, %v3763
    %3765 = vmatprep.subr.mxu0 %v3764
    %v3766 = vand.u32 %v3481, 4294901760
    %v3767 = vsub.f32 %v3481, %v3766
    %3768 = vmatpush1.msra.mxu0 %v3767
    %v3769 = vand.u32 %v3478, 4294901760
    %v3770 = vsub.f32 %v3478, %v3769
    %3771 = vmatprep.subr.mxu0 %v3770
    %v3772 = vand.u32 %v3477, 4294901760
    %v3773 = vsub.f32 %v3477, %v3772
    %3774 = vmatpush1.msra.mxu0 %v3773
    %v3775 = vand.u32 %v3474, 4294901760
    %v3776 = vsub.f32 %v3474, %v3775
    %3777 = vmatprep.subr.mxu0 %v3776
    %v3778 = vand.u32 %v3473, 4294901760
    %v3779 = vsub.f32 %v3473, %v3778
    %3780 = vmatpush1.msra.mxu0 %v3779
    %v3781 = vand.u32 %v3470, 4294901760
    %v3782 = vsub.f32 %v3470, %v3781
    %3783 = vmatprep.subr.mxu0 %v3782
    %v3784 = vand.u32 %v3469, 4294901760
    %v3785 = vsub.f32 %v3469, %v3784
    %3786 = vmatpush1.msra.mxu0 %v3785
    %v3787 = vand.u32 %v3466, 4294901760
    %v3788 = vsub.f32 %v3466, %v3787
    %3789 = vmatprep.subr.mxu0 %v3788
    %v3790 = vand.u32 %v3465, 4294901760
    %v3791 = vsub.f32 %v3465, %v3790
    %3792 = vmatpush1.msra.mxu0 %v3791
    %v3793 = vand.u32 %v3462, 4294901760
    %v3794 = vsub.f32 %v3462, %v3793
    %3795 = vmatprep.subr.mxu0 %v3794
    %v3796 = vand.u32 %v3461, 4294901760
    %v3797 = vsub.f32 %v3461, %v3796
    %3798 = vmatpush1.msra.mxu0 %v3797
    %v3799 = vand.u32 %v3458, 4294901760
    %v3800 = vsub.f32 %v3458, %v3799
    %3801 = vmatprep.subr.mxu0 %v3800
    %v3802 = vand.u32 %v3457, 4294901760
    %v3803 = vsub.f32 %v3457, %v3802
    %3804 = vmatpush1.msra.mxu0 %v3803
    %v3805 = vand.u32 %v3454, 4294901760
    %v3806 = vsub.f32 %v3454, %v3805
    %3807 = vmatprep.subr.mxu0 %v3806
    %v3808 = vand.u32 %v3453, 4294901760
    %v3809 = vsub.f32 %v3453, %v3808
    %3810 = vmatpush1.msra.mxu0 %v3809
    %v3811 = vand.u32 %v3450, 4294901760
    %v3812 = vsub.f32 %v3450, %v3811
    %3813 = vmatprep.subr.mxu0 %v3812
    %v3814 = vand.u32 %v3449, 4294901760
    %v3815 = vsub.f32 %v3449, %v3814
    %3816 = vmatpush1.msra.mxu0 %v3815
    %3817 = vmatprep.subr.mxu0 0.0
    %3818 = vmatpush2.msra.mxu0 0.0
    %3819 = vmatprep.subr.mxu0 0.0
    %3820 = vmatpush2.msra.mxu0 0.0
    %3821 = vmatprep.subr.mxu0 0.0
    %3822 = vmatpush2.msra.mxu0 0.0
    %3823 = vmatprep.subr.mxu0 0.0
    %3824 = vmatpush2.msra.mxu0 0.0
    %3825 = vmatprep.subr.mxu0 0.0
    %3826 = vmatpush2.msra.mxu0 0.0
    %3827 = vmatprep.subr.mxu0 0.0
    %3828 = vmatpush2.msra.mxu0 0.0
    %3829 = vmatprep.subr.mxu0 0.0
    %3830 = vmatpush2.msra.mxu0 0.0
    %3831 = vmatprep.subr.mxu0 0.0
    %3832 = vmatpush2.msra.mxu0 0.0
    %3833 = vmatprep.subr.mxu0 0.0
    %3834 = vmatpush2.msra.mxu0 0.0
    %3835 = vmatprep.subr.mxu0 0.0
    %3836 = vmatpush2.msra.mxu0 0.0
    %3837 = vmatprep.subr.mxu0 0.0
    %3838 = vmatpush2.msra.mxu0 0.0
    %3839 = vmatprep.subr.mxu0 0.0
    %3840 = vmatpush2.msra.mxu0 0.0
    %3841 = vmatprep.subr.mxu0 0.0
    %3842 = vmatpush2.msra.mxu0 0.0
    %3843 = vmatprep.subr.mxu0 0.0
    %3844 = vmatpush2.msra.mxu0 0.0
    %3845 = vmatprep.subr.mxu0 0.0
    %3846 = vmatpush2.msra.mxu0 0.0
    %3847 = vmatprep.subr.mxu0 0.0
    %3848 = vmatpush2.msra.mxu0 0.0
    %3849 = vmatprep.mubr.f32.mxu0 0.0
    %v3850 = vand.u32 %v3491, 4294901760
    %v3851 = vsub.f32 %v3491, %v3850
    %3852 = vmatmul.mubr.f32.gmra.mxu0 %v3851
    %v3853 = vpop.f32.mrf.mxu0
    %v3854 = vadd.f32 %v3745, %v3853
    %v3855 = vpop.f32.mrf.mxu0
    %v3856 = vadd.f32 %v3747, %v3855
    %3857 = vdwg.mxu0
    %3858 = vmatprep.subr.mxu0 0.0
    %3859 = vmatpush1.msra.mxu0 0.0
    %3860 = vmatprep.subr.mxu0 0.0
    %3861 = vmatpush1.msra.mxu0 0.0
    %3862 = vmatprep.subr.mxu0 0.0
    %3863 = vmatpush1.msra.mxu0 0.0
    %3864 = vmatprep.subr.mxu0 0.0
    %3865 = vmatpush1.msra.mxu0 0.0
    %3866 = vmatprep.subr.mxu0 0.0
    %3867 = vmatpush1.msra.mxu0 0.0
    %3868 = vmatprep.subr.mxu0 0.0
    %3869 = vmatpush1.msra.mxu0 0.0
    %3870 = vmatprep.subr.mxu0 0.0
    %3871 = vmatpush1.msra.mxu0 0.0
    %v3872 = vand.u32 %v3482, 4294901760
    %3873 = vmatprep.subr.mxu0 %v3872
    %v3874 = vand.u32 %v3481, 4294901760
    %3875 = vmatpush1.msra.mxu0 %v3874
    %v3876 = vand.u32 %v3478, 4294901760
    %3877 = vmatprep.subr.mxu0 %v3876
    %v3878 = vand.u32 %v3477, 4294901760
    %3879 = vmatpush1.msra.mxu0 %v3878
    %v3880 = vand.u32 %v3474, 4294901760
    %3881 = vmatprep.subr.mxu0 %v3880
    %v3882 = vand.u32 %v3473, 4294901760
    %3883 = vmatpush1.msra.mxu0 %v3882
    %v3884 = vand.u32 %v3470, 4294901760
    %3885 = vmatprep.subr.mxu0 %v3884
    %v3886 = vand.u32 %v3469, 4294901760
    %3887 = vmatpush1.msra.mxu0 %v3886
    %v3888 = vand.u32 %v3466, 4294901760
    %3889 = vmatprep.subr.mxu0 %v3888
    %v3890 = vand.u32 %v3465, 4294901760
    %3891 = vmatpush1.msra.mxu0 %v3890
    %v3892 = vand.u32 %v3462, 4294901760
    %3893 = vmatprep.subr.mxu0 %v3892
    %v3894 = vand.u32 %v3461, 4294901760
    %3895 = vmatpush1.msra.mxu0 %v3894
    %v3896 = vand.u32 %v3458, 4294901760
    %3897 = vmatprep.subr.mxu0 %v3896
    %v3898 = vand.u32 %v3457, 4294901760
    %3899 = vmatpush1.msra.mxu0 %v3898
    %v3900 = vand.u32 %v3454, 4294901760
    %3901 = vmatprep.subr.mxu0 %v3900
    %v3902 = vand.u32 %v3453, 4294901760
    %3903 = vmatpush1.msra.mxu0 %v3902
    %v3904 = vand.u32 %v3450, 4294901760
    %3905 = vmatprep.subr.mxu0 %v3904
    %v3906 = vand.u32 %v3449, 4294901760
    %3907 = vmatpush1.msra.mxu0 %v3906
    %3908 = vmatprep.subr.mxu0 0.0
    %3909 = vmatpush2.msra.mxu0 0.0
    %3910 = vmatprep.subr.mxu0 0.0
    %3911 = vmatpush2.msra.mxu0 0.0
    %3912 = vmatprep.subr.mxu0 0.0
    %3913 = vmatpush2.msra.mxu0 0.0
    %3914 = vmatprep.subr.mxu0 0.0
    %3915 = vmatpush2.msra.mxu0 0.0
    %3916 = vmatprep.subr.mxu0 0.0
    %3917 = vmatpush2.msra.mxu0 0.0
    %3918 = vmatprep.subr.mxu0 0.0
    %3919 = vmatpush2.msra.mxu0 0.0
    %3920 = vmatprep.subr.mxu0 0.0
    %3921 = vmatpush2.msra.mxu0 0.0
    %3922 = vmatprep.subr.mxu0 0.0
    %3923 = vmatpush2.msra.mxu0 0.0
    %3924 = vmatprep.subr.mxu0 0.0
    %3925 = vmatpush2.msra.mxu0 0.0
    %3926 = vmatprep.subr.mxu0 0.0
    %3927 = vmatpush2.msra.mxu0 0.0
    %3928 = vmatprep.subr.mxu0 0.0
    %3929 = vmatpush2.msra.mxu0 0.0
    %3930 = vmatprep.subr.mxu0 0.0
    %3931 = vmatpush2.msra.mxu0 0.0
    %3932 = vmatprep.subr.mxu0 0.0
    %3933 = vmatpush2.msra.mxu0 0.0
    %3934 = vmatprep.subr.mxu0 0.0
    %3935 = vmatpush2.msra.mxu0 0.0
    %3936 = vmatprep.subr.mxu0 0.0
    %3937 = vmatpush2.msra.mxu0 0.0
    %3938 = vmatprep.subr.mxu0 0.0
    %3939 = vmatpush2.msra.mxu0 0.0
    %3940 = vmatprep.mubr.f32.mxu0 0.0
    %v3941 = vand.u32 %v3491, 4294901760
    %v3942 = vsub.f32 %v3491, %v3941
    %v3943 = vand.u32 %v3942, 4294901760
    %3944 = vmatmul.mubr.f32.gmra.mxu0 %v3943
    %v3945 = vpop.f32.mrf.mxu0
    %v3946 = vadd.f32 %v3854, %v3945
    %v3947 = vpop.f32.mrf.mxu0
    %v3948 = vadd.f32 %v3856, %v3947
    %3949 = vdwg.mxu0
    %3950 = vmatprep.subr.mxu0 0.0
    %3951 = vmatpush1.msra.mxu0 0.0
    %3952 = vmatprep.subr.mxu0 0.0
    %3953 = vmatpush1.msra.mxu0 0.0
    %3954 = vmatprep.subr.mxu0 0.0
    %3955 = vmatpush1.msra.mxu0 0.0
    %3956 = vmatprep.subr.mxu0 0.0
    %3957 = vmatpush1.msra.mxu0 0.0
    %3958 = vmatprep.subr.mxu0 0.0
    %3959 = vmatpush1.msra.mxu0 0.0
    %3960 = vmatprep.subr.mxu0 0.0
    %3961 = vmatpush1.msra.mxu0 0.0
    %3962 = vmatprep.subr.mxu0 0.0
    %3963 = vmatpush1.msra.mxu0 0.0
    %v3964 = vand.u32 %v3482, 4294901760
    %v3965 = vsub.f32 %v3482, %v3964
    %v3966 = vand.u32 %v3965, 4294901760
    %3967 = vmatprep.subr.mxu0 %v3966
    %v3968 = vand.u32 %v3481, 4294901760
    %v3969 = vsub.f32 %v3481, %v3968
    %v3970 = vand.u32 %v3969, 4294901760
    %3971 = vmatpush1.msra.mxu0 %v3970
    %v3972 = vand.u32 %v3478, 4294901760
    %v3973 = vsub.f32 %v3478, %v3972
    %v3974 = vand.u32 %v3973, 4294901760
    %3975 = vmatprep.subr.mxu0 %v3974
    %v3976 = vand.u32 %v3477, 4294901760
    %v3977 = vsub.f32 %v3477, %v3976
    %v3978 = vand.u32 %v3977, 4294901760
    %3979 = vmatpush1.msra.mxu0 %v3978
    %v3980 = vand.u32 %v3474, 4294901760
    %v3981 = vsub.f32 %v3474, %v3980
    %v3982 = vand.u32 %v3981, 4294901760
    %3983 = vmatprep.subr.mxu0 %v3982
    %v3984 = vand.u32 %v3473, 4294901760
    %v3985 = vsub.f32 %v3473, %v3984
    %v3986 = vand.u32 %v3985, 4294901760
    %3987 = vmatpush1.msra.mxu0 %v3986
    %v3988 = vand.u32 %v3470, 4294901760
    %v3989 = vsub.f32 %v3470, %v3988
    %v3990 = vand.u32 %v3989, 4294901760
    %3991 = vmatprep.subr.mxu0 %v3990
    %v3992 = vand.u32 %v3469, 4294901760
    %v3993 = vsub.f32 %v3469, %v3992
    %v3994 = vand.u32 %v3993, 4294901760
    %3995 = vmatpush1.msra.mxu0 %v3994
    %v3996 = vand.u32 %v3466, 4294901760
    %v3997 = vsub.f32 %v3466, %v3996
    %v3998 = vand.u32 %v3997, 4294901760
    %3999 = vmatprep.subr.mxu0 %v3998
    %v4000 = vand.u32 %v3465, 4294901760
    %v4001 = vsub.f32 %v3465, %v4000
    %v4002 = vand.u32 %v4001, 4294901760
    %4003 = vmatpush1.msra.mxu0 %v4002
    %v4004 = vand.u32 %v3462, 4294901760
    %v4005 = vsub.f32 %v3462, %v4004
    %v4006 = vand.u32 %v4005, 4294901760
    %4007 = vmatprep.subr.mxu0 %v4006
    %v4008 = vand.u32 %v3461, 4294901760
    %v4009 = vsub.f32 %v3461, %v4008
    %v4010 = vand.u32 %v4009, 4294901760
    %4011 = vmatpush1.msra.mxu0 %v4010
    %v4012 = vand.u32 %v3458, 4294901760
    %v4013 = vsub.f32 %v3458, %v4012
    %v4014 = vand.u32 %v4013, 4294901760
    %4015 = vmatprep.subr.mxu0 %v4014
    %v4016 = vand.u32 %v3457, 4294901760
    %v4017 = vsub.f32 %v3457, %v4016
    %v4018 = vand.u32 %v4017, 4294901760
    %4019 = vmatpush1.msra.mxu0 %v4018
    %v4020 = vand.u32 %v3454, 4294901760
    %v4021 = vsub.f32 %v3454, %v4020
    %v4022 = vand.u32 %v4021, 4294901760
    %4023 = vmatprep.subr.mxu0 %v4022
    %v4024 = vand.u32 %v3453, 4294901760
    %v4025 = vsub.f32 %v3453, %v4024
    %v4026 = vand.u32 %v4025, 4294901760
    %4027 = vmatpush1.msra.mxu0 %v4026
    %v4028 = vand.u32 %v3450, 4294901760
    %v4029 = vsub.f32 %v3450, %v4028
    %v4030 = vand.u32 %v4029, 4294901760
    %4031 = vmatprep.subr.mxu0 %v4030
    %v4032 = vand.u32 %v3449, 4294901760
    %v4033 = vsub.f32 %v3449, %v4032
    %v4034 = vand.u32 %v4033, 4294901760
    %4035 = vmatpush1.msra.mxu0 %v4034
    %4036 = vmatprep.subr.mxu0 0.0
    %4037 = vmatpush2.msra.mxu0 0.0
    %4038 = vmatprep.subr.mxu0 0.0
    %4039 = vmatpush2.msra.mxu0 0.0
    %4040 = vmatprep.subr.mxu0 0.0
    %4041 = vmatpush2.msra.mxu0 0.0
    %4042 = vmatprep.subr.mxu0 0.0
    %4043 = vmatpush2.msra.mxu0 0.0
    %4044 = vmatprep.subr.mxu0 0.0
    %4045 = vmatpush2.msra.mxu0 0.0
    %4046 = vmatprep.subr.mxu0 0.0
    %4047 = vmatpush2.msra.mxu0 0.0
    %4048 = vmatprep.subr.mxu0 0.0
    %4049 = vmatpush2.msra.mxu0 0.0
    %4050 = vmatprep.subr.mxu0 0.0
    %4051 = vmatpush2.msra.mxu0 0.0
    %4052 = vmatprep.subr.mxu0 0.0
    %4053 = vmatpush2.msra.mxu0 0.0
    %4054 = vmatprep.subr.mxu0 0.0
    %4055 = vmatpush2.msra.mxu0 0.0
    %4056 = vmatprep.subr.mxu0 0.0
    %4057 = vmatpush2.msra.mxu0 0.0
    %4058 = vmatprep.subr.mxu0 0.0
    %4059 = vmatpush2.msra.mxu0 0.0
    %4060 = vmatprep.subr.mxu0 0.0
    %4061 = vmatpush2.msra.mxu0 0.0
    %4062 = vmatprep.subr.mxu0 0.0
    %4063 = vmatpush2.msra.mxu0 0.0
    %4064 = vmatprep.subr.mxu0 0.0
    %4065 = vmatpush2.msra.mxu0 0.0
    %4066 = vmatprep.subr.mxu0 0.0
    %4067 = vmatpush2.msra.mxu0 0.0
    %4068 = vmatprep.mubr.f32.mxu0 0.0
    %v4069 = vand.u32 %v3491, 4294901760
    %4070 = vmatmul.mubr.f32.gmra.mxu0 %v4069
    %v4071 = vpop.f32.mrf.mxu0
    %v4072 = vadd.f32 %v3946, %v4071
    %v4073 = vpop.f32.mrf.mxu0
    %v4074 = vadd.f32 %v3948, %v4073
    %4075 = vdwg.mxu0
    %4076 = vmatprep.subr.mxu0 0.0
    %4077 = vmatpush1.msra.mxu0 0.0
    %4078 = vmatprep.subr.mxu0 0.0
    %4079 = vmatpush1.msra.mxu0 0.0
    %4080 = vmatprep.subr.mxu0 0.0
    %4081 = vmatpush1.msra.mxu0 0.0
    %4082 = vmatprep.subr.mxu0 0.0
    %4083 = vmatpush1.msra.mxu0 0.0
    %4084 = vmatprep.subr.mxu0 0.0
    %4085 = vmatpush1.msra.mxu0 0.0
    %4086 = vmatprep.subr.mxu0 0.0
    %4087 = vmatpush1.msra.mxu0 0.0
    %4088 = vmatprep.subr.mxu0 0.0
    %4089 = vmatpush1.msra.mxu0 0.0
    %v4090 = vand.u32 %v3482, 4294901760
    %4091 = vmatprep.subr.mxu0 %v4090
    %v4092 = vand.u32 %v3481, 4294901760
    %4093 = vmatpush1.msra.mxu0 %v4092
    %v4094 = vand.u32 %v3478, 4294901760
    %4095 = vmatprep.subr.mxu0 %v4094
    %v4096 = vand.u32 %v3477, 4294901760
    %4097 = vmatpush1.msra.mxu0 %v4096
    %v4098 = vand.u32 %v3474, 4294901760
    %4099 = vmatprep.subr.mxu0 %v4098
    %v4100 = vand.u32 %v3473, 4294901760
    %4101 = vmatpush1.msra.mxu0 %v4100
    %v4102 = vand.u32 %v3470, 4294901760
    %4103 = vmatprep.subr.mxu0 %v4102
    %v4104 = vand.u32 %v3469, 4294901760
    %4105 = vmatpush1.msra.mxu0 %v4104
    %v4106 = vand.u32 %v3466, 4294901760
    %4107 = vmatprep.subr.mxu0 %v4106
    %v4108 = vand.u32 %v3465, 4294901760
    %4109 = vmatpush1.msra.mxu0 %v4108
    %v4110 = vand.u32 %v3462, 4294901760
    %4111 = vmatprep.subr.mxu0 %v4110
    %v4112 = vand.u32 %v3461, 4294901760
    %4113 = vmatpush1.msra.mxu0 %v4112
    %v4114 = vand.u32 %v3458, 4294901760
    %4115 = vmatprep.subr.mxu0 %v4114
    %v4116 = vand.u32 %v3457, 4294901760
    %4117 = vmatpush1.msra.mxu0 %v4116
    %v4118 = vand.u32 %v3454, 4294901760
    %4119 = vmatprep.subr.mxu0 %v4118
    %v4120 = vand.u32 %v3453, 4294901760
    %4121 = vmatpush1.msra.mxu0 %v4120
    %v4122 = vand.u32 %v3450, 4294901760
    %4123 = vmatprep.subr.mxu0 %v4122
    %v4124 = vand.u32 %v3449, 4294901760
    %4125 = vmatpush1.msra.mxu0 %v4124
    %4126 = vmatprep.subr.mxu0 0.0
    %4127 = vmatpush2.msra.mxu0 0.0
    %4128 = vmatprep.subr.mxu0 0.0
    %4129 = vmatpush2.msra.mxu0 0.0
    %4130 = vmatprep.subr.mxu0 0.0
    %4131 = vmatpush2.msra.mxu0 0.0
    %4132 = vmatprep.subr.mxu0 0.0
    %4133 = vmatpush2.msra.mxu0 0.0
    %4134 = vmatprep.subr.mxu0 0.0
    %4135 = vmatpush2.msra.mxu0 0.0
    %4136 = vmatprep.subr.mxu0 0.0
    %4137 = vmatpush2.msra.mxu0 0.0
    %4138 = vmatprep.subr.mxu0 0.0
    %4139 = vmatpush2.msra.mxu0 0.0
    %4140 = vmatprep.subr.mxu0 0.0
    %4141 = vmatpush2.msra.mxu0 0.0
    %4142 = vmatprep.subr.mxu0 0.0
    %4143 = vmatpush2.msra.mxu0 0.0
    %4144 = vmatprep.subr.mxu0 0.0
    %4145 = vmatpush2.msra.mxu0 0.0
    %4146 = vmatprep.subr.mxu0 0.0
    %4147 = vmatpush2.msra.mxu0 0.0
    %4148 = vmatprep.subr.mxu0 0.0
    %4149 = vmatpush2.msra.mxu0 0.0
    %4150 = vmatprep.subr.mxu0 0.0
    %4151 = vmatpush2.msra.mxu0 0.0
    %4152 = vmatprep.subr.mxu0 0.0
    %4153 = vmatpush2.msra.mxu0 0.0
    %4154 = vmatprep.subr.mxu0 0.0
    %4155 = vmatpush2.msra.mxu0 0.0
    %4156 = vmatprep.subr.mxu0 0.0
    %4157 = vmatpush2.msra.mxu0 0.0
    %4158 = vmatprep.mubr.f32.mxu0 0.0
    %v4159 = vand.u32 %v3491, 4294901760
    %4160 = vmatmul.mubr.f32.gmra.mxu0 %v4159
    %v4161 = vpop.f32.mrf.mxu0
    %v4162 = vadd.f32 %v4072, %v4161
    %v4163 = vpop.f32.mrf.mxu0
    %v4164 = vadd.f32 %v4074, %v4163
    %4165 = vdwg.mxu0
    %4166 = vmatprep.subr.mxu0 0.0
    %4167 = vmatpush1.msra.mxu0 0.0
    %4168 = vmatprep.subr.mxu0 0.0
    %4169 = vmatpush1.msra.mxu0 0.0
    %4170 = vmatprep.subr.mxu0 0.0
    %4171 = vmatpush1.msra.mxu0 0.0
    %4172 = vmatprep.subr.mxu0 0.0
    %4173 = vmatpush1.msra.mxu0 0.0
    %4174 = vmatprep.subr.mxu0 0.0
    %4175 = vmatpush1.msra.mxu0 0.0
    %4176 = vmatprep.subr.mxu0 0.0
    %4177 = vmatpush1.msra.mxu0 0.0
    %4178 = vmatprep.subr.mxu0 0.0
    %4179 = vmatpush1.msra.mxu0 0.0
    %v4180 = vand.u32 %v3484, 4294901760
    %4181 = vmatprep.subr.mxu0 %v4180
    %v4182 = vand.u32 %v3483, 4294901760
    %4183 = vmatpush1.msra.mxu0 %v4182
    %v4184 = vand.u32 %v3480, 4294901760
    %4185 = vmatprep.subr.mxu0 %v4184
    %v4186 = vand.u32 %v3479, 4294901760
    %4187 = vmatpush1.msra.mxu0 %v4186
    %v4188 = vand.u32 %v3476, 4294901760
    %4189 = vmatprep.subr.mxu0 %v4188
    %v4190 = vand.u32 %v3475, 4294901760
    %4191 = vmatpush1.msra.mxu0 %v4190
    %v4192 = vand.u32 %v3472, 4294901760
    %4193 = vmatprep.subr.mxu0 %v4192
    %v4194 = vand.u32 %v3471, 4294901760
    %4195 = vmatpush1.msra.mxu0 %v4194
    %v4196 = vand.u32 %v3468, 4294901760
    %4197 = vmatprep.subr.mxu0 %v4196
    %v4198 = vand.u32 %v3467, 4294901760
    %4199 = vmatpush1.msra.mxu0 %v4198
    %v4200 = vand.u32 %v3464, 4294901760
    %4201 = vmatprep.subr.mxu0 %v4200
    %v4202 = vand.u32 %v3463, 4294901760
    %4203 = vmatpush1.msra.mxu0 %v4202
    %v4204 = vand.u32 %v3460, 4294901760
    %4205 = vmatprep.subr.mxu0 %v4204
    %v4206 = vand.u32 %v3459, 4294901760
    %4207 = vmatpush1.msra.mxu0 %v4206
    %v4208 = vand.u32 %v3456, 4294901760
    %4209 = vmatprep.subr.mxu0 %v4208
    %v4210 = vand.u32 %v3455, 4294901760
    %4211 = vmatpush1.msra.mxu0 %v4210
    %v4212 = vand.u32 %v3452, 4294901760
    %4213 = vmatprep.subr.mxu0 %v4212
    %v4214 = vand.u32 %v3451, 4294901760
    %4215 = vmatpush1.msra.mxu0 %v4214
    %4216 = vmatprep.subr.mxu0 0.0
    %4217 = vmatpush2.msra.mxu0 0.0
    %4218 = vmatprep.subr.mxu0 0.0
    %4219 = vmatpush2.msra.mxu0 0.0
    %4220 = vmatprep.subr.mxu0 0.0
    %4221 = vmatpush2.msra.mxu0 0.0
    %4222 = vmatprep.subr.mxu0 0.0
    %4223 = vmatpush2.msra.mxu0 0.0
    %4224 = vmatprep.subr.mxu0 0.0
    %4225 = vmatpush2.msra.mxu0 0.0
    %4226 = vmatprep.subr.mxu0 0.0
    %4227 = vmatpush2.msra.mxu0 0.0
    %4228 = vmatprep.subr.mxu0 0.0
    %4229 = vmatpush2.msra.mxu0 0.0
    %4230 = vmatprep.subr.mxu0 0.0
    %4231 = vmatpush2.msra.mxu0 0.0
    %4232 = vmatprep.subr.mxu0 0.0
    %4233 = vmatpush2.msra.mxu0 0.0
    %4234 = vmatprep.subr.mxu0 0.0
    %4235 = vmatpush2.msra.mxu0 0.0
    %4236 = vmatprep.subr.mxu0 0.0
    %4237 = vmatpush2.msra.mxu0 0.0
    %4238 = vmatprep.subr.mxu0 0.0
    %4239 = vmatpush2.msra.mxu0 0.0
    %4240 = vmatprep.subr.mxu0 0.0
    %4241 = vmatpush2.msra.mxu0 0.0
    %4242 = vmatprep.subr.mxu0 0.0
    %4243 = vmatpush2.msra.mxu0 0.0
    %4244 = vmatprep.subr.mxu0 0.0
    %4245 = vmatpush2.msra.mxu0 0.0
    %4246 = vmatprep.subr.mxu0 0.0
    %4247 = vmatpush2.msra.mxu0 0.0
    %4248 = vmatprep.mubr.f32.mxu0 0.0
    %v4249 = vand.u32 %v3491, 4294901760
    %v4250 = vsub.f32 %v3491, %v4249
    %v4251 = vand.u32 %v4250, 4294901760
    %v4252 = vsub.f32 %v4250, %v4251
    %v4253 = vand.u32 %v4252, 4294901760
    %4254 = vmatmul.mubr.f32.gmra.mxu0 %v4253
    %v4255 = vpop.f32.mrf.mxu0
    %v4256 = vadd.f32 %v3488, %v4255
    %v4257 = vpop.f32.mrf.mxu0
    %v4258 = vadd.f32 %v3488, %v4257
    %4259 = vdwg.mxu0
    %4260 = vmatprep.subr.mxu0 0.0
    %4261 = vmatpush1.msra.mxu0 0.0
    %4262 = vmatprep.subr.mxu0 0.0
    %4263 = vmatpush1.msra.mxu0 0.0
    %4264 = vmatprep.subr.mxu0 0.0
    %4265 = vmatpush1.msra.mxu0 0.0
    %4266 = vmatprep.subr.mxu0 0.0
    %4267 = vmatpush1.msra.mxu0 0.0
    %4268 = vmatprep.subr.mxu0 0.0
    %4269 = vmatpush1.msra.mxu0 0.0
    %4270 = vmatprep.subr.mxu0 0.0
    %4271 = vmatpush1.msra.mxu0 0.0
    %4272 = vmatprep.subr.mxu0 0.0
    %4273 = vmatpush1.msra.mxu0 0.0
    %v4274 = vand.u32 %v3484, 4294901760
    %v4275 = vsub.f32 %v3484, %v4274
    %v4276 = vand.u32 %v4275, 4294901760
    %v4277 = vsub.f32 %v4275, %v4276
    %v4278 = vand.u32 %v4277, 4294901760
    %4279 = vmatprep.subr.mxu0 %v4278
    %v4280 = vand.u32 %v3483, 4294901760
    %v4281 = vsub.f32 %v3483, %v4280
    %v4282 = vand.u32 %v4281, 4294901760
    %v4283 = vsub.f32 %v4281, %v4282
    %v4284 = vand.u32 %v4283, 4294901760
    %4285 = vmatpush1.msra.mxu0 %v4284
    %v4286 = vand.u32 %v3480, 4294901760
    %v4287 = vsub.f32 %v3480, %v4286
    %v4288 = vand.u32 %v4287, 4294901760
    %v4289 = vsub.f32 %v4287, %v4288
    %v4290 = vand.u32 %v4289, 4294901760
    %4291 = vmatprep.subr.mxu0 %v4290
    %v4292 = vand.u32 %v3479, 4294901760
    %v4293 = vsub.f32 %v3479, %v4292
    %v4294 = vand.u32 %v4293, 4294901760
    %v4295 = vsub.f32 %v4293, %v4294
    %v4296 = vand.u32 %v4295, 4294901760
    %4297 = vmatpush1.msra.mxu0 %v4296
    %v4298 = vand.u32 %v3476, 4294901760
    %v4299 = vsub.f32 %v3476, %v4298
    %v4300 = vand.u32 %v4299, 4294901760
    %v4301 = vsub.f32 %v4299, %v4300
    %v4302 = vand.u32 %v4301, 4294901760
    %4303 = vmatprep.subr.mxu0 %v4302
    %v4304 = vand.u32 %v3475, 4294901760
    %v4305 = vsub.f32 %v3475, %v4304
    %v4306 = vand.u32 %v4305, 4294901760
    %v4307 = vsub.f32 %v4305, %v4306
    %v4308 = vand.u32 %v4307, 4294901760
    %4309 = vmatpush1.msra.mxu0 %v4308
    %v4310 = vand.u32 %v3472, 4294901760
    %v4311 = vsub.f32 %v3472, %v4310
    %v4312 = vand.u32 %v4311, 4294901760
    %v4313 = vsub.f32 %v4311, %v4312
    %v4314 = vand.u32 %v4313, 4294901760
    %4315 = vmatprep.subr.mxu0 %v4314
    %v4316 = vand.u32 %v3471, 4294901760
    %v4317 = vsub.f32 %v3471, %v4316
    %v4318 = vand.u32 %v4317, 4294901760
    %v4319 = vsub.f32 %v4317, %v4318
    %v4320 = vand.u32 %v4319, 4294901760
    %4321 = vmatpush1.msra.mxu0 %v4320
    %v4322 = vand.u32 %v3468, 4294901760
    %v4323 = vsub.f32 %v3468, %v4322
    %v4324 = vand.u32 %v4323, 4294901760
    %v4325 = vsub.f32 %v4323, %v4324
    %v4326 = vand.u32 %v4325, 4294901760
    %4327 = vmatprep.subr.mxu0 %v4326
    %v4328 = vand.u32 %v3467, 4294901760
    %v4329 = vsub.f32 %v3467, %v4328
    %v4330 = vand.u32 %v4329, 4294901760
    %v4331 = vsub.f32 %v4329, %v4330
    %v4332 = vand.u32 %v4331, 4294901760
    %4333 = vmatpush1.msra.mxu0 %v4332
    %v4334 = vand.u32 %v3464, 4294901760
    %v4335 = vsub.f32 %v3464, %v4334
    %v4336 = vand.u32 %v4335, 4294901760
    %v4337 = vsub.f32 %v4335, %v4336
    %v4338 = vand.u32 %v4337, 4294901760
    %4339 = vmatprep.subr.mxu0 %v4338
    %v4340 = vand.u32 %v3463, 4294901760
    %v4341 = vsub.f32 %v3463, %v4340
    %v4342 = vand.u32 %v4341, 4294901760
    %v4343 = vsub.f32 %v4341, %v4342
    %v4344 = vand.u32 %v4343, 4294901760
    %4345 = vmatpush1.msra.mxu0 %v4344
    %v4346 = vand.u32 %v3460, 4294901760
    %v4347 = vsub.f32 %v3460, %v4346
    %v4348 = vand.u32 %v4347, 4294901760
    %v4349 = vsub.f32 %v4347, %v4348
    %v4350 = vand.u32 %v4349, 4294901760
    %4351 = vmatprep.subr.mxu0 %v4350
    %v4352 = vand.u32 %v3459, 4294901760
    %v4353 = vsub.f32 %v3459, %v4352
    %v4354 = vand.u32 %v4353, 4294901760
    %v4355 = vsub.f32 %v4353, %v4354
    %v4356 = vand.u32 %v4355, 4294901760
    %4357 = vmatpush1.msra.mxu0 %v4356
    %v4358 = vand.u32 %v3456, 4294901760
    %v4359 = vsub.f32 %v3456, %v4358
    %v4360 = vand.u32 %v4359, 4294901760
    %v4361 = vsub.f32 %v4359, %v4360
    %v4362 = vand.u32 %v4361, 4294901760
    %4363 = vmatprep.subr.mxu0 %v4362
    %v4364 = vand.u32 %v3455, 4294901760
    %v4365 = vsub.f32 %v3455, %v4364
    %v4366 = vand.u32 %v4365, 4294901760
    %v4367 = vsub.f32 %v4365, %v4366
    %v4368 = vand.u32 %v4367, 4294901760
    %4369 = vmatpush1.msra.mxu0 %v4368
    %v4370 = vand.u32 %v3452, 4294901760
    %v4371 = vsub.f32 %v3452, %v4370
    %v4372 = vand.u32 %v4371, 4294901760
    %v4373 = vsub.f32 %v4371, %v4372
    %v4374 = vand.u32 %v4373, 4294901760
    %4375 = vmatprep.subr.mxu0 %v4374
    %v4376 = vand.u32 %v3451, 4294901760
    %v4377 = vsub.f32 %v3451, %v4376
    %v4378 = vand.u32 %v4377, 4294901760
    %v4379 = vsub.f32 %v4377, %v4378
    %v4380 = vand.u32 %v4379, 4294901760
    %4381 = vmatpush1.msra.mxu0 %v4380
    %4382 = vmatprep.subr.mxu0 0.0
    %4383 = vmatpush2.msra.mxu0 0.0
    %4384 = vmatprep.subr.mxu0 0.0
    %4385 = vmatpush2.msra.mxu0 0.0
    %4386 = vmatprep.subr.mxu0 0.0
    %4387 = vmatpush2.msra.mxu0 0.0
    %4388 = vmatprep.subr.mxu0 0.0
    %4389 = vmatpush2.msra.mxu0 0.0
    %4390 = vmatprep.subr.mxu0 0.0
    %4391 = vmatpush2.msra.mxu0 0.0
    %4392 = vmatprep.subr.mxu0 0.0
    %4393 = vmatpush2.msra.mxu0 0.0
    %4394 = vmatprep.subr.mxu0 0.0
    %4395 = vmatpush2.msra.mxu0 0.0
    %4396 = vmatprep.subr.mxu0 0.0
    %4397 = vmatpush2.msra.mxu0 0.0
    %4398 = vmatprep.subr.mxu0 0.0
    %4399 = vmatpush2.msra.mxu0 0.0
    %4400 = vmatprep.subr.mxu0 0.0
    %4401 = vmatpush2.msra.mxu0 0.0
    %4402 = vmatprep.subr.mxu0 0.0
    %4403 = vmatpush2.msra.mxu0 0.0
    %4404 = vmatprep.subr.mxu0 0.0
    %4405 = vmatpush2.msra.mxu0 0.0
    %4406 = vmatprep.subr.mxu0 0.0
    %4407 = vmatpush2.msra.mxu0 0.0
    %4408 = vmatprep.subr.mxu0 0.0
    %4409 = vmatpush2.msra.mxu0 0.0
    %4410 = vmatprep.subr.mxu0 0.0
    %4411 = vmatpush2.msra.mxu0 0.0
    %4412 = vmatprep.subr.mxu0 0.0
    %4413 = vmatpush2.msra.mxu0 0.0
    %4414 = vmatprep.mubr.f32.mxu0 0.0
    %v4415 = vand.u32 %v3491, 4294901760
    %4416 = vmatmul.mubr.f32.gmra.mxu0 %v4415
    %v4417 = vpop.f32.mrf.mxu0
    %v4418 = vadd.f32 %v4256, %v4417
    %v4419 = vpop.f32.mrf.mxu0
    %v4420 = vadd.f32 %v4258, %v4419
    %4421 = vdwg.mxu0
    %4422 = vmatprep.subr.mxu0 0.0
    %4423 = vmatpush1.msra.mxu0 0.0
    %4424 = vmatprep.subr.mxu0 0.0
    %4425 = vmatpush1.msra.mxu0 0.0
    %4426 = vmatprep.subr.mxu0 0.0
    %4427 = vmatpush1.msra.mxu0 0.0
    %4428 = vmatprep.subr.mxu0 0.0
    %4429 = vmatpush1.msra.mxu0 0.0
    %4430 = vmatprep.subr.mxu0 0.0
    %4431 = vmatpush1.msra.mxu0 0.0
    %4432 = vmatprep.subr.mxu0 0.0
    %4433 = vmatpush1.msra.mxu0 0.0
    %4434 = vmatprep.subr.mxu0 0.0
    %4435 = vmatpush1.msra.mxu0 0.0
    %v4436 = vand.u32 %v3484, 4294901760
    %v4437 = vsub.f32 %v3484, %v4436
    %4438 = vmatprep.subr.mxu0 %v4437
    %v4439 = vand.u32 %v3483, 4294901760
    %v4440 = vsub.f32 %v3483, %v4439
    %4441 = vmatpush1.msra.mxu0 %v4440
    %v4442 = vand.u32 %v3480, 4294901760
    %v4443 = vsub.f32 %v3480, %v4442
    %4444 = vmatprep.subr.mxu0 %v4443
    %v4445 = vand.u32 %v3479, 4294901760
    %v4446 = vsub.f32 %v3479, %v4445
    %4447 = vmatpush1.msra.mxu0 %v4446
    %v4448 = vand.u32 %v3476, 4294901760
    %v4449 = vsub.f32 %v3476, %v4448
    %4450 = vmatprep.subr.mxu0 %v4449
    %v4451 = vand.u32 %v3475, 4294901760
    %v4452 = vsub.f32 %v3475, %v4451
    %4453 = vmatpush1.msra.mxu0 %v4452
    %v4454 = vand.u32 %v3472, 4294901760
    %v4455 = vsub.f32 %v3472, %v4454
    %4456 = vmatprep.subr.mxu0 %v4455
    %v4457 = vand.u32 %v3471, 4294901760
    %v4458 = vsub.f32 %v3471, %v4457
    %4459 = vmatpush1.msra.mxu0 %v4458
    %v4460 = vand.u32 %v3468, 4294901760
    %v4461 = vsub.f32 %v3468, %v4460
    %4462 = vmatprep.subr.mxu0 %v4461
    %v4463 = vand.u32 %v3467, 4294901760
    %v4464 = vsub.f32 %v3467, %v4463
    %4465 = vmatpush1.msra.mxu0 %v4464
    %v4466 = vand.u32 %v3464, 4294901760
    %v4467 = vsub.f32 %v3464, %v4466
    %4468 = vmatprep.subr.mxu0 %v4467
    %v4469 = vand.u32 %v3463, 4294901760
    %v4470 = vsub.f32 %v3463, %v4469
    %4471 = vmatpush1.msra.mxu0 %v4470
    %v4472 = vand.u32 %v3460, 4294901760
    %v4473 = vsub.f32 %v3460, %v4472
    %4474 = vmatprep.subr.mxu0 %v4473
    %v4475 = vand.u32 %v3459, 4294901760
    %v4476 = vsub.f32 %v3459, %v4475
    %4477 = vmatpush1.msra.mxu0 %v4476
    %v4478 = vand.u32 %v3456, 4294901760
    %v4479 = vsub.f32 %v3456, %v4478
    %4480 = vmatprep.subr.mxu0 %v4479
    %v4481 = vand.u32 %v3455, 4294901760
    %v4482 = vsub.f32 %v3455, %v4481
    %4483 = vmatpush1.msra.mxu0 %v4482
    %v4484 = vand.u32 %v3452, 4294901760
    %v4485 = vsub.f32 %v3452, %v4484
    %4486 = vmatprep.subr.mxu0 %v4485
    %v4487 = vand.u32 %v3451, 4294901760
    %v4488 = vsub.f32 %v3451, %v4487
    %4489 = vmatpush1.msra.mxu0 %v4488
    %4490 = vmatprep.subr.mxu0 0.0
    %4491 = vmatpush2.msra.mxu0 0.0
    %4492 = vmatprep.subr.mxu0 0.0
    %4493 = vmatpush2.msra.mxu0 0.0
    %4494 = vmatprep.subr.mxu0 0.0
    %4495 = vmatpush2.msra.mxu0 0.0
    %4496 = vmatprep.subr.mxu0 0.0
    %4497 = vmatpush2.msra.mxu0 0.0
    %4498 = vmatprep.subr.mxu0 0.0
    %4499 = vmatpush2.msra.mxu0 0.0
    %4500 = vmatprep.subr.mxu0 0.0
    %4501 = vmatpush2.msra.mxu0 0.0
    %4502 = vmatprep.subr.mxu0 0.0
    %4503 = vmatpush2.msra.mxu0 0.0
    %4504 = vmatprep.subr.mxu0 0.0
    %4505 = vmatpush2.msra.mxu0 0.0
    %4506 = vmatprep.subr.mxu0 0.0
    %4507 = vmatpush2.msra.mxu0 0.0
    %4508 = vmatprep.subr.mxu0 0.0
    %4509 = vmatpush2.msra.mxu0 0.0
    %4510 = vmatprep.subr.mxu0 0.0
    %4511 = vmatpush2.msra.mxu0 0.0
    %4512 = vmatprep.subr.mxu0 0.0
    %4513 = vmatpush2.msra.mxu0 0.0
    %4514 = vmatprep.subr.mxu0 0.0
    %4515 = vmatpush2.msra.mxu0 0.0
    %4516 = vmatprep.subr.mxu0 0.0
    %4517 = vmatpush2.msra.mxu0 0.0
    %4518 = vmatprep.subr.mxu0 0.0
    %4519 = vmatpush2.msra.mxu0 0.0
    %4520 = vmatprep.subr.mxu0 0.0
    %4521 = vmatpush2.msra.mxu0 0.0
    %4522 = vmatprep.mubr.f32.mxu0 0.0
    %v4523 = vand.u32 %v3491, 4294901760
    %v4524 = vsub.f32 %v3491, %v4523
    %4525 = vmatmul.mubr.f32.gmra.mxu0 %v4524
    %v4526 = vpop.f32.mrf.mxu0
    %v4527 = vadd.f32 %v4418, %v4526
    %v4528 = vpop.f32.mrf.mxu0
    %v4529 = vadd.f32 %v4420, %v4528
    %4530 = vdwg.mxu0
    %4531 = vmatprep.subr.mxu0 0.0
    %4532 = vmatpush1.msra.mxu0 0.0
    %4533 = vmatprep.subr.mxu0 0.0
    %4534 = vmatpush1.msra.mxu0 0.0
    %4535 = vmatprep.subr.mxu0 0.0
    %4536 = vmatpush1.msra.mxu0 0.0
    %4537 = vmatprep.subr.mxu0 0.0
    %4538 = vmatpush1.msra.mxu0 0.0
    %4539 = vmatprep.subr.mxu0 0.0
    %4540 = vmatpush1.msra.mxu0 0.0
    %4541 = vmatprep.subr.mxu0 0.0
    %4542 = vmatpush1.msra.mxu0 0.0
    %4543 = vmatprep.subr.mxu0 0.0
    %4544 = vmatpush1.msra.mxu0 0.0
    %v4545 = vand.u32 %v3484, 4294901760
    %4546 = vmatprep.subr.mxu0 %v4545
    %v4547 = vand.u32 %v3483, 4294901760
    %4548 = vmatpush1.msra.mxu0 %v4547
    %v4549 = vand.u32 %v3480, 4294901760
    %4550 = vmatprep.subr.mxu0 %v4549
    %v4551 = vand.u32 %v3479, 4294901760
    %4552 = vmatpush1.msra.mxu0 %v4551
    %v4553 = vand.u32 %v3476, 4294901760
    %4554 = vmatprep.subr.mxu0 %v4553
    %v4555 = vand.u32 %v3475, 4294901760
    %4556 = vmatpush1.msra.mxu0 %v4555
    %v4557 = vand.u32 %v3472, 4294901760
    %4558 = vmatprep.subr.mxu0 %v4557
    %v4559 = vand.u32 %v3471, 4294901760
    %4560 = vmatpush1.msra.mxu0 %v4559
    %v4561 = vand.u32 %v3468, 4294901760
    %4562 = vmatprep.subr.mxu0 %v4561
    %v4563 = vand.u32 %v3467, 4294901760
    %4564 = vmatpush1.msra.mxu0 %v4563
    %v4565 = vand.u32 %v3464, 4294901760
    %4566 = vmatprep.subr.mxu0 %v4565
    %v4567 = vand.u32 %v3463, 4294901760
    %4568 = vmatpush1.msra.mxu0 %v4567
    %v4569 = vand.u32 %v3460, 4294901760
    %4570 = vmatprep.subr.mxu0 %v4569
    %v4571 = vand.u32 %v3459, 4294901760
    %4572 = vmatpush1.msra.mxu0 %v4571
    %v4573 = vand.u32 %v3456, 4294901760
    %4574 = vmatprep.subr.mxu0 %v4573
    %v4575 = vand.u32 %v3455, 4294901760
    %4576 = vmatpush1.msra.mxu0 %v4575
    %v4577 = vand.u32 %v3452, 4294901760
    %4578 = vmatprep.subr.mxu0 %v4577
    %v4579 = vand.u32 %v3451, 4294901760
    %4580 = vmatpush1.msra.mxu0 %v4579
    %4581 = vmatprep.subr.mxu0 0.0
    %4582 = vmatpush2.msra.mxu0 0.0
    %4583 = vmatprep.subr.mxu0 0.0
    %4584 = vmatpush2.msra.mxu0 0.0
    %4585 = vmatprep.subr.mxu0 0.0
    %4586 = vmatpush2.msra.mxu0 0.0
    %4587 = vmatprep.subr.mxu0 0.0
    %4588 = vmatpush2.msra.mxu0 0.0
    %4589 = vmatprep.subr.mxu0 0.0
    %4590 = vmatpush2.msra.mxu0 0.0
    %4591 = vmatprep.subr.mxu0 0.0
    %4592 = vmatpush2.msra.mxu0 0.0
    %4593 = vmatprep.subr.mxu0 0.0
    %4594 = vmatpush2.msra.mxu0 0.0
    %4595 = vmatprep.subr.mxu0 0.0
    %4596 = vmatpush2.msra.mxu0 0.0
    %4597 = vmatprep.subr.mxu0 0.0
    %4598 = vmatpush2.msra.mxu0 0.0
    %4599 = vmatprep.subr.mxu0 0.0
    %4600 = vmatpush2.msra.mxu0 0.0
    %4601 = vmatprep.subr.mxu0 0.0
    %4602 = vmatpush2.msra.mxu0 0.0
    %4603 = vmatprep.subr.mxu0 0.0
    %4604 = vmatpush2.msra.mxu0 0.0
    %4605 = vmatprep.subr.mxu0 0.0
    %4606 = vmatpush2.msra.mxu0 0.0
    %4607 = vmatprep.subr.mxu0 0.0
    %4608 = vmatpush2.msra.mxu0 0.0
    %4609 = vmatprep.subr.mxu0 0.0
    %4610 = vmatpush2.msra.mxu0 0.0
    %4611 = vmatprep.subr.mxu0 0.0
    %4612 = vmatpush2.msra.mxu0 0.0
    %4613 = vmatprep.mubr.f32.mxu0 0.0
    %v4614 = vand.u32 %v3491, 4294901760
    %v4615 = vsub.f32 %v3491, %v4614
    %v4616 = vand.u32 %v4615, 4294901760
    %4617 = vmatmul.mubr.f32.gmra.mxu0 %v4616
    %v4618 = vpop.f32.mrf.mxu0
    %v4619 = vadd.f32 %v4527, %v4618
    %v4620 = vpop.f32.mrf.mxu0
    %v4621 = vadd.f32 %v4529, %v4620
    %4622 = vdwg.mxu0
    %4623 = vmatprep.subr.mxu0 0.0
    %4624 = vmatpush1.msra.mxu0 0.0
    %4625 = vmatprep.subr.mxu0 0.0
    %4626 = vmatpush1.msra.mxu0 0.0
    %4627 = vmatprep.subr.mxu0 0.0
    %4628 = vmatpush1.msra.mxu0 0.0
    %4629 = vmatprep.subr.mxu0 0.0
    %4630 = vmatpush1.msra.mxu0 0.0
    %4631 = vmatprep.subr.mxu0 0.0
    %4632 = vmatpush1.msra.mxu0 0.0
    %4633 = vmatprep.subr.mxu0 0.0
    %4634 = vmatpush1.msra.mxu0 0.0
    %4635 = vmatprep.subr.mxu0 0.0
    %4636 = vmatpush1.msra.mxu0 0.0
    %v4637 = vand.u32 %v3484, 4294901760
    %v4638 = vsub.f32 %v3484, %v4637
    %v4639 = vand.u32 %v4638, 4294901760
    %4640 = vmatprep.subr.mxu0 %v4639
    %v4641 = vand.u32 %v3483, 4294901760
    %v4642 = vsub.f32 %v3483, %v4641
    %v4643 = vand.u32 %v4642, 4294901760
    %4644 = vmatpush1.msra.mxu0 %v4643
    %v4645 = vand.u32 %v3480, 4294901760
    %v4646 = vsub.f32 %v3480, %v4645
    %v4647 = vand.u32 %v4646, 4294901760
    %4648 = vmatprep.subr.mxu0 %v4647
    %v4649 = vand.u32 %v3479, 4294901760
    %v4650 = vsub.f32 %v3479, %v4649
    %v4651 = vand.u32 %v4650, 4294901760
    %4652 = vmatpush1.msra.mxu0 %v4651
    %v4653 = vand.u32 %v3476, 4294901760
    %v4654 = vsub.f32 %v3476, %v4653
    %v4655 = vand.u32 %v4654, 4294901760
    %4656 = vmatprep.subr.mxu0 %v4655
    %v4657 = vand.u32 %v3475, 4294901760
    %v4658 = vsub.f32 %v3475, %v4657
    %v4659 = vand.u32 %v4658, 4294901760
    %4660 = vmatpush1.msra.mxu0 %v4659
    %v4661 = vand.u32 %v3472, 4294901760
    %v4662 = vsub.f32 %v3472, %v4661
    %v4663 = vand.u32 %v4662, 4294901760
    %4664 = vmatprep.subr.mxu0 %v4663
    %v4665 = vand.u32 %v3471, 4294901760
    %v4666 = vsub.f32 %v3471, %v4665
    %v4667 = vand.u32 %v4666, 4294901760
    %4668 = vmatpush1.msra.mxu0 %v4667
    %v4669 = vand.u32 %v3468, 4294901760
    %v4670 = vsub.f32 %v3468, %v4669
    %v4671 = vand.u32 %v4670, 4294901760
    %4672 = vmatprep.subr.mxu0 %v4671
    %v4673 = vand.u32 %v3467, 4294901760
    %v4674 = vsub.f32 %v3467, %v4673
    %v4675 = vand.u32 %v4674, 4294901760
    %4676 = vmatpush1.msra.mxu0 %v4675
    %v4677 = vand.u32 %v3464, 4294901760
    %v4678 = vsub.f32 %v3464, %v4677
    %v4679 = vand.u32 %v4678, 4294901760
    %4680 = vmatprep.subr.mxu0 %v4679
    %v4681 = vand.u32 %v3463, 4294901760
    %v4682 = vsub.f32 %v3463, %v4681
    %v4683 = vand.u32 %v4682, 4294901760
    %4684 = vmatpush1.msra.mxu0 %v4683
    %v4685 = vand.u32 %v3460, 4294901760
    %v4686 = vsub.f32 %v3460, %v4685
    %v4687 = vand.u32 %v4686, 4294901760
    %4688 = vmatprep.subr.mxu0 %v4687
    %v4689 = vand.u32 %v3459, 4294901760
    %v4690 = vsub.f32 %v3459, %v4689
    %v4691 = vand.u32 %v4690, 4294901760
    %4692 = vmatpush1.msra.mxu0 %v4691
    %v4693 = vand.u32 %v3456, 4294901760
    %v4694 = vsub.f32 %v3456, %v4693
    %v4695 = vand.u32 %v4694, 4294901760
    %4696 = vmatprep.subr.mxu0 %v4695
    %v4697 = vand.u32 %v3455, 4294901760
    %v4698 = vsub.f32 %v3455, %v4697
    %v4699 = vand.u32 %v4698, 4294901760
    %4700 = vmatpush1.msra.mxu0 %v4699
    %v4701 = vand.u32 %v3452, 4294901760
    %v4702 = vsub.f32 %v3452, %v4701
    %v4703 = vand.u32 %v4702, 4294901760
    %4704 = vmatprep.subr.mxu0 %v4703
    %v4705 = vand.u32 %v3451, 4294901760
    %v4706 = vsub.f32 %v3451, %v4705
    %v4707 = vand.u32 %v4706, 4294901760
    %4708 = vmatpush1.msra.mxu0 %v4707
    %4709 = vmatprep.subr.mxu0 0.0
    %4710 = vmatpush2.msra.mxu0 0.0
    %4711 = vmatprep.subr.mxu0 0.0
    %4712 = vmatpush2.msra.mxu0 0.0
    %4713 = vmatprep.subr.mxu0 0.0
    %4714 = vmatpush2.msra.mxu0 0.0
    %4715 = vmatprep.subr.mxu0 0.0
    %4716 = vmatpush2.msra.mxu0 0.0
    %4717 = vmatprep.subr.mxu0 0.0
    %4718 = vmatpush2.msra.mxu0 0.0
    %4719 = vmatprep.subr.mxu0 0.0
    %4720 = vmatpush2.msra.mxu0 0.0
    %4721 = vmatprep.subr.mxu0 0.0
    %4722 = vmatpush2.msra.mxu0 0.0
    %4723 = vmatprep.subr.mxu0 0.0
    %4724 = vmatpush2.msra.mxu0 0.0
    %4725 = vmatprep.subr.mxu0 0.0
    %4726 = vmatpush2.msra.mxu0 0.0
    %4727 = vmatprep.subr.mxu0 0.0
    %4728 = vmatpush2.msra.mxu0 0.0
    %4729 = vmatprep.subr.mxu0 0.0
    %4730 = vmatpush2.msra.mxu0 0.0
    %4731 = vmatprep.subr.mxu0 0.0
    %4732 = vmatpush2.msra.mxu0 0.0
    %4733 = vmatprep.subr.mxu0 0.0
    %4734 = vmatpush2.msra.mxu0 0.0
    %4735 = vmatprep.subr.mxu0 0.0
    %4736 = vmatpush2.msra.mxu0 0.0
    %4737 = vmatprep.subr.mxu0 0.0
    %4738 = vmatpush2.msra.mxu0 0.0
    %4739 = vmatprep.subr.mxu0 0.0
    %4740 = vmatpush2.msra.mxu0 0.0
    %4741 = vmatprep.mubr.f32.mxu0 0.0
    %v4742 = vand.u32 %v3491, 4294901760
    %4743 = vmatmul.mubr.f32.gmra.mxu0 %v4742
    %v4744 = vpop.f32.mrf.mxu0
    %v4745 = vadd.f32 %v4619, %v4744
    %v4746 = vpop.f32.mrf.mxu0
    %v4747 = vadd.f32 %v4621, %v4746
    %4748 = vdwg.mxu0
    %4749 = vmatprep.subr.mxu0 0.0
    %4750 = vmatpush1.msra.mxu0 0.0
    %4751 = vmatprep.subr.mxu0 0.0
    %4752 = vmatpush1.msra.mxu0 0.0
    %4753 = vmatprep.subr.mxu0 0.0
    %4754 = vmatpush1.msra.mxu0 0.0
    %4755 = vmatprep.subr.mxu0 0.0
    %4756 = vmatpush1.msra.mxu0 0.0
    %4757 = vmatprep.subr.mxu0 0.0
    %4758 = vmatpush1.msra.mxu0 0.0
    %4759 = vmatprep.subr.mxu0 0.0
    %4760 = vmatpush1.msra.mxu0 0.0
    %4761 = vmatprep.subr.mxu0 0.0
    %4762 = vmatpush1.msra.mxu0 0.0
    %v4763 = vand.u32 %v3484, 4294901760
    %4764 = vmatprep.subr.mxu0 %v4763
    %v4765 = vand.u32 %v3483, 4294901760
    %4766 = vmatpush1.msra.mxu0 %v4765
    %v4767 = vand.u32 %v3480, 4294901760
    %4768 = vmatprep.subr.mxu0 %v4767
    %v4769 = vand.u32 %v3479, 4294901760
    %4770 = vmatpush1.msra.mxu0 %v4769
    %v4771 = vand.u32 %v3476, 4294901760
    %4772 = vmatprep.subr.mxu0 %v4771
    %v4773 = vand.u32 %v3475, 4294901760
    %4774 = vmatpush1.msra.mxu0 %v4773
    %v4775 = vand.u32 %v3472, 4294901760
    %4776 = vmatprep.subr.mxu0 %v4775
    %v4777 = vand.u32 %v3471, 4294901760
    %4778 = vmatpush1.msra.mxu0 %v4777
    %v4779 = vand.u32 %v3468, 4294901760
    %4780 = vmatprep.subr.mxu0 %v4779
    %v4781 = vand.u32 %v3467, 4294901760
    %4782 = vmatpush1.msra.mxu0 %v4781
    %v4783 = vand.u32 %v3464, 4294901760
    %4784 = vmatprep.subr.mxu0 %v4783
    %v4785 = vand.u32 %v3463, 4294901760
    %4786 = vmatpush1.msra.mxu0 %v4785
    %v4787 = vand.u32 %v3460, 4294901760
    %4788 = vmatprep.subr.mxu0 %v4787
    %v4789 = vand.u32 %v3459, 4294901760
    %4790 = vmatpush1.msra.mxu0 %v4789
    %v4791 = vand.u32 %v3456, 4294901760
    %4792 = vmatprep.subr.mxu0 %v4791
    %v4793 = vand.u32 %v3455, 4294901760
    %4794 = vmatpush1.msra.mxu0 %v4793
    %v4795 = vand.u32 %v3452, 4294901760
    %4796 = vmatprep.subr.mxu0 %v4795
    %v4797 = vand.u32 %v3451, 4294901760
    %4798 = vmatpush1.msra.mxu0 %v4797
    %4799 = vmatprep.subr.mxu0 0.0
    %4800 = vmatpush2.msra.mxu0 0.0
    %4801 = vmatprep.subr.mxu0 0.0
    %4802 = vmatpush2.msra.mxu0 0.0
    %4803 = vmatprep.subr.mxu0 0.0
    %4804 = vmatpush2.msra.mxu0 0.0
    %4805 = vmatprep.subr.mxu0 0.0
    %4806 = vmatpush2.msra.mxu0 0.0
    %4807 = vmatprep.subr.mxu0 0.0
    %4808 = vmatpush2.msra.mxu0 0.0
    %4809 = vmatprep.subr.mxu0 0.0
    %4810 = vmatpush2.msra.mxu0 0.0
    %4811 = vmatprep.subr.mxu0 0.0
    %4812 = vmatpush2.msra.mxu0 0.0
    %4813 = vmatprep.subr.mxu0 0.0
    %4814 = vmatpush2.msra.mxu0 0.0
    %4815 = vmatprep.subr.mxu0 0.0
    %4816 = vmatpush2.msra.mxu0 0.0
    %4817 = vmatprep.subr.mxu0 0.0
    %4818 = vmatpush2.msra.mxu0 0.0
    %4819 = vmatprep.subr.mxu0 0.0
    %4820 = vmatpush2.msra.mxu0 0.0
    %4821 = vmatprep.subr.mxu0 0.0
    %4822 = vmatpush2.msra.mxu0 0.0
    %4823 = vmatprep.subr.mxu0 0.0
    %4824 = vmatpush2.msra.mxu0 0.0
    %4825 = vmatprep.subr.mxu0 0.0
    %4826 = vmatpush2.msra.mxu0 0.0
    %4827 = vmatprep.subr.mxu0 0.0
    %4828 = vmatpush2.msra.mxu0 0.0
    %4829 = vmatprep.subr.mxu0 0.0
    %4830 = vmatpush2.msra.mxu0 0.0
    %4831 = vmatprep.mubr.f32.mxu0 0.0
    %v4832 = vand.u32 %v3491, 4294901760
    %4833 = vmatmul.mubr.f32.gmra.mxu0 %v4832
    %v4834 = vpop.f32.mrf.mxu0
    %v4835 = vadd.f32 %v4745, %v4834
    %v4836 = vpop.f32.mrf.mxu0
    %v4837 = vadd.f32 %v4747, %v4836
    %4838 = vdwg.mxu0
    %4839 = vst [vmem:[#allocation8] sm:$0xff] %v4162
    %4840 = vst [vmem:[#allocation8 + $0x8] sm:$0xff] %v4164
    %4841 = vst [vmem:[#allocation8 + $0x10] sm:$0xff] %v4835
    %4842 = vst [vmem:[#allocation8 + $0x18] sm:$0xff] %v4837
    // Predicated region
    $region34: #{tpu_custom_call.1} parent=1 // pred_check
      _
    $region35: #{tpu_custom_call.1} parent=1 // pred_check_branch
      %4844 = sbr.rel (0) target = $region37
    $region36: #{tpu_custom_call.1} parent=1 // pred_region
      %s4846 = ssub.s32 512, 512
      %4847 = vsyncadd [#allocation5], %s4846
      %s4849 = sshll.u32 [#allocation8], 4
      %s4850 = int_to_ptr.vmem [resolvable:$true] %s4849
      %4852 = dma.vmem_to_hbm [thread:$0]  %s4850, 512, %s6, [#allocation5]
    $region37: #{tpu_custom_call.1} parent=1 // pred_fallthru
      _
    // Predicated region
    $region38: #{tpu_custom_call.1} parent=1 // pred_check
      _
    $region39: #{tpu_custom_call.1} parent=1 // pred_check_branch
      %4854 = sbr.rel (0) target = $region41
    $region40: #{tpu_custom_call.1} parent=1 // pred_region
      %4855 = dma.done [#allocation5], 512
    $region41: #{tpu_custom_call.1} parent=1 // pred_fallthru
      _
    %4856 = vsyncpa [#allocation4], 1
    %4857 = vsyncpa [#allocation7], 1
    %4858 = vsyncpa [#allocation5], 1

</llo_original>
